<compile_context>
chip_gen: v6e
topology: v6e:2x2x1
jax: 0.10.0
libtpu: 0.0.40
codegen_flags: <defaults>
</compile_context>

<pallas_src>
import functools
import math

import jax
import jax.numpy as jnp
import numpy as np
from jax.experimental import pallas as pl
from jax.experimental.pallas import tpu as pltpu

D_MODEL = 32
N_HEADS = 4
D_K = D_MODEL // N_HEADS
D_FF = 64
N_LAYERS = 2
EPS = 1e-6
NEG_INF = -1e30
SCALE = 1.0 / math.sqrt(D_K)


# ---------------------------------- Pallas kernel ------------------------------------------

def _decoder_kernel(x_ref, enc_ref, sb_ref, cb_ref,
                    wqkv_ref, bqkv_ref, wqc_ref, bqc_ref, wkvc_ref, bkvc_ref,
                    wo_ref, bo_ref, w1_ref, b1_ref, w2_ref, b2_ref, ln_ref,
                    out_ref, *, S_tgt, n_layers):
    x = x_ref[0]            # (S_tgt, D)
    enc = enc_ref[0]        # (S_src, D)
    sb = sb_ref[0]          # (H*S_tgt, H*S_tgt) additive bias: head block-diag + tgt mask
    cb = cb_ref[0]          # (H*S_tgt, H*S_src) additive bias: head block-diag + src mask

    def layer_norm(v, idx):
        alpha = ln_ref[idx:idx + 1, 0:1]                 # (1,1), broadcasts over (S, D)
        beta = ln_ref[idx:idx + 1, 1:2]
        mean = jnp.mean(v, axis=-1, keepdims=True)
        var = jnp.sum((v - mean) ** 2, axis=-1, keepdims=True) * (1.0 / (D_MODEL - 1))
        inv = pl.reciprocal(jnp.sqrt(var) + EPS, approx=False)
        return alpha * (v - mean) * inv + beta

    def to_heads(m):
        # (rows, D) -> (H*rows, D_K); heads become the major index of the sublane axis.
        return jnp.concatenate(
            [m[:, h * D_K:(h + 1) * D_K] for h in range(N_HEADS)], axis=0)

    def from_heads(mz):
        # (H*S_tgt, D_K) -> (S_tgt, D); heads back onto the lane axis (head-major).
        return jnp.concatenate(
            [mz[h * S_tgt:(h + 1) * S_tgt, :] for h in range(N_HEADS)], axis=1)

    def block_attention(Qz, Kz, Vz, bias, wo, bo):
        # Single lane-dense score matmul over all heads; off-diagonal head blocks are
        # suppressed by the additive bias, so softmax + PV over the fused H*S_k axis
        # reproduce per-head attention exactly (masked terms underflow to exact 0).
        s = jnp.einsum('qd,kd->qk', Qz, Kz, preferred_element_type=jnp.float32) + bias
        m = jnp.max(s, axis=-1, keepdims=True)
        e = jnp.exp(s - m)
        p = e * pl.reciprocal(jnp.sum(e, axis=-1, keepdims=True), approx=False)
        oz = jnp.dot(p, Vz, preferred_element_type=jnp.float32)     # (H*S_tgt, D_K)
        o = from_heads(oz)                                           # (S_tgt, D)
        return jnp.dot(o, wo, preferred_element_type=jnp.float32) + bo

    # Cross-attention K/V only depend on the fixed encoder output and the shared layer
    # weights: compute once, reuse in every layer.
    kv_c = jnp.dot(enc, wkvc_ref[...], preferred_element_type=jnp.float32) + bkvc_ref[...]
    Kc = to_heads(kv_c[:, :D_MODEL])         # (H*S_src, D_K)
    Vc = to_heads(kv_c[:, D_MODEL:])

    for _ in range(n_layers):
        # --- self attention (fused QKV projection; scale pre-folded into W_Q/b_Q) ---
        xn = layer_norm(x, 0)
        qkv = jnp.dot(xn, wqkv_ref[...], preferred_element_type=jnp.float32) + bqkv_ref[...]
        Qz = to_heads(qkv[:, :D_MODEL])
        Kz = to_heads(qkv[:, D_MODEL:2 * D_MODEL])
        Vz = to_heads(qkv[:, 2 * D_MODEL:])
        x = x + block_attention(Qz, Kz, Vz, sb, wo_ref[0], bo_ref[0])

        # --- cross attention (K/V precomputed above) ---
        xn = layer_norm(x, 1)
        q = jnp.dot(xn, wqc_ref[...], preferred_element_type=jnp.float32) + bqc_ref[...]
        x = x + block_attention(to_heads(q), Kc, Vc, cb, wo_ref[1], bo_ref[1])

        # --- FFN ---
        xn = layer_norm(x, 2)
        h = jnp.maximum(
            jnp.dot(xn, w1_ref[...], preferred_element_type=jnp.float32) + b1_ref[...], 0.0)
        x = x + jnp.dot(h, w2_ref[...], preferred_element_type=jnp.float32) + b2_ref[...]

    out_ref[0] = x


def decoder_forward(x, enc, src_mask, tgt_mask, params, n_layers=N_LAYERS):
    B, S_tgt, D = x.shape
    S_src = enc.shape[1]
    attn_w, attn_b, w1, b1, w2, b2, ln = params
    f32 = jnp.float32

    x = x.astype(f32)
    enc = enc.astype(f32)

    # --- weight packing (wrapper-side, one-time): fused QKV, scale folded into Q ---
    wqkv_s = jnp.concatenate([attn_w[0, 0] * SCALE, attn_w[0, 1], attn_w[0, 2]], axis=1)
    bqkv_s = jnp.concatenate([attn_b[0, 0] * SCALE, attn_b[0, 1], attn_b[0, 2]], axis=1)
    wq_c = attn_w[1, 0] * SCALE
    bq_c = attn_b[1, 0] * SCALE
    wkv_c = jnp.concatenate([attn_w[1, 1], attn_w[1, 2]], axis=1)
    bkv_c = jnp.concatenate([attn_b[1, 1], attn_b[1, 2]], axis=1)
    wo = jnp.stack([attn_w[0, 3], attn_w[1, 3]])      # (2, D, D)
    bo = jnp.stack([attn_b[0, 3], attn_b[1, 3]])      # (2, 1, D)

    # Additive attention bias with the head-block-diagonal structure folded in:
    # entry (h*Sq+q, h'*Sk+k) is 0 iff h == h' and mask[b, q, k] != 0, else NEG_INF.
    def block_bias(mask):
        _, S_q, S_k = mask.shape
        hq = jax.lax.broadcasted_iota(jnp.int32, (N_HEADS * S_q, N_HEADS * S_k), 0) // S_q
        hk = jax.lax.broadcasted_iota(jnp.int32, (N_HEADS * S_q, N_HEADS * S_k), 1) // S_k
        same_head = (hq == hk)[None]
        tiled = jnp.tile(mask.astype(f32), (1, N_HEADS, N_HEADS)) != 0.0
        return jnp.where(jnp.logical_and(same_head, tiled), f32(0.0), f32(NEG_INF))

    sb = block_bias(tgt_mask)                          # (B, H*S_tgt, H*S_tgt)
    cb = block_bias(src_mask)                          # (B, H*S_tgt, H*S_src)

    ln = ln.astype(f32)

    kernel = functools.partial(_decoder_kernel, S_tgt=S_tgt, n_layers=n_layers)

    def bspec(shape):        # per-batch blocked operand
        return pl.BlockSpec((1,) + shape[1:], lambda b: (b,) + (0,) * (len(shape) - 1))

    def wspec(shape):        # whole-array, grid-invariant operand (weights / biases)
        rank = len(shape)
        return pl.BlockSpec(shape, lambda b: (0,) * rank)

    in_specs = [
        bspec(x.shape), bspec(enc.shape), bspec(sb.shape), bspec(cb.shape),
        wspec(wqkv_s.shape), wspec(bqkv_s.shape),
        wspec(wq_c.shape), wspec(bq_c.shape),
        wspec(wkv_c.shape), wspec(bkv_c.shape),
        wspec(wo.shape), wspec(bo.shape),
        wspec(w1.shape), wspec(b1.shape), wspec(w2.shape), wspec(b2.shape),
        wspec(ln.shape),
    ]

    out = pl.pallas_call(
        kernel,
        out_shape=jax.ShapeDtypeStruct((B, S_tgt, D), f32),
        grid=(B,),
        in_specs=in_specs,
        out_specs=pl.BlockSpec((1, S_tgt, D), lambda b: (b, 0, 0)),
        compiler_params=pltpu.CompilerParams(dimension_semantics=("parallel",)),
    )(x, enc, sb, cb, wqkv_s, bqkv_s, wq_c, bq_c, wkv_c, bkv_c,
      wo, bo, w1, b1, w2, b2, ln)
    return out


# ------------------------------------ reference --------------------------------------------

def _ref_layer_norm(x, alpha, bias):
    mean = jnp.mean(x, axis=-1, keepdims=True)
    var = jnp.sum((x - mean) ** 2, axis=-1, keepdims=True) / (x.shape[-1] - 1)
    return alpha * (x - mean) / (jnp.sqrt(var) + EPS) + bias


def _ref_mha(q_in, kv_in, w, b, mask):
    Q = q_in @ w[0] + b[0]
    K = kv_in @ w[1] + b[1]
    V = kv_in @ w[2] + b[2]
    outs = []
    for h in range(N_HEADS):
        lo = h * D_K
        s = (Q[:, lo:lo + D_K] @ K[:, lo:lo + D_K].T) * SCALE
        s = jnp.where(mask == 0.0, NEG_INF, s)
        m = jnp.max(s, axis=-1, keepdims=True)
        e = jnp.exp(s - m)
        p = e / jnp.sum(e, axis=-1, keepdims=True)
        outs.append(p @ V[:, lo:lo + D_K])
    return jnp.concatenate(outs, axis=-1) @ w[3] + b[3]


def decoder_forward_ref(x, enc, src_mask, tgt_mask, params, n_layers=N_LAYERS):
    attn_w, attn_b, w1, b1, w2, b2, ln = params

    def one(xb, encb, sm, tm):
        for _ in range(n_layers):
            xn = _ref_layer_norm(xb, ln[0, 0], ln[0, 1])
            xb = xb + _ref_mha(xn, xn, attn_w[0], attn_b[0], tm)
            xn = _ref_layer_norm(xb, ln[1, 0], ln[1, 1])
            xb = xb + _ref_mha(xn, encb, attn_w[1], attn_b[1], sm)
            xn = _ref_layer_norm(xb, ln[2, 0], ln[2, 1])
            hdn = jnp.maximum(xn @ w1 + b1, 0.0)
            xb = xb + hdn @ w2 + b2
        return xb

    return jax.vmap(one)(x, enc, src_mask, tgt_mask)


# ------------------------------------- params ----------------------------------------------

def init_params(key):
    ks = jax.random.split(key, 6)
    # (attention {self, cross}, role {Q,K,V,O}, D, D) -- pre-transposed: y = x @ W + b
    attn_w = 0.1 * jax.random.normal(ks[0], (2, 4, D_MODEL, D_MODEL), jnp.float32)
    attn_b = 0.1 * jax.random.normal(ks[1], (2, 4, 1, D_MODEL), jnp.float32)
    w1 = 0.1 * jax.random.normal(ks[2], (D_MODEL, D_FF), jnp.float32)
    b1 = 0.1 * jax.random.normal(ks[3], (1, D_FF), jnp.float32)
    w2 = 0.1 * jax.random.normal(ks[4], (D_FF, D_MODEL), jnp.float32)
    b2 = 0.1 * jax.random.normal(ks[5], (1, D_MODEL), jnp.float32)
    # LayerNorm scalars per residual connection: alpha=1, bias=0 (torch.ones(1)/zeros(1))
    ln = jnp.concatenate([jnp.ones((3, 1), jnp.float32),
                          jnp.zeros((3, 1), jnp.float32)], axis=1)
    return attn_w, attn_b, w1, b1, w2, b2, ln


if __name__ == "__main__":
    B, S_TGT, S_SRC = 2, 8, 8
    key = jax.random.PRNGKey(0)
    kx, ke, kp = jax.random.split(key, 3)

    x = jax.random.normal(kx, (B, S_TGT, D_MODEL), jnp.float32)
    enc_out = jax.random.normal(ke, (B, S_SRC, D_MODEL), jnp.float32)
    tgt_mask = jnp.broadcast_to(jnp.tril(jnp.ones((S_TGT, S_TGT), jnp.float32)),
                                (B, S_TGT, S_TGT))
    src_mask = jnp.ones((B, S_TGT, S_SRC), jnp.float32)

    params = init_params(kp)

    out = decoder_forward(x, enc_out, src_mask, tgt_mask, params)
    out = jax.block_until_ready(out)

    ref = decoder_forward_ref(x, enc_out, src_mask, tgt_mask, params)
    np.testing.assert_allclose(np.asarray(out), np.asarray(ref), rtol=1e-4, atol=1e-4)

    print("KERNEL_OK")
</pallas_src>

<mosaic_0001>
module attributes {stable_mosaic.version = 11 : i64} {
  func.func @_decoder_kernel(%arg0: i32, %arg1: memref<1x8x32xf32, #tpu.memory_space<vmem>>, %arg2: memref<1x8x32xf32, #tpu.memory_space<vmem>>, %arg3: memref<1x32x32xf32, #tpu.memory_space<vmem>>, %arg4: memref<1x32x32xf32, #tpu.memory_space<vmem>>, %arg5: memref<32x96xf32, #tpu.memory_space<vmem>>, %arg6: memref<1x96xf32, #tpu.memory_space<vmem>>, %arg7: memref<32x32xf32, #tpu.memory_space<vmem>>, %arg8: memref<1x32xf32, #tpu.memory_space<vmem>>, %arg9: memref<32x64xf32, #tpu.memory_space<vmem>>, %arg10: memref<1x64xf32, #tpu.memory_space<vmem>>, %arg11: memref<2x32x32xf32, #tpu.memory_space<vmem>>, %arg12: memref<2x1x32xf32, #tpu.memory_space<vmem>>, %arg13: memref<32x64xf32, #tpu.memory_space<vmem>>, %arg14: memref<1x64xf32, #tpu.memory_space<vmem>>, %arg15: memref<64x32xf32, #tpu.memory_space<vmem>>, %arg16: memref<1x32xf32, #tpu.memory_space<vmem>>, %arg17: memref<3x2xf32, #tpu.memory_space<vmem>>, %arg18: memref<1x8x32xf32, #tpu.memory_space<vmem>>) attributes {dimension_semantics = [#tpu.dimension_semantics<parallel>], iteration_bounds = array<i64: 2>, scalar_prefetch = 0 : i64, scratch_operands = 0 : i64, tpu.core_type = #tpu.core_type<tc>, window_params = [{transform_indices = @transform_0, window_bounds = array<i64: 1, 8, 32>}, {transform_indices = @transform_1, window_bounds = array<i64: 1, 8, 32>}, {transform_indices = @transform_2, window_bounds = array<i64: 1, 32, 32>}, {transform_indices = @transform_3, window_bounds = array<i64: 1, 32, 32>}, {pipeline_mode = #tpu.pipeline_mode<synchronous>, transform_indices = @transform_4, window_bounds = array<i64: 32, 96>}, {pipeline_mode = #tpu.pipeline_mode<synchronous>, transform_indices = @transform_5, window_bounds = array<i64: 1, 96>}, {pipeline_mode = #tpu.pipeline_mode<synchronous>, transform_indices = @transform_6, window_bounds = array<i64: 32, 32>}, {pipeline_mode = #tpu.pipeline_mode<synchronous>, transform_indices = @transform_7, window_bounds = array<i64: 1, 32>}, {pipeline_mode = #tpu.pipeline_mode<synchronous>, transform_indices = @transform_8, window_bounds = array<i64: 32, 64>}, {pipeline_mode = #tpu.pipeline_mode<synchronous>, transform_indices = @transform_9, window_bounds = array<i64: 1, 64>}, {pipeline_mode = #tpu.pipeline_mode<synchronous>, transform_indices = @transform_10, window_bounds = array<i64: 2, 32, 32>}, {pipeline_mode = #tpu.pipeline_mode<synchronous>, transform_indices = @transform_11, window_bounds = array<i64: 2, 1, 32>}, {pipeline_mode = #tpu.pipeline_mode<synchronous>, transform_indices = @transform_12, window_bounds = array<i64: 32, 64>}, {pipeline_mode = #tpu.pipeline_mode<synchronous>, transform_indices = @transform_13, window_bounds = array<i64: 1, 64>}, {pipeline_mode = #tpu.pipeline_mode<synchronous>, transform_indices = @transform_14, window_bounds = array<i64: 64, 32>}, {pipeline_mode = #tpu.pipeline_mode<synchronous>, transform_indices = @transform_15, window_bounds = array<i64: 1, 32>}, {pipeline_mode = #tpu.pipeline_mode<synchronous>, transform_indices = @transform_16, window_bounds = array<i64: 3, 2>}, {transform_indices = @transform_17, window_bounds = array<i64: 1, 8, 32>}]} {
    %c0 = arith.constant 0 : index
    %c0_0 = arith.constant 0 : index
    %c0_1 = arith.constant 0 : index
    %0 = vector.load %arg1[%c0, %c0_0, %c0_1] : memref<1x8x32xf32, #tpu.memory_space<vmem>>, vector<1x8x32xf32>
    %1 = vector.shape_cast %0 : vector<1x8x32xf32> to vector<8x32xf32>
    %c0_2 = arith.constant 0 : index
    %c0_3 = arith.constant 0 : index
    %c0_4 = arith.constant 0 : index
    %2 = vector.load %arg2[%c0_2, %c0_3, %c0_4] : memref<1x8x32xf32, #tpu.memory_space<vmem>>, vector<1x8x32xf32>
    %3 = vector.shape_cast %2 : vector<1x8x32xf32> to vector<8x32xf32>
    %c0_5 = arith.constant 0 : index
    %c0_6 = arith.constant 0 : index
    %c0_7 = arith.constant 0 : index
    %4 = vector.load %arg3[%c0_5, %c0_6, %c0_7] : memref<1x32x32xf32, #tpu.memory_space<vmem>>, vector<1x32x32xf32>
    %5 = vector.shape_cast %4 : vector<1x32x32xf32> to vector<32x32xf32>
    %c0_8 = arith.constant 0 : index
    %c0_9 = arith.constant 0 : index
    %c0_10 = arith.constant 0 : index
    %6 = vector.load %arg4[%c0_8, %c0_9, %c0_10] : memref<1x32x32xf32, #tpu.memory_space<vmem>>, vector<1x32x32xf32>
    %7 = vector.shape_cast %6 : vector<1x32x32xf32> to vector<32x32xf32>
    %c0_11 = arith.constant 0 : index
    %c0_12 = arith.constant 0 : index
    %8 = vector.load %arg9[%c0_11, %c0_12] : memref<32x64xf32, #tpu.memory_space<vmem>>, vector<32x64xf32>
    %cst = arith.constant dense<0.000000e+00> : vector<8x64xf32>
    %9 = tpu.matmul %3, %8, %cst {dimension_numbers = #tpu.dot_dimension_numbers<[1], [0], [0], [1], [0, 0, 1, 1], [], []>} : vector<8x32xf32>, vector<32x64xf32>, vector<8x64xf32> -> vector<8x64xf32>
    %c0_13 = arith.constant 0 : index
    %c0_14 = arith.constant 0 : index
    %10 = vector.load %arg10[%c0_13, %c0_14] : memref<1x64xf32, #tpu.memory_space<vmem>>, vector<1x64xf32>
    %11 = vector.broadcast %10 : vector<1x64xf32> to vector<8x64xf32>
    %12 = arith.addf %9, %11 : vector<8x64xf32>
    %13 = vector.extract_strided_slice %12 {offsets = [0, 0], sizes = [8, 32], strides = [1, 1]} : vector<8x64xf32> to vector<8x32xf32>
    %14 = vector.extract_strided_slice %13 {offsets = [0, 0], sizes = [8, 8], strides = [1, 1]} : vector<8x32xf32> to vector<8x8xf32>
    %15 = vector.extract_strided_slice %13 {offsets = [0, 8], sizes = [8, 8], strides = [1, 1]} : vector<8x32xf32> to vector<8x8xf32>
    %16 = vector.extract_strided_slice %13 {offsets = [0, 16], sizes = [8, 8], strides = [1, 1]} : vector<8x32xf32> to vector<8x8xf32>
    %17 = vector.extract_strided_slice %13 {offsets = [0, 24], sizes = [8, 8], strides = [1, 1]} : vector<8x32xf32> to vector<8x8xf32>
    %18 = tpu.concatenate %14, %15, %16, %17 in 0 : vector<8x8xf32>, vector<8x8xf32>, vector<8x8xf32>, vector<8x8xf32> -> vector<32x8xf32>
    %19 = vector.extract_strided_slice %12 {offsets = [0, 32], sizes = [8, 32], strides = [1, 1]} : vector<8x64xf32> to vector<8x32xf32>
    %20 = vector.extract_strided_slice %19 {offsets = [0, 0], sizes = [8, 8], strides = [1, 1]} : vector<8x32xf32> to vector<8x8xf32>
    %21 = vector.extract_strided_slice %19 {offsets = [0, 8], sizes = [8, 8], strides = [1, 1]} : vector<8x32xf32> to vector<8x8xf32>
    %22 = vector.extract_strided_slice %19 {offsets = [0, 16], sizes = [8, 8], strides = [1, 1]} : vector<8x32xf32> to vector<8x8xf32>
    %23 = vector.extract_strided_slice %19 {offsets = [0, 24], sizes = [8, 8], strides = [1, 1]} : vector<8x32xf32> to vector<8x8xf32>
    %24 = tpu.concatenate %20, %21, %22, %23 in 0 : vector<8x8xf32>, vector<8x8xf32>, vector<8x8xf32>, vector<8x8xf32> -> vector<32x8xf32>
    %c0_15 = arith.constant 0 : index
    %c0_16 = arith.constant 0 : index
    %25 = vector.load %arg17[%c0_15, %c0_16] : memref<3x2xf32, #tpu.memory_space<vmem>>, vector<1x1xf32>
    %c0_17 = arith.constant 0 : index
    %c1 = arith.constant 1 : index
    %26 = vector.load %arg17[%c0_17, %c1] : memref<3x2xf32, #tpu.memory_space<vmem>>, vector<1x1xf32>
    %cst_18 = arith.constant dense<0.000000e+00> : vector<8xf32>
    %27 = vector.multi_reduction <add>, %1, %cst_18 [1] : vector<8x32xf32> to vector<8xf32>
    %28 = vector.shape_cast %27 : vector<8xf32> to vector<8x1xf32>
    %cst_19 = arith.constant 3.200000e+01 : f32
    %29 = vector.broadcast %cst_19 : f32 to vector<8x1xf32>
    %30 = arith.divf %28, %29 : vector<8x1xf32>
    %31 = vector.broadcast %30 : vector<8x1xf32> to vector<8x32xf32>
    %32 = arith.subf %1, %31 : vector<8x32xf32>
    %33 = arith.mulf %32, %32 : vector<8x32xf32>
    %cst_20 = arith.constant dense<0.000000e+00> : vector<8xf32>
    %34 = vector.multi_reduction <add>, %33, %cst_20 [1] : vector<8x32xf32> to vector<8xf32>
    %35 = vector.shape_cast %34 : vector<8xf32> to vector<8x1xf32>
    %cst_21 = arith.constant 0.0322580636 : f32
    %36 = vector.broadcast %cst_21 : f32 to vector<8x1xf32>
    %37 = arith.mulf %35, %36 : vector<8x1xf32>
    %38 = math.sqrt %37 : vector<8x1xf32>
    %cst_22 = arith.constant 9.99999997E-7 : f32
    %39 = vector.broadcast %cst_22 : f32 to vector<8x1xf32>
    %40 = arith.addf %38, %39 : vector<8x1xf32>
    %41 = tpu.reciprocal %40 : vector<8x1xf32> -> vector<8x1xf32>
    %42 = vector.broadcast %30 : vector<8x1xf32> to vector<8x32xf32>
    %43 = arith.subf %1, %42 : vector<8x32xf32>
    %44 = vector.broadcast %25 : vector<1x1xf32> to vector<8x32xf32>
    %45 = arith.mulf %44, %43 : vector<8x32xf32>
    %46 = vector.broadcast %41 : vector<8x1xf32> to vector<8x32xf32>
    %47 = arith.mulf %45, %46 : vector<8x32xf32>
    %48 = vector.broadcast %26 : vector<1x1xf32> to vector<8x32xf32>
    %49 = arith.addf %47, %48 : vector<8x32xf32>
    %c0_23 = arith.constant 0 : index
    %c0_24 = arith.constant 0 : index
    %50 = vector.load %arg5[%c0_23, %c0_24] : memref<32x96xf32, #tpu.memory_space<vmem>>, vector<32x96xf32>
    %cst_25 = arith.constant dense<0.000000e+00> : vector<8x96xf32>
    %51 = tpu.matmul %49, %50, %cst_25 {dimension_numbers = #tpu.dot_dimension_numbers<[1], [0], [0], [1], [0, 0, 1, 1], [], []>} : vector<8x32xf32>, vector<32x96xf32>, vector<8x96xf32> -> vector<8x96xf32>
    %c0_26 = arith.constant 0 : index
    %c0_27 = arith.constant 0 : index
    %52 = vector.load %arg6[%c0_26, %c0_27] : memref<1x96xf32, #tpu.memory_space<vmem>>, vector<1x96xf32>
    %53 = vector.broadcast %52 : vector<1x96xf32> to vector<8x96xf32>
    %54 = arith.addf %51, %53 : vector<8x96xf32>
    %55 = vector.extract_strided_slice %54 {offsets = [0, 0], sizes = [8, 32], strides = [1, 1]} : vector<8x96xf32> to vector<8x32xf32>
    %56 = vector.extract_strided_slice %55 {offsets = [0, 0], sizes = [8, 8], strides = [1, 1]} : vector<8x32xf32> to vector<8x8xf32>
    %57 = vector.extract_strided_slice %55 {offsets = [0, 8], sizes = [8, 8], strides = [1, 1]} : vector<8x32xf32> to vector<8x8xf32>
    %58 = vector.extract_strided_slice %55 {offsets = [0, 16], sizes = [8, 8], strides = [1, 1]} : vector<8x32xf32> to vector<8x8xf32>
    %59 = vector.extract_strided_slice %55 {offsets = [0, 24], sizes = [8, 8], strides = [1, 1]} : vector<8x32xf32> to vector<8x8xf32>
    %60 = tpu.concatenate %56, %57, %58, %59 in 0 : vector<8x8xf32>, vector<8x8xf32>, vector<8x8xf32>, vector<8x8xf32> -> vector<32x8xf32>
    %61 = vector.extract_strided_slice %54 {offsets = [0, 32], sizes = [8, 32], strides = [1, 1]} : vector<8x96xf32> to vector<8x32xf32>
    %62 = vector.extract_strided_slice %61 {offsets = [0, 0], sizes = [8, 8], strides = [1, 1]} : vector<8x32xf32> to vector<8x8xf32>
    %63 = vector.extract_strided_slice %61 {offsets = [0, 8], sizes = [8, 8], strides = [1, 1]} : vector<8x32xf32> to vector<8x8xf32>
    %64 = vector.extract_strided_slice %61 {offsets = [0, 16], sizes = [8, 8], strides = [1, 1]} : vector<8x32xf32> to vector<8x8xf32>
    %65 = vector.extract_strided_slice %61 {offsets = [0, 24], sizes = [8, 8], strides = [1, 1]} : vector<8x32xf32> to vector<8x8xf32>
    %66 = tpu.concatenate %62, %63, %64, %65 in 0 : vector<8x8xf32>, vector<8x8xf32>, vector<8x8xf32>, vector<8x8xf32> -> vector<32x8xf32>
    %67 = vector.extract_strided_slice %54 {offsets = [0, 64], sizes = [8, 32], strides = [1, 1]} : vector<8x96xf32> to vector<8x32xf32>
    %68 = vector.extract_strided_slice %67 {offsets = [0, 0], sizes = [8, 8], strides = [1, 1]} : vector<8x32xf32> to vector<8x8xf32>
    %69 = vector.extract_strided_slice %67 {offsets = [0, 8], sizes = [8, 8], strides = [1, 1]} : vector<8x32xf32> to vector<8x8xf32>
    %70 = vector.extract_strided_slice %67 {offsets = [0, 16], sizes = [8, 8], strides = [1, 1]} : vector<8x32xf32> to vector<8x8xf32>
    %71 = vector.extract_strided_slice %67 {offsets = [0, 24], sizes = [8, 8], strides = [1, 1]} : vector<8x32xf32> to vector<8x8xf32>
    %72 = tpu.concatenate %68, %69, %70, %71 in 0 : vector<8x8xf32>, vector<8x8xf32>, vector<8x8xf32>, vector<8x8xf32> -> vector<32x8xf32>
    %c0_28 = arith.constant 0 : index
    %c0_29 = arith.constant 0 : index
    %c0_30 = arith.constant 0 : index
    %73 = vector.load %arg11[%c0_28, %c0_29, %c0_30] : memref<2x32x32xf32, #tpu.memory_space<vmem>>, vector<1x32x32xf32>
    %74 = vector.shape_cast %73 : vector<1x32x32xf32> to vector<32x32xf32>
    %c0_31 = arith.constant 0 : index
    %c0_32 = arith.constant 0 : index
    %c0_33 = arith.constant 0 : index
    %75 = vector.load %arg12[%c0_31, %c0_32, %c0_33] : memref<2x1x32xf32, #tpu.memory_space<vmem>>, vector<1x1x32xf32>
    %76 = vector.shape_cast %75 : vector<1x1x32xf32> to vector<1x32xf32>
    "tpu.trace_start"() <{level = 10 : i32, message = "qd,kd->qk"}> : () -> ()
    %cst_34 = arith.constant dense<0.000000e+00> : vector<32x32xf32>
    %77 = tpu.matmul %60, %66, %cst_34 {dimension_numbers = #tpu.dot_dimension_numbers<[1], [1], [0], [0], [0, 0, 1, 0], [], []>} : vector<32x8xf32>, vector<32x8xf32>, vector<32x32xf32> -> vector<32x32xf32>
    "tpu.trace_stop"() : () -> ()
    %78 = arith.addf %77, %5 : vector<32x32xf32>
    %cst_35 = arith.constant dense<0xFF800000> : vector<32xf32>
    %79 = vector.multi_reduction <maximumf>, %78, %cst_35 [1] : vector<32x32xf32> to vector<32xf32>
    %80 = vector.shape_cast %79 : vector<32xf32> to vector<32x1xf32>
    %81 = vector.broadcast %80 : vector<32x1xf32> to vector<32x32xf32>
    %82 = arith.subf %78, %81 : vector<32x32xf32>
    %83 = math.exp %82 : vector<32x32xf32>
    %cst_36 = arith.constant dense<0.000000e+00> : vector<32xf32>
    %84 = vector.multi_reduction <add>, %83, %cst_36 [1] : vector<32x32xf32> to vector<32xf32>
    %85 = vector.shape_cast %84 : vector<32xf32> to vector<32x1xf32>
    %86 = tpu.reciprocal %85 : vector<32x1xf32> -> vector<32x1xf32>
    %87 = vector.broadcast %86 : vector<32x1xf32> to vector<32x32xf32>
    %88 = arith.mulf %83, %87 : vector<32x32xf32>
    %cst_37 = arith.constant dense<0.000000e+00> : vector<32x8xf32>
    %89 = tpu.matmul %88, %72, %cst_37 {dimension_numbers = #tpu.dot_dimension_numbers<[1], [0], [0], [1], [0, 0, 1, 1], [], []>} : vector<32x32xf32>, vector<32x8xf32>, vector<32x8xf32> -> vector<32x8xf32>
    %90 = vector.extract_strided_slice %89 {offsets = [0, 0], sizes = [8, 8], strides = [1, 1]} : vector<32x8xf32> to vector<8x8xf32>
    %91 = vector.extract_strided_slice %89 {offsets = [8, 0], sizes = [8, 8], strides = [1, 1]} : vector<32x8xf32> to vector<8x8xf32>
    %92 = vector.extract_strided_slice %89 {offsets = [16, 0], sizes = [8, 8], strides = [1, 1]} : vector<32x8xf32> to vector<8x8xf32>
    %93 = vector.extract_strided_slice %89 {offsets = [24, 0], sizes = [8, 8], strides = [1, 1]} : vector<32x8xf32> to vector<8x8xf32>
    %94 = tpu.concatenate %90, %91, %92, %93 in 1 : vector<8x8xf32>, vector<8x8xf32>, vector<8x8xf32>, vector<8x8xf32> -> vector<8x32xf32>
    %cst_38 = arith.constant dense<0.000000e+00> : vector<8x32xf32>
    %95 = tpu.matmul %94, %74, %cst_38 {dimension_numbers = #tpu.dot_dimension_numbers<[1], [0], [0], [1], [0, 0, 1, 1], [], []>} : vector<8x32xf32>, vector<32x32xf32>, vector<8x32xf32> -> vector<8x32xf32>
    %96 = vector.broadcast %76 : vector<1x32xf32> to vector<8x32xf32>
    %97 = arith.addf %95, %96 : vector<8x32xf32>
    %98 = arith.addf %1, %97 : vector<8x32xf32>
    %c1_39 = arith.constant 1 : index
    %c0_40 = arith.constant 0 : index
    %99 = vector.load %arg17[%c1_39, %c0_40] : memref<3x2xf32, #tpu.memory_space<vmem>>, vector<1x1xf32>
    %c1_41 = arith.constant 1 : index
    %c1_42 = arith.constant 1 : index
    %100 = vector.load %arg17[%c1_41, %c1_42] : memref<3x2xf32, #tpu.memory_space<vmem>>, vector<1x1xf32>
    %cst_43 = arith.constant dense<0.000000e+00> : vector<8xf32>
    %101 = vector.multi_reduction <add>, %98, %cst_43 [1] : vector<8x32xf32> to vector<8xf32>
    %102 = vector.shape_cast %101 : vector<8xf32> to vector<8x1xf32>
    %cst_44 = arith.constant 3.200000e+01 : f32
    %103 = vector.broadcast %cst_44 : f32 to vector<8x1xf32>
    %104 = arith.divf %102, %103 : vector<8x1xf32>
    %105 = vector.broadcast %104 : vector<8x1xf32> to vector<8x32xf32>
    %106 = arith.subf %98, %105 : vector<8x32xf32>
    %107 = arith.mulf %106, %106 : vector<8x32xf32>
    %cst_45 = arith.constant dense<0.000000e+00> : vector<8xf32>
    %108 = vector.multi_reduction <add>, %107, %cst_45 [1] : vector<8x32xf32> to vector<8xf32>
    %109 = vector.shape_cast %108 : vector<8xf32> to vector<8x1xf32>
    %cst_46 = arith.constant 0.0322580636 : f32
    %110 = vector.broadcast %cst_46 : f32 to vector<8x1xf32>
    %111 = arith.mulf %109, %110 : vector<8x1xf32>
    %112 = math.sqrt %111 : vector<8x1xf32>
    %cst_47 = arith.constant 9.99999997E-7 : f32
    %113 = vector.broadcast %cst_47 : f32 to vector<8x1xf32>
    %114 = arith.addf %112, %113 : vector<8x1xf32>
    %115 = tpu.reciprocal %114 : vector<8x1xf32> -> vector<8x1xf32>
    %116 = vector.broadcast %104 : vector<8x1xf32> to vector<8x32xf32>
    %117 = arith.subf %98, %116 : vector<8x32xf32>
    %118 = vector.broadcast %99 : vector<1x1xf32> to vector<8x32xf32>
    %119 = arith.mulf %118, %117 : vector<8x32xf32>
    %120 = vector.broadcast %115 : vector<8x1xf32> to vector<8x32xf32>
    %121 = arith.mulf %119, %120 : vector<8x32xf32>
    %122 = vector.broadcast %100 : vector<1x1xf32> to vector<8x32xf32>
    %123 = arith.addf %121, %122 : vector<8x32xf32>
    %c0_48 = arith.constant 0 : index
    %c0_49 = arith.constant 0 : index
    %124 = vector.load %arg7[%c0_48, %c0_49] : memref<32x32xf32, #tpu.memory_space<vmem>>, vector<32x32xf32>
    %cst_50 = arith.constant dense<0.000000e+00> : vector<8x32xf32>
    %125 = tpu.matmul %123, %124, %cst_50 {dimension_numbers = #tpu.dot_dimension_numbers<[1], [0], [0], [1], [0, 0, 1, 1], [], []>} : vector<8x32xf32>, vector<32x32xf32>, vector<8x32xf32> -> vector<8x32xf32>
    %c0_51 = arith.constant 0 : index
    %c0_52 = arith.constant 0 : index
    %126 = vector.load %arg8[%c0_51, %c0_52] : memref<1x32xf32, #tpu.memory_space<vmem>>, vector<1x32xf32>
    %127 = vector.broadcast %126 : vector<1x32xf32> to vector<8x32xf32>
    %128 = arith.addf %125, %127 : vector<8x32xf32>
    %129 = vector.extract_strided_slice %128 {offsets = [0, 0], sizes = [8, 8], strides = [1, 1]} : vector<8x32xf32> to vector<8x8xf32>
    %130 = vector.extract_strided_slice %128 {offsets = [0, 8], sizes = [8, 8], strides = [1, 1]} : vector<8x32xf32> to vector<8x8xf32>
    %131 = vector.extract_strided_slice %128 {offsets = [0, 16], sizes = [8, 8], strides = [1, 1]} : vector<8x32xf32> to vector<8x8xf32>
    %132 = vector.extract_strided_slice %128 {offsets = [0, 24], sizes = [8, 8], strides = [1, 1]} : vector<8x32xf32> to vector<8x8xf32>
    %133 = tpu.concatenate %129, %130, %131, %132 in 0 : vector<8x8xf32>, vector<8x8xf32>, vector<8x8xf32>, vector<8x8xf32> -> vector<32x8xf32>
    %c1_53 = arith.constant 1 : index
    %c0_54 = arith.constant 0 : index
    %c0_55 = arith.constant 0 : index
    %134 = vector.load %arg11[%c1_53, %c0_54, %c0_55] : memref<2x32x32xf32, #tpu.memory_space<vmem>>, vector<1x32x32xf32>
    %135 = vector.shape_cast %134 : vector<1x32x32xf32> to vector<32x32xf32>
    %c1_56 = arith.constant 1 : index
    %c0_57 = arith.constant 0 : index
    %c0_58 = arith.constant 0 : index
    %136 = vector.load %arg12[%c1_56, %c0_57, %c0_58] : memref<2x1x32xf32, #tpu.memory_space<vmem>>, vector<1x1x32xf32>
    %137 = vector.shape_cast %136 : vector<1x1x32xf32> to vector<1x32xf32>
    "tpu.trace_start"() <{level = 10 : i32, message = "qd,kd->qk"}> : () -> ()
    %cst_59 = arith.constant dense<0.000000e+00> : vector<32x32xf32>
    %138 = tpu.matmul %133, %18, %cst_59 {dimension_numbers = #tpu.dot_dimension_numbers<[1], [1], [0], [0], [0, 0, 1, 0], [], []>} : vector<32x8xf32>, vector<32x8xf32>, vector<32x32xf32> -> vector<32x32xf32>
    "tpu.trace_stop"() : () -> ()
    %139 = arith.addf %138, %7 : vector<32x32xf32>
    %cst_60 = arith.constant dense<0xFF800000> : vector<32xf32>
    %140 = vector.multi_reduction <maximumf>, %139, %cst_60 [1] : vector<32x32xf32> to vector<32xf32>
    %141 = vector.shape_cast %140 : vector<32xf32> to vector<32x1xf32>
    %142 = vector.broadcast %141 : vector<32x1xf32> to vector<32x32xf32>
    %143 = arith.subf %139, %142 : vector<32x32xf32>
    %144 = math.exp %143 : vector<32x32xf32>
    %cst_61 = arith.constant dense<0.000000e+00> : vector<32xf32>
    %145 = vector.multi_reduction <add>, %144, %cst_61 [1] : vector<32x32xf32> to vector<32xf32>
    %146 = vector.shape_cast %145 : vector<32xf32> to vector<32x1xf32>
    %147 = tpu.reciprocal %146 : vector<32x1xf32> -> vector<32x1xf32>
    %148 = vector.broadcast %147 : vector<32x1xf32> to vector<32x32xf32>
    %149 = arith.mulf %144, %148 : vector<32x32xf32>
    %cst_62 = arith.constant dense<0.000000e+00> : vector<32x8xf32>
    %150 = tpu.matmul %149, %24, %cst_62 {dimension_numbers = #tpu.dot_dimension_numbers<[1], [0], [0], [1], [0, 0, 1, 1], [], []>} : vector<32x32xf32>, vector<32x8xf32>, vector<32x8xf32> -> vector<32x8xf32>
    %151 = vector.extract_strided_slice %150 {offsets = [0, 0], sizes = [8, 8], strides = [1, 1]} : vector<32x8xf32> to vector<8x8xf32>
    %152 = vector.extract_strided_slice %150 {offsets = [8, 0], sizes = [8, 8], strides = [1, 1]} : vector<32x8xf32> to vector<8x8xf32>
    %153 = vector.extract_strided_slice %150 {offsets = [16, 0], sizes = [8, 8], strides = [1, 1]} : vector<32x8xf32> to vector<8x8xf32>
    %154 = vector.extract_strided_slice %150 {offsets = [24, 0], sizes = [8, 8], strides = [1, 1]} : vector<32x8xf32> to vector<8x8xf32>
    %155 = tpu.concatenate %151, %152, %153, %154 in 1 : vector<8x8xf32>, vector<8x8xf32>, vector<8x8xf32>, vector<8x8xf32> -> vector<8x32xf32>
    %cst_63 = arith.constant dense<0.000000e+00> : vector<8x32xf32>
    %156 = tpu.matmul %155, %135, %cst_63 {dimension_numbers = #tpu.dot_dimension_numbers<[1], [0], [0], [1], [0, 0, 1, 1], [], []>} : vector<8x32xf32>, vector<32x32xf32>, vector<8x32xf32> -> vector<8x32xf32>
    %157 = vector.broadcast %137 : vector<1x32xf32> to vector<8x32xf32>
    %158 = arith.addf %156, %157 : vector<8x32xf32>
    %159 = arith.addf %98, %158 : vector<8x32xf32>
    %c2 = arith.constant 2 : index
    %c0_64 = arith.constant 0 : index
    %160 = vector.load %arg17[%c2, %c0_64] : memref<3x2xf32, #tpu.memory_space<vmem>>, vector<1x1xf32>
    %c2_65 = arith.constant 2 : index
    %c1_66 = arith.constant 1 : index
    %161 = vector.load %arg17[%c2_65, %c1_66] : memref<3x2xf32, #tpu.memory_space<vmem>>, vector<1x1xf32>
    %cst_67 = arith.constant dense<0.000000e+00> : vector<8xf32>
    %162 = vector.multi_reduction <add>, %159, %cst_67 [1] : vector<8x32xf32> to vector<8xf32>
    %163 = vector.shape_cast %162 : vector<8xf32> to vector<8x1xf32>
    %cst_68 = arith.constant 3.200000e+01 : f32
    %164 = vector.broadcast %cst_68 : f32 to vector<8x1xf32>
    %165 = arith.divf %163, %164 : vector<8x1xf32>
    %166 = vector.broadcast %165 : vector<8x1xf32> to vector<8x32xf32>
    %167 = arith.subf %159, %166 : vector<8x32xf32>
    %168 = arith.mulf %167, %167 : vector<8x32xf32>
    %cst_69 = arith.constant dense<0.000000e+00> : vector<8xf32>
    %169 = vector.multi_reduction <add>, %168, %cst_69 [1] : vector<8x32xf32> to vector<8xf32>
    %170 = vector.shape_cast %169 : vector<8xf32> to vector<8x1xf32>
    %cst_70 = arith.constant 0.0322580636 : f32
    %171 = vector.broadcast %cst_70 : f32 to vector<8x1xf32>
    %172 = arith.mulf %170, %171 : vector<8x1xf32>
    %173 = math.sqrt %172 : vector<8x1xf32>
    %cst_71 = arith.constant 9.99999997E-7 : f32
    %174 = vector.broadcast %cst_71 : f32 to vector<8x1xf32>
    %175 = arith.addf %173, %174 : vector<8x1xf32>
    %176 = tpu.reciprocal %175 : vector<8x1xf32> -> vector<8x1xf32>
    %177 = vector.broadcast %165 : vector<8x1xf32> to vector<8x32xf32>
    %178 = arith.subf %159, %177 : vector<8x32xf32>
    %179 = vector.broadcast %160 : vector<1x1xf32> to vector<8x32xf32>
    %180 = arith.mulf %179, %178 : vector<8x32xf32>
    %181 = vector.broadcast %176 : vector<8x1xf32> to vector<8x32xf32>
    %182 = arith.mulf %180, %181 : vector<8x32xf32>
    %183 = vector.broadcast %161 : vector<1x1xf32> to vector<8x32xf32>
    %184 = arith.addf %182, %183 : vector<8x32xf32>
    %c0_72 = arith.constant 0 : index
    %c0_73 = arith.constant 0 : index
    %185 = vector.load %arg13[%c0_72, %c0_73] : memref<32x64xf32, #tpu.memory_space<vmem>>, vector<32x64xf32>
    %cst_74 = arith.constant dense<0.000000e+00> : vector<8x64xf32>
    %186 = tpu.matmul %184, %185, %cst_74 {dimension_numbers = #tpu.dot_dimension_numbers<[1], [0], [0], [1], [0, 0, 1, 1], [], []>} : vector<8x32xf32>, vector<32x64xf32>, vector<8x64xf32> -> vector<8x64xf32>
    %c0_75 = arith.constant 0 : index
    %c0_76 = arith.constant 0 : index
    %187 = vector.load %arg14[%c0_75, %c0_76] : memref<1x64xf32, #tpu.memory_space<vmem>>, vector<1x64xf32>
    %188 = vector.broadcast %187 : vector<1x64xf32> to vector<8x64xf32>
    %189 = arith.addf %186, %188 : vector<8x64xf32>
    %cst_77 = arith.constant 0.000000e+00 : f32
    %190 = vector.broadcast %cst_77 : f32 to vector<8x64xf32>
    %191 = arith.maximumf %189, %190 : vector<8x64xf32>
    %c0_78 = arith.constant 0 : index
    %c0_79 = arith.constant 0 : index
    %192 = vector.load %arg15[%c0_78, %c0_79] : memref<64x32xf32, #tpu.memory_space<vmem>>, vector<64x32xf32>
    %cst_80 = arith.constant dense<0.000000e+00> : vector<8x32xf32>
    %193 = tpu.matmul %191, %192, %cst_80 {dimension_numbers = #tpu.dot_dimension_numbers<[1], [0], [0], [1], [0, 0, 1, 1], [], []>} : vector<8x64xf32>, vector<64x32xf32>, vector<8x32xf32> -> vector<8x32xf32>
    %194 = arith.addf %159, %193 : vector<8x32xf32>
    %c0_81 = arith.constant 0 : index
    %c0_82 = arith.constant 0 : index
    %195 = vector.load %arg16[%c0_81, %c0_82] : memref<1x32xf32, #tpu.memory_space<vmem>>, vector<1x32xf32>
    %196 = vector.broadcast %195 : vector<1x32xf32> to vector<8x32xf32>
    %197 = arith.addf %194, %196 : vector<8x32xf32>
    %c0_83 = arith.constant 0 : index
    %c0_84 = arith.constant 0 : index
    %198 = vector.load %arg17[%c0_83, %c0_84] : memref<3x2xf32, #tpu.memory_space<vmem>>, vector<1x1xf32>
    %c0_85 = arith.constant 0 : index
    %c1_86 = arith.constant 1 : index
    %199 = vector.load %arg17[%c0_85, %c1_86] : memref<3x2xf32, #tpu.memory_space<vmem>>, vector<1x1xf32>
    %cst_87 = arith.constant dense<0.000000e+00> : vector<8xf32>
    %200 = vector.multi_reduction <add>, %197, %cst_87 [1] : vector<8x32xf32> to vector<8xf32>
    %201 = vector.shape_cast %200 : vector<8xf32> to vector<8x1xf32>
    %cst_88 = arith.constant 3.200000e+01 : f32
    %202 = vector.broadcast %cst_88 : f32 to vector<8x1xf32>
    %203 = arith.divf %201, %202 : vector<8x1xf32>
    %204 = vector.broadcast %203 : vector<8x1xf32> to vector<8x32xf32>
    %205 = arith.subf %197, %204 : vector<8x32xf32>
    %206 = arith.mulf %205, %205 : vector<8x32xf32>
    %cst_89 = arith.constant dense<0.000000e+00> : vector<8xf32>
    %207 = vector.multi_reduction <add>, %206, %cst_89 [1] : vector<8x32xf32> to vector<8xf32>
    %208 = vector.shape_cast %207 : vector<8xf32> to vector<8x1xf32>
    %cst_90 = arith.constant 0.0322580636 : f32
    %209 = vector.broadcast %cst_90 : f32 to vector<8x1xf32>
    %210 = arith.mulf %208, %209 : vector<8x1xf32>
    %211 = math.sqrt %210 : vector<8x1xf32>
    %cst_91 = arith.constant 9.99999997E-7 : f32
    %212 = vector.broadcast %cst_91 : f32 to vector<8x1xf32>
    %213 = arith.addf %211, %212 : vector<8x1xf32>
    %214 = tpu.reciprocal %213 : vector<8x1xf32> -> vector<8x1xf32>
    %215 = vector.broadcast %203 : vector<8x1xf32> to vector<8x32xf32>
    %216 = arith.subf %197, %215 : vector<8x32xf32>
    %217 = vector.broadcast %198 : vector<1x1xf32> to vector<8x32xf32>
    %218 = arith.mulf %217, %216 : vector<8x32xf32>
    %219 = vector.broadcast %214 : vector<8x1xf32> to vector<8x32xf32>
    %220 = arith.mulf %218, %219 : vector<8x32xf32>
    %221 = vector.broadcast %199 : vector<1x1xf32> to vector<8x32xf32>
    %222 = arith.addf %220, %221 : vector<8x32xf32>
    %c0_92 = arith.constant 0 : index
    %c0_93 = arith.constant 0 : index
    %223 = vector.load %arg5[%c0_92, %c0_93] : memref<32x96xf32, #tpu.memory_space<vmem>>, vector<32x96xf32>
    %cst_94 = arith.constant dense<0.000000e+00> : vector<8x96xf32>
    %224 = tpu.matmul %222, %223, %cst_94 {dimension_numbers = #tpu.dot_dimension_numbers<[1], [0], [0], [1], [0, 0, 1, 1], [], []>} : vector<8x32xf32>, vector<32x96xf32>, vector<8x96xf32> -> vector<8x96xf32>
    %c0_95 = arith.constant 0 : index
    %c0_96 = arith.constant 0 : index
    %225 = vector.load %arg6[%c0_95, %c0_96] : memref<1x96xf32, #tpu.memory_space<vmem>>, vector<1x96xf32>
    %226 = vector.broadcast %225 : vector<1x96xf32> to vector<8x96xf32>
    %227 = arith.addf %224, %226 : vector<8x96xf32>
    %228 = vector.extract_strided_slice %227 {offsets = [0, 0], sizes = [8, 32], strides = [1, 1]} : vector<8x96xf32> to vector<8x32xf32>
    %229 = vector.extract_strided_slice %228 {offsets = [0, 0], sizes = [8, 8], strides = [1, 1]} : vector<8x32xf32> to vector<8x8xf32>
    %230 = vector.extract_strided_slice %228 {offsets = [0, 8], sizes = [8, 8], strides = [1, 1]} : vector<8x32xf32> to vector<8x8xf32>
    %231 = vector.extract_strided_slice %228 {offsets = [0, 16], sizes = [8, 8], strides = [1, 1]} : vector<8x32xf32> to vector<8x8xf32>
    %232 = vector.extract_strided_slice %228 {offsets = [0, 24], sizes = [8, 8], strides = [1, 1]} : vector<8x32xf32> to vector<8x8xf32>
    %233 = tpu.concatenate %229, %230, %231, %232 in 0 : vector<8x8xf32>, vector<8x8xf32>, vector<8x8xf32>, vector<8x8xf32> -> vector<32x8xf32>
    %234 = vector.extract_strided_slice %227 {offsets = [0, 32], sizes = [8, 32], strides = [1, 1]} : vector<8x96xf32> to vector<8x32xf32>
    %235 = vector.extract_strided_slice %234 {offsets = [0, 0], sizes = [8, 8], strides = [1, 1]} : vector<8x32xf32> to vector<8x8xf32>
    %236 = vector.extract_strided_slice %234 {offsets = [0, 8], sizes = [8, 8], strides = [1, 1]} : vector<8x32xf32> to vector<8x8xf32>
    %237 = vector.extract_strided_slice %234 {offsets = [0, 16], sizes = [8, 8], strides = [1, 1]} : vector<8x32xf32> to vector<8x8xf32>
    %238 = vector.extract_strided_slice %234 {offsets = [0, 24], sizes = [8, 8], strides = [1, 1]} : vector<8x32xf32> to vector<8x8xf32>
    %239 = tpu.concatenate %235, %236, %237, %238 in 0 : vector<8x8xf32>, vector<8x8xf32>, vector<8x8xf32>, vector<8x8xf32> -> vector<32x8xf32>
    %240 = vector.extract_strided_slice %227 {offsets = [0, 64], sizes = [8, 32], strides = [1, 1]} : vector<8x96xf32> to vector<8x32xf32>
    %241 = vector.extract_strided_slice %240 {offsets = [0, 0], sizes = [8, 8], strides = [1, 1]} : vector<8x32xf32> to vector<8x8xf32>
    %242 = vector.extract_strided_slice %240 {offsets = [0, 8], sizes = [8, 8], strides = [1, 1]} : vector<8x32xf32> to vector<8x8xf32>
    %243 = vector.extract_strided_slice %240 {offsets = [0, 16], sizes = [8, 8], strides = [1, 1]} : vector<8x32xf32> to vector<8x8xf32>
    %244 = vector.extract_strided_slice %240 {offsets = [0, 24], sizes = [8, 8], strides = [1, 1]} : vector<8x32xf32> to vector<8x8xf32>
    %245 = tpu.concatenate %241, %242, %243, %244 in 0 : vector<8x8xf32>, vector<8x8xf32>, vector<8x8xf32>, vector<8x8xf32> -> vector<32x8xf32>
    %c0_97 = arith.constant 0 : index
    %c0_98 = arith.constant 0 : index
    %c0_99 = arith.constant 0 : index
    %246 = vector.load %arg11[%c0_97, %c0_98, %c0_99] : memref<2x32x32xf32, #tpu.memory_space<vmem>>, vector<1x32x32xf32>
    %247 = vector.shape_cast %246 : vector<1x32x32xf32> to vector<32x32xf32>
    %c0_100 = arith.constant 0 : index
    %c0_101 = arith.constant 0 : index
    %c0_102 = arith.constant 0 : index
    %248 = vector.load %arg12[%c0_100, %c0_101, %c0_102] : memref<2x1x32xf32, #tpu.memory_space<vmem>>, vector<1x1x32xf32>
    %249 = vector.shape_cast %248 : vector<1x1x32xf32> to vector<1x32xf32>
    "tpu.trace_start"() <{level = 10 : i32, message = "qd,kd->qk"}> : () -> ()
    %cst_103 = arith.constant dense<0.000000e+00> : vector<32x32xf32>
    %250 = tpu.matmul %233, %239, %cst_103 {dimension_numbers = #tpu.dot_dimension_numbers<[1], [1], [0], [0], [0, 0, 1, 0], [], []>} : vector<32x8xf32>, vector<32x8xf32>, vector<32x32xf32> -> vector<32x32xf32>
    "tpu.trace_stop"() : () -> ()
    %251 = arith.addf %250, %5 : vector<32x32xf32>
    %cst_104 = arith.constant dense<0xFF800000> : vector<32xf32>
    %252 = vector.multi_reduction <maximumf>, %251, %cst_104 [1] : vector<32x32xf32> to vector<32xf32>
    %253 = vector.shape_cast %252 : vector<32xf32> to vector<32x1xf32>
    %254 = vector.broadcast %253 : vector<32x1xf32> to vector<32x32xf32>
    %255 = arith.subf %251, %254 : vector<32x32xf32>
    %256 = math.exp %255 : vector<32x32xf32>
    %cst_105 = arith.constant dense<0.000000e+00> : vector<32xf32>
    %257 = vector.multi_reduction <add>, %256, %cst_105 [1] : vector<32x32xf32> to vector<32xf32>
    %258 = vector.shape_cast %257 : vector<32xf32> to vector<32x1xf32>
    %259 = tpu.reciprocal %258 : vector<32x1xf32> -> vector<32x1xf32>
    %260 = vector.broadcast %259 : vector<32x1xf32> to vector<32x32xf32>
    %261 = arith.mulf %256, %260 : vector<32x32xf32>
    %cst_106 = arith.constant dense<0.000000e+00> : vector<32x8xf32>
    %262 = tpu.matmul %261, %245, %cst_106 {dimension_numbers = #tpu.dot_dimension_numbers<[1], [0], [0], [1], [0, 0, 1, 1], [], []>} : vector<32x32xf32>, vector<32x8xf32>, vector<32x8xf32> -> vector<32x8xf32>
    %263 = vector.extract_strided_slice %262 {offsets = [0, 0], sizes = [8, 8], strides = [1, 1]} : vector<32x8xf32> to vector<8x8xf32>
    %264 = vector.extract_strided_slice %262 {offsets = [8, 0], sizes = [8, 8], strides = [1, 1]} : vector<32x8xf32> to vector<8x8xf32>
    %265 = vector.extract_strided_slice %262 {offsets = [16, 0], sizes = [8, 8], strides = [1, 1]} : vector<32x8xf32> to vector<8x8xf32>
    %266 = vector.extract_strided_slice %262 {offsets = [24, 0], sizes = [8, 8], strides = [1, 1]} : vector<32x8xf32> to vector<8x8xf32>
    %267 = tpu.concatenate %263, %264, %265, %266 in 1 : vector<8x8xf32>, vector<8x8xf32>, vector<8x8xf32>, vector<8x8xf32> -> vector<8x32xf32>
    %cst_107 = arith.constant dense<0.000000e+00> : vector<8x32xf32>
    %268 = tpu.matmul %267, %247, %cst_107 {dimension_numbers = #tpu.dot_dimension_numbers<[1], [0], [0], [1], [0, 0, 1, 1], [], []>} : vector<8x32xf32>, vector<32x32xf32>, vector<8x32xf32> -> vector<8x32xf32>
    %269 = vector.broadcast %249 : vector<1x32xf32> to vector<8x32xf32>
    %270 = arith.addf %268, %269 : vector<8x32xf32>
    %271 = arith.addf %197, %270 : vector<8x32xf32>
    %c1_108 = arith.constant 1 : index
    %c0_109 = arith.constant 0 : index
    %272 = vector.load %arg17[%c1_108, %c0_109] : memref<3x2xf32, #tpu.memory_space<vmem>>, vector<1x1xf32>
    %c1_110 = arith.constant 1 : index
    %c1_111 = arith.constant 1 : index
    %273 = vector.load %arg17[%c1_110, %c1_111] : memref<3x2xf32, #tpu.memory_space<vmem>>, vector<1x1xf32>
    %cst_112 = arith.constant dense<0.000000e+00> : vector<8xf32>
    %274 = vector.multi_reduction <add>, %271, %cst_112 [1] : vector<8x32xf32> to vector<8xf32>
    %275 = vector.shape_cast %274 : vector<8xf32> to vector<8x1xf32>
    %cst_113 = arith.constant 3.200000e+01 : f32
    %276 = vector.broadcast %cst_113 : f32 to vector<8x1xf32>
    %277 = arith.divf %275, %276 : vector<8x1xf32>
    %278 = vector.broadcast %277 : vector<8x1xf32> to vector<8x32xf32>
    %279 = arith.subf %271, %278 : vector<8x32xf32>
    %280 = arith.mulf %279, %279 : vector<8x32xf32>
    %cst_114 = arith.constant dense<0.000000e+00> : vector<8xf32>
    %281 = vector.multi_reduction <add>, %280, %cst_114 [1] : vector<8x32xf32> to vector<8xf32>
    %282 = vector.shape_cast %281 : vector<8xf32> to vector<8x1xf32>
    %cst_115 = arith.constant 0.0322580636 : f32
    %283 = vector.broadcast %cst_115 : f32 to vector<8x1xf32>
    %284 = arith.mulf %282, %283 : vector<8x1xf32>
    %285 = math.sqrt %284 : vector<8x1xf32>
    %cst_116 = arith.constant 9.99999997E-7 : f32
    %286 = vector.broadcast %cst_116 : f32 to vector<8x1xf32>
    %287 = arith.addf %285, %286 : vector<8x1xf32>
    %288 = tpu.reciprocal %287 : vector<8x1xf32> -> vector<8x1xf32>
    %289 = vector.broadcast %277 : vector<8x1xf32> to vector<8x32xf32>
    %290 = arith.subf %271, %289 : vector<8x32xf32>
    %291 = vector.broadcast %272 : vector<1x1xf32> to vector<8x32xf32>
    %292 = arith.mulf %291, %290 : vector<8x32xf32>
    %293 = vector.broadcast %288 : vector<8x1xf32> to vector<8x32xf32>
    %294 = arith.mulf %292, %293 : vector<8x32xf32>
    %295 = vector.broadcast %273 : vector<1x1xf32> to vector<8x32xf32>
    %296 = arith.addf %294, %295 : vector<8x32xf32>
    %c0_117 = arith.constant 0 : index
    %c0_118 = arith.constant 0 : index
    %297 = vector.load %arg7[%c0_117, %c0_118] : memref<32x32xf32, #tpu.memory_space<vmem>>, vector<32x32xf32>
    %cst_119 = arith.constant dense<0.000000e+00> : vector<8x32xf32>
    %298 = tpu.matmul %296, %297, %cst_119 {dimension_numbers = #tpu.dot_dimension_numbers<[1], [0], [0], [1], [0, 0, 1, 1], [], []>} : vector<8x32xf32>, vector<32x32xf32>, vector<8x32xf32> -> vector<8x32xf32>
    %c0_120 = arith.constant 0 : index
    %c0_121 = arith.constant 0 : index
    %299 = vector.load %arg8[%c0_120, %c0_121] : memref<1x32xf32, #tpu.memory_space<vmem>>, vector<1x32xf32>
    %300 = vector.broadcast %299 : vector<1x32xf32> to vector<8x32xf32>
    %301 = arith.addf %298, %300 : vector<8x32xf32>
    %302 = vector.extract_strided_slice %301 {offsets = [0, 0], sizes = [8, 8], strides = [1, 1]} : vector<8x32xf32> to vector<8x8xf32>
    %303 = vector.extract_strided_slice %301 {offsets = [0, 8], sizes = [8, 8], strides = [1, 1]} : vector<8x32xf32> to vector<8x8xf32>
    %304 = vector.extract_strided_slice %301 {offsets = [0, 16], sizes = [8, 8], strides = [1, 1]} : vector<8x32xf32> to vector<8x8xf32>
    %305 = vector.extract_strided_slice %301 {offsets = [0, 24], sizes = [8, 8], strides = [1, 1]} : vector<8x32xf32> to vector<8x8xf32>
    %306 = tpu.concatenate %302, %303, %304, %305 in 0 : vector<8x8xf32>, vector<8x8xf32>, vector<8x8xf32>, vector<8x8xf32> -> vector<32x8xf32>
    %c1_122 = arith.constant 1 : index
    %c0_123 = arith.constant 0 : index
    %c0_124 = arith.constant 0 : index
    %307 = vector.load %arg11[%c1_122, %c0_123, %c0_124] : memref<2x32x32xf32, #tpu.memory_space<vmem>>, vector<1x32x32xf32>
    %308 = vector.shape_cast %307 : vector<1x32x32xf32> to vector<32x32xf32>
    %c1_125 = arith.constant 1 : index
    %c0_126 = arith.constant 0 : index
    %c0_127 = arith.constant 0 : index
    %309 = vector.load %arg12[%c1_125, %c0_126, %c0_127] : memref<2x1x32xf32, #tpu.memory_space<vmem>>, vector<1x1x32xf32>
    %310 = vector.shape_cast %309 : vector<1x1x32xf32> to vector<1x32xf32>
    "tpu.trace_start"() <{level = 10 : i32, message = "qd,kd->qk"}> : () -> ()
    %cst_128 = arith.constant dense<0.000000e+00> : vector<32x32xf32>
    %311 = tpu.matmul %306, %18, %cst_128 {dimension_numbers = #tpu.dot_dimension_numbers<[1], [1], [0], [0], [0, 0, 1, 0], [], []>} : vector<32x8xf32>, vector<32x8xf32>, vector<32x32xf32> -> vector<32x32xf32>
    "tpu.trace_stop"() : () -> ()
    %312 = arith.addf %311, %7 : vector<32x32xf32>
    %cst_129 = arith.constant dense<0xFF800000> : vector<32xf32>
    %313 = vector.multi_reduction <maximumf>, %312, %cst_129 [1] : vector<32x32xf32> to vector<32xf32>
    %314 = vector.shape_cast %313 : vector<32xf32> to vector<32x1xf32>
    %315 = vector.broadcast %314 : vector<32x1xf32> to vector<32x32xf32>
    %316 = arith.subf %312, %315 : vector<32x32xf32>
    %317 = math.exp %316 : vector<32x32xf32>
    %cst_130 = arith.constant dense<0.000000e+00> : vector<32xf32>
    %318 = vector.multi_reduction <add>, %317, %cst_130 [1] : vector<32x32xf32> to vector<32xf32>
    %319 = vector.shape_cast %318 : vector<32xf32> to vector<32x1xf32>
    %320 = tpu.reciprocal %319 : vector<32x1xf32> -> vector<32x1xf32>
    %321 = vector.broadcast %320 : vector<32x1xf32> to vector<32x32xf32>
    %322 = arith.mulf %317, %321 : vector<32x32xf32>
    %cst_131 = arith.constant dense<0.000000e+00> : vector<32x8xf32>
    %323 = tpu.matmul %322, %24, %cst_131 {dimension_numbers = #tpu.dot_dimension_numbers<[1], [0], [0], [1], [0, 0, 1, 1], [], []>} : vector<32x32xf32>, vector<32x8xf32>, vector<32x8xf32> -> vector<32x8xf32>
    %324 = vector.extract_strided_slice %323 {offsets = [0, 0], sizes = [8, 8], strides = [1, 1]} : vector<32x8xf32> to vector<8x8xf32>
    %325 = vector.extract_strided_slice %323 {offsets = [8, 0], sizes = [8, 8], strides = [1, 1]} : vector<32x8xf32> to vector<8x8xf32>
    %326 = vector.extract_strided_slice %323 {offsets = [16, 0], sizes = [8, 8], strides = [1, 1]} : vector<32x8xf32> to vector<8x8xf32>
    %327 = vector.extract_strided_slice %323 {offsets = [24, 0], sizes = [8, 8], strides = [1, 1]} : vector<32x8xf32> to vector<8x8xf32>
    %328 = tpu.concatenate %324, %325, %326, %327 in 1 : vector<8x8xf32>, vector<8x8xf32>, vector<8x8xf32>, vector<8x8xf32> -> vector<8x32xf32>
    %cst_132 = arith.constant dense<0.000000e+00> : vector<8x32xf32>
    %329 = tpu.matmul %328, %308, %cst_132 {dimension_numbers = #tpu.dot_dimension_numbers<[1], [0], [0], [1], [0, 0, 1, 1], [], []>} : vector<8x32xf32>, vector<32x32xf32>, vector<8x32xf32> -> vector<8x32xf32>
    %330 = vector.broadcast %310 : vector<1x32xf32> to vector<8x32xf32>
    %331 = arith.addf %329, %330 : vector<8x32xf32>
    %332 = arith.addf %271, %331 : vector<8x32xf32>
    %c2_133 = arith.constant 2 : index
    %c0_134 = arith.constant 0 : index
    %333 = vector.load %arg17[%c2_133, %c0_134] : memref<3x2xf32, #tpu.memory_space<vmem>>, vector<1x1xf32>
    %c2_135 = arith.constant 2 : index
    %c1_136 = arith.constant 1 : index
    %334 = vector.load %arg17[%c2_135, %c1_136] : memref<3x2xf32, #tpu.memory_space<vmem>>, vector<1x1xf32>
    %cst_137 = arith.constant dense<0.000000e+00> : vector<8xf32>
    %335 = vector.multi_reduction <add>, %332, %cst_137 [1] : vector<8x32xf32> to vector<8xf32>
    %336 = vector.shape_cast %335 : vector<8xf32> to vector<8x1xf32>
    %cst_138 = arith.constant 3.200000e+01 : f32
    %337 = vector.broadcast %cst_138 : f32 to vector<8x1xf32>
    %338 = arith.divf %336, %337 : vector<8x1xf32>
    %339 = vector.broadcast %338 : vector<8x1xf32> to vector<8x32xf32>
    %340 = arith.subf %332, %339 : vector<8x32xf32>
    %341 = arith.mulf %340, %340 : vector<8x32xf32>
    %cst_139 = arith.constant dense<0.000000e+00> : vector<8xf32>
    %342 = vector.multi_reduction <add>, %341, %cst_139 [1] : vector<8x32xf32> to vector<8xf32>
    %343 = vector.shape_cast %342 : vector<8xf32> to vector<8x1xf32>
    %cst_140 = arith.constant 0.0322580636 : f32
    %344 = vector.broadcast %cst_140 : f32 to vector<8x1xf32>
    %345 = arith.mulf %343, %344 : vector<8x1xf32>
    %346 = math.sqrt %345 : vector<8x1xf32>
    %cst_141 = arith.constant 9.99999997E-7 : f32
    %347 = vector.broadcast %cst_141 : f32 to vector<8x1xf32>
    %348 = arith.addf %346, %347 : vector<8x1xf32>
    %349 = tpu.reciprocal %348 : vector<8x1xf32> -> vector<8x1xf32>
    %350 = vector.broadcast %338 : vector<8x1xf32> to vector<8x32xf32>
    %351 = arith.subf %332, %350 : vector<8x32xf32>
    %352 = vector.broadcast %333 : vector<1x1xf32> to vector<8x32xf32>
    %353 = arith.mulf %352, %351 : vector<8x32xf32>
    %354 = vector.broadcast %349 : vector<8x1xf32> to vector<8x32xf32>
    %355 = arith.mulf %353, %354 : vector<8x32xf32>
    %356 = vector.broadcast %334 : vector<1x1xf32> to vector<8x32xf32>
    %357 = arith.addf %355, %356 : vector<8x32xf32>
    %c0_142 = arith.constant 0 : index
    %c0_143 = arith.constant 0 : index
    %358 = vector.load %arg13[%c0_142, %c0_143] : memref<32x64xf32, #tpu.memory_space<vmem>>, vector<32x64xf32>
    %cst_144 = arith.constant dense<0.000000e+00> : vector<8x64xf32>
    %359 = tpu.matmul %357, %358, %cst_144 {dimension_numbers = #tpu.dot_dimension_numbers<[1], [0], [0], [1], [0, 0, 1, 1], [], []>} : vector<8x32xf32>, vector<32x64xf32>, vector<8x64xf32> -> vector<8x64xf32>
    %c0_145 = arith.constant 0 : index
    %c0_146 = arith.constant 0 : index
    %360 = vector.load %arg14[%c0_145, %c0_146] : memref<1x64xf32, #tpu.memory_space<vmem>>, vector<1x64xf32>
    %361 = vector.broadcast %360 : vector<1x64xf32> to vector<8x64xf32>
    %362 = arith.addf %359, %361 : vector<8x64xf32>
    %cst_147 = arith.constant 0.000000e+00 : f32
    %363 = vector.broadcast %cst_147 : f32 to vector<8x64xf32>
    %364 = arith.maximumf %362, %363 : vector<8x64xf32>
    %c0_148 = arith.constant 0 : index
    %c0_149 = arith.constant 0 : index
    %365 = vector.load %arg15[%c0_148, %c0_149] : memref<64x32xf32, #tpu.memory_space<vmem>>, vector<64x32xf32>
    %cst_150 = arith.constant dense<0.000000e+00> : vector<8x32xf32>
    %366 = tpu.matmul %364, %365, %cst_150 {dimension_numbers = #tpu.dot_dimension_numbers<[1], [0], [0], [1], [0, 0, 1, 1], [], []>} : vector<8x64xf32>, vector<64x32xf32>, vector<8x32xf32> -> vector<8x32xf32>
    %367 = arith.addf %332, %366 : vector<8x32xf32>
    %c0_151 = arith.constant 0 : index
    %c0_152 = arith.constant 0 : index
    %368 = vector.load %arg16[%c0_151, %c0_152] : memref<1x32xf32, #tpu.memory_space<vmem>>, vector<1x32xf32>
    %369 = vector.broadcast %368 : vector<1x32xf32> to vector<8x32xf32>
    %370 = arith.addf %367, %369 : vector<8x32xf32>
    %c0_153 = arith.constant 0 : index
    %c0_154 = arith.constant 0 : index
    %c0_155 = arith.constant 0 : index
    %371 = vector.load %arg18[%c0_153, %c0_154, %c0_155] : memref<1x8x32xf32, #tpu.memory_space<vmem>>, vector<1x8x32xf32>
    %372 = vector.shape_cast %371 : vector<1x8x32xf32> to vector<8x32xf32>
    %373 = vector.shape_cast %370 : vector<8x32xf32> to vector<1x8x32xf32>
    tpu.vector_store %arg18[%c0_153, %c0_154, %c0_155], %373 {strides = array<i32>} : memref<1x8x32xf32, #tpu.memory_space<vmem>>, vector<1x8x32xf32>,
    return
  }
  func.func @transform_0(%arg0: i32) -> (i32, i32, i32) {
    %c0_i32 = arith.constant 0 : i32
    %c0_i32_0 = arith.constant 0 : i32
    %c0_i32_1 = arith.constant 0 : i32
    return %arg0, %c0_i32, %c0_i32_0 : i32, i32, i32
  }
  func.func @transform_1(%arg0: i32) -> (i32, i32, i32) {
    %c0_i32 = arith.constant 0 : i32
    %c0_i32_0 = arith.constant 0 : i32
    %c0_i32_1 = arith.constant 0 : i32
    return %arg0, %c0_i32, %c0_i32_0 : i32, i32, i32
  }
  func.func @transform_2(%arg0: i32) -> (i32, i32, i32) {
    %c0_i32 = arith.constant 0 : i32
    %c0_i32_0 = arith.constant 0 : i32
    %c0_i32_1 = arith.constant 0 : i32
    return %arg0, %c0_i32, %c0_i32_0 : i32, i32, i32
  }
  func.func @transform_3(%arg0: i32) -> (i32, i32, i32) {
    %c0_i32 = arith.constant 0 : i32
    %c0_i32_0 = arith.constant 0 : i32
    %c0_i32_1 = arith.constant 0 : i32
    return %arg0, %c0_i32, %c0_i32_0 : i32, i32, i32
  }
  func.func @transform_4(%arg0: i32) -> (i32, i32) {
    %c0_i32 = arith.constant 0 : i32
    %c0_i32_0 = arith.constant 0 : i32
    %c0_i32_1 = arith.constant 0 : i32
    return %c0_i32, %c0_i32_0 : i32, i32
  }
  func.func @transform_5(%arg0: i32) -> (i32, i32) {
    %c0_i32 = arith.constant 0 : i32
    %c0_i32_0 = arith.constant 0 : i32
    %c0_i32_1 = arith.constant 0 : i32
    return %c0_i32, %c0_i32_0 : i32, i32
  }
  func.func @transform_6(%arg0: i32) -> (i32, i32) {
    %c0_i32 = arith.constant 0 : i32
    %c0_i32_0 = arith.constant 0 : i32
    %c0_i32_1 = arith.constant 0 : i32
    return %c0_i32, %c0_i32_0 : i32, i32
  }
  func.func @transform_7(%arg0: i32) -> (i32, i32) {
    %c0_i32 = arith.constant 0 : i32
    %c0_i32_0 = arith.constant 0 : i32
    %c0_i32_1 = arith.constant 0 : i32
    return %c0_i32, %c0_i32_0 : i32, i32
  }
  func.func @transform_8(%arg0: i32) -> (i32, i32) {
    %c0_i32 = arith.constant 0 : i32
    %c0_i32_0 = arith.constant 0 : i32
    %c0_i32_1 = arith.constant 0 : i32
    return %c0_i32, %c0_i32_0 : i32, i32
  }
  func.func @transform_9(%arg0: i32) -> (i32, i32) {
    %c0_i32 = arith.constant 0 : i32
    %c0_i32_0 = arith.constant 0 : i32
    %c0_i32_1 = arith.constant 0 : i32
    return %c0_i32, %c0_i32_0 : i32, i32
  }
  func.func @transform_10(%arg0: i32) -> (i32, i32, i32) {
    %c0_i32 = arith.constant 0 : i32
    %c0_i32_0 = arith.constant 0 : i32
    %c0_i32_1 = arith.constant 0 : i32
    %c0_i32_2 = arith.constant 0 : i32
    return %c0_i32, %c0_i32_0, %c0_i32_1 : i32, i32, i32
  }
  func.func @transform_11(%arg0: i32) -> (i32, i32, i32) {
    %c0_i32 = arith.constant 0 : i32
    %c0_i32_0 = arith.constant 0 : i32
    %c0_i32_1 = arith.constant 0 : i32
    %c0_i32_2 = arith.constant 0 : i32
    return %c0_i32, %c0_i32_0, %c0_i32_1 : i32, i32, i32
  }
  func.func @transform_12(%arg0: i32) -> (i32, i32) {
    %c0_i32 = arith.constant 0 : i32
    %c0_i32_0 = arith.constant 0 : i32
    %c0_i32_1 = arith.constant 0 : i32
    return %c0_i32, %c0_i32_0 : i32, i32
  }
  func.func @transform_13(%arg0: i32) -> (i32, i32) {
    %c0_i32 = arith.constant 0 : i32
    %c0_i32_0 = arith.constant 0 : i32
    %c0_i32_1 = arith.constant 0 : i32
    return %c0_i32, %c0_i32_0 : i32, i32
  }
  func.func @transform_14(%arg0: i32) -> (i32, i32) {
    %c0_i32 = arith.constant 0 : i32
    %c0_i32_0 = arith.constant 0 : i32
    %c0_i32_1 = arith.constant 0 : i32
    return %c0_i32, %c0_i32_0 : i32, i32
  }
  func.func @transform_15(%arg0: i32) -> (i32, i32) {
    %c0_i32 = arith.constant 0 : i32
    %c0_i32_0 = arith.constant 0 : i32
    %c0_i32_1 = arith.constant 0 : i32
    return %c0_i32, %c0_i32_0 : i32, i32
  }
  func.func @transform_16(%arg0: i32) -> (i32, i32) {
    %c0_i32 = arith.constant 0 : i32
    %c0_i32_0 = arith.constant 0 : i32
    %c0_i32_1 = arith.constant 0 : i32
    return %c0_i32, %c0_i32_0 : i32, i32
  }
  func.func @transform_17(%arg0: i32) -> (i32, i32, i32) {
    %c0_i32 = arith.constant 0 : i32
    %c0_i32_0 = arith.constant 0 : i32
    %c0_i32_1 = arith.constant 0 : i32
    return %arg0, %c0_i32, %c0_i32_0 : i32, i32, i32
  }
}

</mosaic_0001>

<llo_original>
// kernel: tpu_custom_call.1
$region0: #{tpu_custom_call.1}
  #allocation0 [shape = 'u32[]', space=smem, size = 0x4, offset = 0x4, fixed_abs, tag = 'smem constant byte address 0x4 - core index']
  #allocation1 [shape = 'u32[144,128]{1,0:T(1,128)}', space=vmem, size = 0x12000, scoped, tag = 'internal scratch']
  %s0 = inlined_call_operand.hbm [shape: f32[2,8,32], index: 0, kind: input, shape index: {}]
  %s1 = inlined_call_operand.hbm [shape: f32[2,8,32], index: 1, kind: input, shape index: {}]
  %s2 = inlined_call_operand.vmem [shape: f32[2,32,32], index: 2, kind: input, shape index: {}]
  %s3 = inlined_call_operand.hbm [shape: f32[2,32,32], index: 3, kind: input, shape index: {}]
  %s4 = inlined_call_operand.vmem [shape: f32[32,96], index: 4, kind: input, shape index: {}]
  %s5 = inlined_call_operand.vmem [shape: f32[1,96], index: 5, kind: input, shape index: {}]
  %s6 = inlined_call_operand.hbm [shape: f32[32,32], index: 6, kind: input, shape index: {}]
  %s7 = inlined_call_operand.vmem [shape: f32[1,32], index: 7, kind: input, shape index: {}]
  %s8 = inlined_call_operand.hbm [shape: f32[32,64], index: 8, kind: input, shape index: {}]
  %s9 = inlined_call_operand.vmem [shape: f32[1,64], index: 9, kind: input, shape index: {}]
  %s10 = inlined_call_operand.hbm [shape: f32[2,32,32], index: 10, kind: input, shape index: {}]
  %s11 = inlined_call_operand.vmem [shape: f32[2,1,32], index: 11, kind: input, shape index: {}]
  %s12 = inlined_call_operand.hbm [shape: f32[32,64], index: 12, kind: input, shape index: {}]
  %s13 = inlined_call_operand.vmem [shape: f32[1,64], index: 13, kind: input, shape index: {}]
  %s14 = inlined_call_operand.vmem [shape: f32[64,32], index: 14, kind: input, shape index: {}]
  %s15 = inlined_call_operand.vmem [shape: f32[1,32], index: 15, kind: input, shape index: {}]
  %s16 = inlined_call_operand.vmem [shape: f32[3,2], index: 16, kind: input, shape index: {}]
  %s17 = inlined_call_operand.hbm [shape: f32[2,8,32], index: 17, kind: output, shape index: {}]
  %s18 = sld [smem:[#allocation0]]
  $region129: #{tpu_custom_call.1} parent=0
    _
  %s20 = ssub.s32 1, %s18
  %s21 = scalar_select 0, %s20, %s18
  $region1: #{tpu_custom_call.1} parent=0
    #allocation2 [shape = 'u8[8192]{0}', space=vmem, size = 0x2000, scoped, tag = 'input window, operand 0']
    #allocation3 [shape = 's32[2]{0}', space=sflag, size = 0x8, scoped, tag = 'scoped memory for tpu_custom_call.1']
    #allocation4 [shape = 's32[2]{0}', space=sflag, size = 0x8, scoped, tag = 'scoped memory for tpu_custom_call.1']
    #allocation5 [shape = 'u8[8192]{0}', space=vmem, size = 0x2000, scoped, tag = 'input window, operand 1']
    #allocation6 [shape = 's32[2]{0}', space=sflag, size = 0x8, scoped, tag = 'scoped memory for tpu_custom_call.1']
    #allocation7 [shape = 'u8[32768]{0}', space=vmem, size = 0x8000, scoped, tag = 'input window, operand 3']
    #allocation8 [shape = 'u8[16384]{0}', space=vmem, size = 0x4000, scoped, tag = 'input window, operand 6, single buffered']
    #allocation9 [shape = 's32[1]{0}', space=sflag, size = 0x4, scoped, tag = 'scoped memory for tpu_custom_call.1']
    #allocation10 [shape = 'u8[16384]{0}', space=vmem, size = 0x4000, scoped, tag = 'input window, operand 8, single buffered']
    #allocation11 [shape = 'u8[32768]{0}', space=vmem, size = 0x8000, scoped, tag = 'input window, operand 10, single buffered']
    #allocation12 [shape = 's32[1]{0}', space=sflag, size = 0x4, scoped, tag = 'scoped memory for tpu_custom_call.1']
    #allocation13 [shape = 'u8[16384]{0}', space=vmem, size = 0x4000, scoped, tag = 'input window, operand 12, single buffered']
    #allocation14 [shape = 'u8[8192]{0}', space=vmem, size = 0x2000, scoped, tag = 'output window, operand 0']
    %22 = vsyncpa [#allocation3], 0
    %s23 = scalar_lea.sflag [#allocation3], 1
    %24 = vsyncpa %s23, 0
    %25 = vsyncpa [#allocation6], 0
    %s26 = scalar_lea.sflag [#allocation6], 1
    %27 = vsyncpa %s26, 0
    %28 = vsyncpa [#allocation9], 0
    %29 = vsyncpa [#allocation12], 0
    %30 = vsyncpa [#allocation4], 0
    %s31 = scalar_lea.sflag [#allocation4], 1
    %32 = vsyncpa %s31, 0
    loop: start=0, step=1, limit=4
    $region2: #{tpu_custom_call.1} parent=1 // loop_pre_header
      _
    $region3: #{tpu_custom_call.1} parent=1 // loop_header
      %s34 = sphi 0, %s38
      %p35 = scmp.ge.s32.totalorder %s34, 4
      %s44 = sphi 0, %s46
      %s47 = sphi 0, %s44
      %s48 = sphi 0, %s47
      %s64 = sphi 0, %s48
      %s70 = sphi 0, %s72
      %s73 = sphi 0, %s70
      %s74 = sphi 0, %s73
      %s90 = sphi 0, %s74
      %s96 = sphi 0, %s98
      %s99 = sphi 0, %s96
      %s100 = sphi 0, %s99
      %s116 = sphi 0, %s100
      %s122 = sphi 0, %s124
      %s125 = sphi 0, %s122
      %s126 = sphi 0, %s125
      %s142 = sphi 0, %s126
      %s146 = sphi 0, %s146
      %s148 = sphi 0, %s146
      %s149 = sphi 0, %s148
      %s163 = sphi 0, %s149
      %s167 = sphi 0, %s167
      %s169 = sphi 0, %s167
      %s170 = sphi 0, %s169
      %s184 = sphi 0, %s170
      %s188 = sphi 0, %s188
      %s190 = sphi 0, %s188
      %s191 = sphi 0, %s190
      %s205 = sphi 0, %s191
      %s209 = sphi 0, %s209
      %s211 = sphi 0, %s209
      %s212 = sphi 0, %s211
      %s226 = sphi 0, %s212
      %s230 = sphi 0, %s230
      %s232 = sphi 0, %s230
      %s233 = sphi 0, %s232
      %s247 = sphi 0, %s233
      %s251 = sphi 0, %s251
      %s253 = sphi 0, %s251
      %s254 = sphi 0, %s253
      %s268 = sphi 0, %s254
      %s272 = sphi 0, %s272
      %s274 = sphi 0, %s272
      %s275 = sphi 0, %s274
      %s289 = sphi 0, %s275
      %s293 = sphi 0, %s293
      %s295 = sphi 0, %s293
      %s296 = sphi 0, %s295
      %s310 = sphi 0, %s296
      %s314 = sphi 0, %s314
      %s316 = sphi 0, %s314
      %s317 = sphi 0, %s316
      %s331 = sphi 0, %s317
      %s335 = sphi 0, %s335
      %s337 = sphi 0, %s335
      %s338 = sphi 0, %s337
      %s352 = sphi 0, %s338
      %s356 = sphi 0, %s356
      %s358 = sphi 0, %s356
      %s359 = sphi 0, %s358
      %s373 = sphi 0, %s359
      %s377 = sphi 0, %s377
      %s379 = sphi 0, %s377
      %s380 = sphi 0, %s379
      %s394 = sphi 0, %s380
      %s398 = sphi 0, %s398
      %s400 = sphi 0, %s398
      %s401 = sphi 0, %s400
      %s415 = sphi 0, %s401
      %s421 = sphi 0, %s423
      %s424 = sphi 0, %s421
      %s425 = sphi 0, %s424
      %s441 = sphi 0, %s425
    $region4: #{tpu_custom_call.1} parent=1 // loop_header_branch
      %37 = sbr.rel (%p35) target = $region8
    $region5: #{tpu_custom_call.1} parent=1 // loop_body
      %s39 = ssub.s32 %s34, 1
      %s40 = ssub.s32 %s34, 2
      %s41 = sadd.s32 %s34, 1
      %s42 = ssub.s32 %s34, %s41
      %p43 = scmp.eq.s32.totalorder %s42, 0
      %s45 = sadd.s32 %s44, 1
      %s46 = scalar_select %p43, %s44, %s45
      %p49 = pneg %p43
      %p50 = scmp.eq.s32.totalorder %s34, 1
      %p51 = por %p49, %p50
      %p52 = scmp.ne.s32.totalorder %s44, %s47
      %p53 = scmp.eq.s32.totalorder %s34, 0
      %p54 = por %p52, %p53
      %p55 = scmp.ne.s32.totalorder %s44, %s47
      %p56 = scmp.eq.s32.totalorder %s39, 1
      %p57 = por %p55, %p56
      %p58 = scmp.ne.s32.totalorder %s47, %s48
      %p59 = scmp.eq.s32.totalorder %s39, 0
      %p60 = por %p58, %p59
      %p61 = scmp.ne.s32.totalorder %s47, %s48
      %p62 = scmp.eq.s32.totalorder %s40, 1
      %p63 = por %p61, %p62
      %p65 = scmp.ne.s32.totalorder %s48, %s64
      %p66 = scmp.eq.s32.totalorder %s40, 0
      %p67 = por %p65, %p66
      %s68 = ssub.s32 %s34, %s41
      %p69 = scmp.eq.s32.totalorder %s68, 0
      %s71 = sadd.s32 %s70, 1
      %s72 = scalar_select %p69, %s70, %s71
      %p75 = pneg %p69
      %p76 = scmp.eq.s32.totalorder %s34, 1
      %p77 = por %p75, %p76
      %p78 = scmp.ne.s32.totalorder %s70, %s73
      %p79 = scmp.eq.s32.totalorder %s34, 0
      %p80 = por %p78, %p79
      %p81 = scmp.ne.s32.totalorder %s70, %s73
      %p82 = scmp.eq.s32.totalorder %s39, 1
      %p83 = por %p81, %p82
      %p84 = scmp.ne.s32.totalorder %s73, %s74
      %p85 = scmp.eq.s32.totalorder %s39, 0
      %p86 = por %p84, %p85
      %p87 = scmp.ne.s32.totalorder %s73, %s74
      %p88 = scmp.eq.s32.totalorder %s40, 1
      %p89 = por %p87, %p88
      %p91 = scmp.ne.s32.totalorder %s74, %s90
      %p92 = scmp.eq.s32.totalorder %s40, 0
      %p93 = por %p91, %p92
      %s94 = ssub.s32 %s34, %s41
      %p95 = scmp.eq.s32.totalorder %s94, 0
      %s97 = sadd.s32 %s96, 1
      %s98 = scalar_select %p95, %s96, %s97
      %p101 = pneg %p95
      %p102 = scmp.eq.s32.totalorder %s34, 1
      %p103 = por %p101, %p102
      %p104 = scmp.ne.s32.totalorder %s96, %s99
      %p105 = scmp.eq.s32.totalorder %s34, 0
      %p106 = por %p104, %p105
      %p107 = scmp.ne.s32.totalorder %s96, %s99
      %p108 = scmp.eq.s32.totalorder %s39, 1
      %p109 = por %p107, %p108
      %p110 = scmp.ne.s32.totalorder %s99, %s100
      %p111 = scmp.eq.s32.totalorder %s39, 0
      %p112 = por %p110, %p111
      %p113 = scmp.ne.s32.totalorder %s99, %s100
      %p114 = scmp.eq.s32.totalorder %s40, 1
      %p115 = por %p113, %p114
      %p117 = scmp.ne.s32.totalorder %s100, %s116
      %p118 = scmp.eq.s32.totalorder %s40, 0
      %p119 = por %p117, %p118
      %s120 = ssub.s32 %s34, %s41
      %p121 = scmp.eq.s32.totalorder %s120, 0
      %s123 = sadd.s32 %s122, 1
      %s124 = scalar_select %p121, %s122, %s123
      %p127 = pneg %p121
      %p128 = scmp.eq.s32.totalorder %s34, 1
      %p129 = por %p127, %p128
      %p130 = scmp.ne.s32.totalorder %s122, %s125
      %p131 = scmp.eq.s32.totalorder %s34, 0
      %p132 = por %p130, %p131
      %p133 = scmp.ne.s32.totalorder %s122, %s125
      %p134 = scmp.eq.s32.totalorder %s39, 1
      %p135 = por %p133, %p134
      %p136 = scmp.ne.s32.totalorder %s125, %s126
      %p137 = scmp.eq.s32.totalorder %s39, 0
      %p138 = por %p136, %p137
      %p139 = scmp.ne.s32.totalorder %s125, %s126
      %p140 = scmp.eq.s32.totalorder %s40, 1
      %p141 = por %p139, %p140
      %p143 = scmp.ne.s32.totalorder %s126, %s142
      %p144 = scmp.eq.s32.totalorder %s40, 0
      %p145 = por %p143, %p144
      %s147 = sadd.s32 %s146, 1
      %p150 = scmp.eq.s32.totalorder %s34, 1
      %p151 = scmp.ne.s32.totalorder %s146, %s148
      %p152 = scmp.eq.s32.totalorder %s34, 0
      %p153 = por %p151, %p152
      %p154 = scmp.ne.s32.totalorder %s146, %s148
      %p155 = scmp.eq.s32.totalorder %s39, 1
      %p156 = por %p154, %p155
      %p157 = scmp.ne.s32.totalorder %s148, %s149
      %p158 = scmp.eq.s32.totalorder %s39, 0
      %p159 = por %p157, %p158
      %p160 = scmp.ne.s32.totalorder %s148, %s149
      %p161 = scmp.eq.s32.totalorder %s40, 1
      %p162 = por %p160, %p161
      %p164 = scmp.ne.s32.totalorder %s149, %s163
      %p165 = scmp.eq.s32.totalorder %s40, 0
      %p166 = por %p164, %p165
      %s168 = sadd.s32 %s167, 1
      %p171 = scmp.eq.s32.totalorder %s34, 1
      %p172 = scmp.ne.s32.totalorder %s167, %s169
      %p173 = scmp.eq.s32.totalorder %s34, 0
      %p174 = por %p172, %p173
      %p175 = scmp.ne.s32.totalorder %s167, %s169
      %p176 = scmp.eq.s32.totalorder %s39, 1
      %p177 = por %p175, %p176
      %p178 = scmp.ne.s32.totalorder %s169, %s170
      %p179 = scmp.eq.s32.totalorder %s39, 0
      %p180 = por %p178, %p179
      %p181 = scmp.ne.s32.totalorder %s169, %s170
      %p182 = scmp.eq.s32.totalorder %s40, 1
      %p183 = por %p181, %p182
      %p185 = scmp.ne.s32.totalorder %s170, %s184
      %p186 = scmp.eq.s32.totalorder %s40, 0
      %p187 = por %p185, %p186
      %s189 = sadd.s32 %s188, 1
      %p192 = scmp.eq.s32.totalorder %s34, 1
      %p193 = scmp.ne.s32.totalorder %s188, %s190
      %p194 = scmp.eq.s32.totalorder %s34, 0
      %p195 = por %p193, %p194
      %p196 = scmp.ne.s32.totalorder %s188, %s190
      %p197 = scmp.eq.s32.totalorder %s39, 1
      %p198 = por %p196, %p197
      %p199 = scmp.ne.s32.totalorder %s190, %s191
      %p200 = scmp.eq.s32.totalorder %s39, 0
      %p201 = por %p199, %p200
      %p202 = scmp.ne.s32.totalorder %s190, %s191
      %p203 = scmp.eq.s32.totalorder %s40, 1
      %p204 = por %p202, %p203
      %p206 = scmp.ne.s32.totalorder %s191, %s205
      %p207 = scmp.eq.s32.totalorder %s40, 0
      %p208 = por %p206, %p207
      %s210 = sadd.s32 %s209, 1
      %p213 = scmp.eq.s32.totalorder %s34, 1
      %p214 = scmp.ne.s32.totalorder %s209, %s211
      %p215 = scmp.eq.s32.totalorder %s34, 0
      %p216 = por %p214, %p215
      %p217 = scmp.ne.s32.totalorder %s209, %s211
      %p218 = scmp.eq.s32.totalorder %s39, 1
      %p219 = por %p217, %p218
      %p220 = scmp.ne.s32.totalorder %s211, %s212
      %p221 = scmp.eq.s32.totalorder %s39, 0
      %p222 = por %p220, %p221
      %p223 = scmp.ne.s32.totalorder %s211, %s212
      %p224 = scmp.eq.s32.totalorder %s40, 1
      %p225 = por %p223, %p224
      %p227 = scmp.ne.s32.totalorder %s212, %s226
      %p228 = scmp.eq.s32.totalorder %s40, 0
      %p229 = por %p227, %p228
      %s231 = sadd.s32 %s230, 1
      %p234 = scmp.eq.s32.totalorder %s34, 1
      %p235 = scmp.ne.s32.totalorder %s230, %s232
      %p236 = scmp.eq.s32.totalorder %s34, 0
      %p237 = por %p235, %p236
      %p238 = scmp.ne.s32.totalorder %s230, %s232
      %p239 = scmp.eq.s32.totalorder %s39, 1
      %p240 = por %p238, %p239
      %p241 = scmp.ne.s32.totalorder %s232, %s233
      %p242 = scmp.eq.s32.totalorder %s39, 0
      %p243 = por %p241, %p242
      %p244 = scmp.ne.s32.totalorder %s232, %s233
      %p245 = scmp.eq.s32.totalorder %s40, 1
      %p246 = por %p244, %p245
      %p248 = scmp.ne.s32.totalorder %s233, %s247
      %p249 = scmp.eq.s32.totalorder %s40, 0
      %p250 = por %p248, %p249
      %s252 = sadd.s32 %s251, 1
      %p255 = scmp.eq.s32.totalorder %s34, 1
      %p256 = scmp.ne.s32.totalorder %s251, %s253
      %p257 = scmp.eq.s32.totalorder %s34, 0
      %p258 = por %p256, %p257
      %p259 = scmp.ne.s32.totalorder %s251, %s253
      %p260 = scmp.eq.s32.totalorder %s39, 1
      %p261 = por %p259, %p260
      %p262 = scmp.ne.s32.totalorder %s253, %s254
      %p263 = scmp.eq.s32.totalorder %s39, 0
      %p264 = por %p262, %p263
      %p265 = scmp.ne.s32.totalorder %s253, %s254
      %p266 = scmp.eq.s32.totalorder %s40, 1
      %p267 = por %p265, %p266
      %p269 = scmp.ne.s32.totalorder %s254, %s268
      %p270 = scmp.eq.s32.totalorder %s40, 0
      %p271 = por %p269, %p270
      %s273 = sadd.s32 %s272, 1
      %p276 = scmp.eq.s32.totalorder %s34, 1
      %p277 = scmp.ne.s32.totalorder %s272, %s274
      %p278 = scmp.eq.s32.totalorder %s34, 0
      %p279 = por %p277, %p278
      %p280 = scmp.ne.s32.totalorder %s272, %s274
      %p281 = scmp.eq.s32.totalorder %s39, 1
      %p282 = por %p280, %p281
      %p283 = scmp.ne.s32.totalorder %s274, %s275
      %p284 = scmp.eq.s32.totalorder %s39, 0
      %p285 = por %p283, %p284
      %p286 = scmp.ne.s32.totalorder %s274, %s275
      %p287 = scmp.eq.s32.totalorder %s40, 1
      %p288 = por %p286, %p287
      %p290 = scmp.ne.s32.totalorder %s275, %s289
      %p291 = scmp.eq.s32.totalorder %s40, 0
      %p292 = por %p290, %p291
      %s294 = sadd.s32 %s293, 1
      %p297 = scmp.eq.s32.totalorder %s34, 1
      %p298 = scmp.ne.s32.totalorder %s293, %s295
      %p299 = scmp.eq.s32.totalorder %s34, 0
      %p300 = por %p298, %p299
      %p301 = scmp.ne.s32.totalorder %s293, %s295
      %p302 = scmp.eq.s32.totalorder %s39, 1
      %p303 = por %p301, %p302
      %p304 = scmp.ne.s32.totalorder %s295, %s296
      %p305 = scmp.eq.s32.totalorder %s39, 0
      %p306 = por %p304, %p305
      %p307 = scmp.ne.s32.totalorder %s295, %s296
      %p308 = scmp.eq.s32.totalorder %s40, 1
      %p309 = por %p307, %p308
      %p311 = scmp.ne.s32.totalorder %s296, %s310
      %p312 = scmp.eq.s32.totalorder %s40, 0
      %p313 = por %p311, %p312
      %s315 = sadd.s32 %s314, 1
      %p318 = scmp.eq.s32.totalorder %s34, 1
      %p319 = scmp.ne.s32.totalorder %s314, %s316
      %p320 = scmp.eq.s32.totalorder %s34, 0
      %p321 = por %p319, %p320
      %p322 = scmp.ne.s32.totalorder %s314, %s316
      %p323 = scmp.eq.s32.totalorder %s39, 1
      %p324 = por %p322, %p323
      %p325 = scmp.ne.s32.totalorder %s316, %s317
      %p326 = scmp.eq.s32.totalorder %s39, 0
      %p327 = por %p325, %p326
      %p328 = scmp.ne.s32.totalorder %s316, %s317
      %p329 = scmp.eq.s32.totalorder %s40, 1
      %p330 = por %p328, %p329
      %p332 = scmp.ne.s32.totalorder %s317, %s331
      %p333 = scmp.eq.s32.totalorder %s40, 0
      %p334 = por %p332, %p333
      %s336 = sadd.s32 %s335, 1
      %p339 = scmp.eq.s32.totalorder %s34, 1
      %p340 = scmp.ne.s32.totalorder %s335, %s337
      %p341 = scmp.eq.s32.totalorder %s34, 0
      %p342 = por %p340, %p341
      %p343 = scmp.ne.s32.totalorder %s335, %s337
      %p344 = scmp.eq.s32.totalorder %s39, 1
      %p345 = por %p343, %p344
      %p346 = scmp.ne.s32.totalorder %s337, %s338
      %p347 = scmp.eq.s32.totalorder %s39, 0
      %p348 = por %p346, %p347
      %p349 = scmp.ne.s32.totalorder %s337, %s338
      %p350 = scmp.eq.s32.totalorder %s40, 1
      %p351 = por %p349, %p350
      %p353 = scmp.ne.s32.totalorder %s338, %s352
      %p354 = scmp.eq.s32.totalorder %s40, 0
      %p355 = por %p353, %p354
      %s357 = sadd.s32 %s356, 1
      %p360 = scmp.eq.s32.totalorder %s34, 1
      %p361 = scmp.ne.s32.totalorder %s356, %s358
      %p362 = scmp.eq.s32.totalorder %s34, 0
      %p363 = por %p361, %p362
      %p364 = scmp.ne.s32.totalorder %s356, %s358
      %p365 = scmp.eq.s32.totalorder %s39, 1
      %p366 = por %p364, %p365
      %p367 = scmp.ne.s32.totalorder %s358, %s359
      %p368 = scmp.eq.s32.totalorder %s39, 0
      %p369 = por %p367, %p368
      %p370 = scmp.ne.s32.totalorder %s358, %s359
      %p371 = scmp.eq.s32.totalorder %s40, 1
      %p372 = por %p370, %p371
      %p374 = scmp.ne.s32.totalorder %s359, %s373
      %p375 = scmp.eq.s32.totalorder %s40, 0
      %p376 = por %p374, %p375
      %s378 = sadd.s32 %s377, 1
      %p381 = scmp.eq.s32.totalorder %s34, 1
      %p382 = scmp.ne.s32.totalorder %s377, %s379
      %p383 = scmp.eq.s32.totalorder %s34, 0
      %p384 = por %p382, %p383
      %p385 = scmp.ne.s32.totalorder %s377, %s379
      %p386 = scmp.eq.s32.totalorder %s39, 1
      %p387 = por %p385, %p386
      %p388 = scmp.ne.s32.totalorder %s379, %s380
      %p389 = scmp.eq.s32.totalorder %s39, 0
      %p390 = por %p388, %p389
      %p391 = scmp.ne.s32.totalorder %s379, %s380
      %p392 = scmp.eq.s32.totalorder %s40, 1
      %p393 = por %p391, %p392
      %p395 = scmp.ne.s32.totalorder %s380, %s394
      %p396 = scmp.eq.s32.totalorder %s40, 0
      %p397 = por %p395, %p396
      %s399 = sadd.s32 %s398, 1
      %p402 = scmp.eq.s32.totalorder %s34, 1
      %p403 = scmp.ne.s32.totalorder %s398, %s400
      %p404 = scmp.eq.s32.totalorder %s34, 0
      %p405 = por %p403, %p404
      %p406 = scmp.ne.s32.totalorder %s398, %s400
      %p407 = scmp.eq.s32.totalorder %s39, 1
      %p408 = por %p406, %p407
      %p409 = scmp.ne.s32.totalorder %s400, %s401
      %p410 = scmp.eq.s32.totalorder %s39, 0
      %p411 = por %p409, %p410
      %p412 = scmp.ne.s32.totalorder %s400, %s401
      %p413 = scmp.eq.s32.totalorder %s40, 1
      %p414 = por %p412, %p413
      %p416 = scmp.ne.s32.totalorder %s401, %s415
      %p417 = scmp.eq.s32.totalorder %s40, 0
      %p418 = por %p416, %p417
      %s419 = ssub.s32 %s34, %s41
      %p420 = scmp.eq.s32.totalorder %s419, 0
      %s422 = sadd.s32 %s421, 1
      %s423 = scalar_select %p420, %s421, %s422
      %p426 = pneg %p420
      %p427 = scmp.eq.s32.totalorder %s34, 1
      %p428 = por %p426, %p427
      %p429 = scmp.ne.s32.totalorder %s421, %s424
      %p430 = scmp.eq.s32.totalorder %s34, 0
      %p431 = por %p429, %p430
      %p432 = scmp.ne.s32.totalorder %s421, %s424
      %p433 = scmp.eq.s32.totalorder %s39, 1
      %p434 = por %p432, %p433
      %p435 = scmp.ne.s32.totalorder %s424, %s425
      %p436 = scmp.eq.s32.totalorder %s39, 0
      %p437 = por %p435, %p436
      %p438 = scmp.ne.s32.totalorder %s424, %s425
      %p439 = scmp.eq.s32.totalorder %s40, 1
      %p440 = por %p438, %p439
      %p442 = scmp.ne.s32.totalorder %s425, %s441
      %p443 = scmp.eq.s32.totalorder %s40, 0
      %p444 = por %p442, %p443
      %p445 = scmp.le.s32.totalorder 1, %s34
      %p446 = scmp.lt.s32.totalorder %s34, 3
      %p447 = pnand %p445, %p446
      %p448 = pneg %p447
      // Predicated region
      $region9: #{tpu_custom_call.1} parent=5 // pred_check
        _
      $region10: #{tpu_custom_call.1} parent=5 // pred_check_branch
        %450 = sbr.rel (%p447) target = $region12
      $region11: #{tpu_custom_call.1} parent=5 // pred_region
        %s451 = ssub.s32 %s34, 1
        // Predicated region
        $region13: #{tpu_custom_call.1} parent=11 // pred_check
          %p452 = pneg %p159
        $region14: #{tpu_custom_call.1} parent=11 // pred_check_branch
          %454 = sbr.rel (%p452) target = $region16
        $region15: #{tpu_custom_call.1} parent=11 // pred_region
          _
        $region16: #{tpu_custom_call.1} parent=11 // pred_fallthru
          _
        // Predicated region
        $region17: #{tpu_custom_call.1} parent=11 // pred_check
          %p455 = pneg %p180
        $region18: #{tpu_custom_call.1} parent=11 // pred_check_branch
          %457 = sbr.rel (%p455) target = $region20
        $region19: #{tpu_custom_call.1} parent=11 // pred_region
          _
        $region20: #{tpu_custom_call.1} parent=11 // pred_fallthru
          _
        // Predicated region
        $region21: #{tpu_custom_call.1} parent=11 // pred_check
          %p458 = pneg %p201
        $region22: #{tpu_custom_call.1} parent=11 // pred_check_branch
          %460 = sbr.rel (%p458) target = $region24
        $region23: #{tpu_custom_call.1} parent=11 // pred_region
          %s462 = ssub.s32 512, 512
          %463 = vsyncadd [#allocation9], %s462
          %s464 = sshll.u32 [#allocation8], 4
          %s465 = int_to_ptr.vmem [resolvable:$true] %s464
          %470 = dma.hbm_to_vmem [thread:$0]  %s6, 512, %s465, [#allocation9], 128, 128, 8
        $region24: #{tpu_custom_call.1} parent=11 // pred_fallthru
          _
        // Predicated region
        $region25: #{tpu_custom_call.1} parent=11 // pred_check
          %p471 = pneg %p222
        $region26: #{tpu_custom_call.1} parent=11 // pred_check_branch
          %473 = sbr.rel (%p471) target = $region28
        $region27: #{tpu_custom_call.1} parent=11 // pred_region
          _
        $region28: #{tpu_custom_call.1} parent=11 // pred_fallthru
          _
        // Predicated region
        $region29: #{tpu_custom_call.1} parent=11 // pred_check
          %p474 = pneg %p243
        $region30: #{tpu_custom_call.1} parent=11 // pred_check_branch
          %476 = sbr.rel (%p474) target = $region32
        $region31: #{tpu_custom_call.1} parent=11 // pred_region
          %s478 = ssub.s32 512, 512
          %479 = vsyncadd [#allocation9], %s478
          %s480 = sshll.u32 [#allocation10], 4
          %s481 = int_to_ptr.vmem [resolvable:$true] %s480
          %486 = dma.hbm_to_vmem [thread:$0]  %s8, 512, %s481, [#allocation9], 128, 128, 8
        $region32: #{tpu_custom_call.1} parent=11 // pred_fallthru
          _
        // Predicated region
        $region33: #{tpu_custom_call.1} parent=11 // pred_check
          %p487 = pneg %p264
        $region34: #{tpu_custom_call.1} parent=11 // pred_check_branch
          %489 = sbr.rel (%p487) target = $region36
        $region35: #{tpu_custom_call.1} parent=11 // pred_region
          _
        $region36: #{tpu_custom_call.1} parent=11 // pred_fallthru
          _
        // Predicated region
        $region37: #{tpu_custom_call.1} parent=11 // pred_check
          %p490 = pneg %p285
        $region38: #{tpu_custom_call.1} parent=11 // pred_check_branch
          %492 = sbr.rel (%p490) target = $region40
        $region39: #{tpu_custom_call.1} parent=11 // pred_region
          %s494 = ssub.s32 1024, 1024
          %495 = vsyncadd [#allocation12], %s494
          %s496 = sshll.u32 [#allocation11], 4
          %s497 = int_to_ptr.vmem [resolvable:$true] %s496
          %502 = dma.hbm_to_vmem [thread:$0]  %s10, 1024, %s497, [#allocation12], 128, 128, 8
        $region40: #{tpu_custom_call.1} parent=11 // pred_fallthru
          _
        // Predicated region
        $region41: #{tpu_custom_call.1} parent=11 // pred_check
          %p503 = pneg %p306
        $region42: #{tpu_custom_call.1} parent=11 // pred_check_branch
          %505 = sbr.rel (%p503) target = $region44
        $region43: #{tpu_custom_call.1} parent=11 // pred_region
          _
        $region44: #{tpu_custom_call.1} parent=11 // pred_fallthru
          _
        // Predicated region
        $region45: #{tpu_custom_call.1} parent=11 // pred_check
          %p506 = pneg %p327
        $region46: #{tpu_custom_call.1} parent=11 // pred_check_branch
          %508 = sbr.rel (%p506) target = $region48
        $region47: #{tpu_custom_call.1} parent=11 // pred_region
          %s510 = ssub.s32 512, 512
          %511 = vsyncadd [#allocation12], %s510
          %s512 = sshll.u32 [#allocation13], 4
          %s513 = int_to_ptr.vmem [resolvable:$true] %s512
          %518 = dma.hbm_to_vmem [thread:$0]  %s12, 512, %s513, [#allocation12], 128, 128, 8
        $region48: #{tpu_custom_call.1} parent=11 // pred_fallthru
          _
        // Predicated region
        $region49: #{tpu_custom_call.1} parent=11 // pred_check
          %p519 = pneg %p348
        $region50: #{tpu_custom_call.1} parent=11 // pred_check_branch
          %521 = sbr.rel (%p519) target = $region52
        $region51: #{tpu_custom_call.1} parent=11 // pred_region
          _
        $region52: #{tpu_custom_call.1} parent=11 // pred_fallthru
          _
        // Predicated region
        $region53: #{tpu_custom_call.1} parent=11 // pred_check
          %p522 = pneg %p369
        $region54: #{tpu_custom_call.1} parent=11 // pred_check_branch
          %524 = sbr.rel (%p522) target = $region56
        $region55: #{tpu_custom_call.1} parent=11 // pred_region
          _
        $region56: #{tpu_custom_call.1} parent=11 // pred_fallthru
          _
        // Predicated region
        $region57: #{tpu_custom_call.1} parent=11 // pred_check
          %p525 = pneg %p390
        $region58: #{tpu_custom_call.1} parent=11 // pred_check_branch
          %527 = sbr.rel (%p525) target = $region60
        $region59: #{tpu_custom_call.1} parent=11 // pred_region
          _
        $region60: #{tpu_custom_call.1} parent=11 // pred_fallthru
          _
        // Predicated region
        $region61: #{tpu_custom_call.1} parent=11 // pred_check
          %p528 = pneg %p411
        $region62: #{tpu_custom_call.1} parent=11 // pred_check_branch
          %530 = sbr.rel (%p528) target = $region64
        $region63: #{tpu_custom_call.1} parent=11 // pred_region
          _
        $region64: #{tpu_custom_call.1} parent=11 // pred_fallthru
          _
      $region12: #{tpu_custom_call.1} parent=5 // pred_fallthru
        _
      %p531 = scmp.lt.s32.totalorder %s34, 2
      // Predicated region
      $region65: #{tpu_custom_call.1} parent=5 // pred_check
        %p532 = pneg %p531
      $region66: #{tpu_custom_call.1} parent=5 // pred_check_branch
        %534 = sbr.rel (%p532) target = $region68
      $region67: #{tpu_custom_call.1} parent=5 // pred_region
        // Predicated region
        $region69: #{tpu_custom_call.1} parent=67 // pred_check
          %p535 = pneg %p54
        $region70: #{tpu_custom_call.1} parent=67 // pred_check_branch
          %537 = sbr.rel (%p535) target = $region72
        $region71: #{tpu_custom_call.1} parent=67 // pred_region
          %s538 = sand.u32 %s44, 1
          %s539 = scalar_lea.sflag [#allocation3], %s538
          %s540 = sand.u32 %s44, 1
          %s541 = smul.addr %s540, 8
          %s542 = scalar_lea.vmem [#allocation2], %s541
          %s544 = ssub.s32 128, 128
          %545 = vsyncadd %s539, %s544
          %s546 = smul.addr %s34, 128
          %s547 = scalar_lea.hbm %s0, %s546
          %s549 = sshll.u32 %s542, 4
          %s550 = int_to_ptr.vmem [resolvable:$true] %s549
          %552 = dma.hbm_to_vmem [thread:$0]  %s547, 128, %s550, %s539
        $region72: #{tpu_custom_call.1} parent=67 // pred_fallthru
          _
        // Predicated region
        $region73: #{tpu_custom_call.1} parent=67 // pred_check
          %p553 = pneg %p80
        $region74: #{tpu_custom_call.1} parent=67 // pred_check_branch
          %555 = sbr.rel (%p553) target = $region76
        $region75: #{tpu_custom_call.1} parent=67 // pred_region
          %s556 = sand.u32 %s34, 1
          %s557 = scalar_lea.sflag [#allocation6], %s556
          %s558 = sand.u32 %s70, 1
          %s559 = smul.addr %s558, 8
          %s560 = scalar_lea.vmem [#allocation5], %s559
          %s562 = ssub.s32 128, 128
          %563 = vsyncadd %s557, %s562
          %s564 = smul.addr %s34, 128
          %s565 = scalar_lea.hbm %s1, %s564
          %s567 = sshll.u32 %s560, 4
          %s568 = int_to_ptr.vmem [resolvable:$true] %s567
          %570 = dma.hbm_to_vmem [thread:$0]  %s565, 128, %s568, %s557
        $region76: #{tpu_custom_call.1} parent=67 // pred_fallthru
          _
        // Predicated region
        $region77: #{tpu_custom_call.1} parent=67 // pred_check
          %p571 = pneg %p106
        $region78: #{tpu_custom_call.1} parent=67 // pred_check_branch
          %573 = sbr.rel (%p571) target = $region80
        $region79: #{tpu_custom_call.1} parent=67 // pred_region
          %p574 = scmp.lt.s32.totalorder %s34, 1
          %s575 = scalar_select %p574, %s34, 1
          %s576 = smul.addr %s575, 4
          %s577 = smul.addr %s576, 8
          %s578 = scalar_lea.vmem %s2, %s577
        $region80: #{tpu_custom_call.1} parent=67 // pred_fallthru
          _
        // Predicated region
        $region81: #{tpu_custom_call.1} parent=67 // pred_check
          %p579 = pneg %p132
        $region82: #{tpu_custom_call.1} parent=67 // pred_check_branch
          %581 = sbr.rel (%p579) target = $region84
        $region83: #{tpu_custom_call.1} parent=67 // pred_region
          %s582 = sand.u32 %s34, 1
          %s583 = scalar_lea.sflag [#allocation6], %s582
          %s584 = sand.u32 %s122, 1
          %s585 = smul.addr %s584, 32
          %s586 = scalar_lea.vmem [#allocation7], %s585
          %s588 = ssub.s32 512, 512
          %589 = vsyncadd %s583, %s588
          %s590 = smul.addr %s34, 4
          %s591 = smul.addr %s590, 128
          %s592 = scalar_lea.hbm %s3, %s591
          %s593 = sshll.u32 %s586, 4
          %s594 = int_to_ptr.vmem [resolvable:$true] %s593
          %599 = dma.hbm_to_vmem [thread:$0]  %s592, 512, %s594, %s583, 128, 128, 8
        $region84: #{tpu_custom_call.1} parent=67 // pred_fallthru
          _
      $region68: #{tpu_custom_call.1} parent=5 // pred_fallthru
        _
      %p600 = scmp.le.s32.totalorder 1, %s34
      %p601 = scmp.lt.s32.totalorder %s34, 3
      %p602 = pnand %p600, %p601
      %p603 = pneg %p602
      // Predicated region
      $region85: #{tpu_custom_call.1} parent=5 // pred_check
        _
      $region86: #{tpu_custom_call.1} parent=5 // pred_check_branch
        %605 = sbr.rel (%p602) target = $region88
      $region87: #{tpu_custom_call.1} parent=5 // pred_region
        %s606 = ssub.s32 %s34, 1
        %s607 = sand.u32 %s47, 1
        %s608 = scalar_lea.sflag [#allocation3], %s607
        %s609 = sand.u32 %s47, 1
        %s610 = smul.addr %s609, 8
        %s611 = scalar_lea.vmem [#allocation2], %s610
        // Predicated region
        $region89: #{tpu_custom_call.1} parent=87 // pred_check
          %p612 = pneg %p60
        $region90: #{tpu_custom_call.1} parent=87 // pred_check_branch
          %614 = sbr.rel (%p612) target = $region92
        $region91: #{tpu_custom_call.1} parent=87 // pred_region
          %615 = dma.done %s608, 128
        $region92: #{tpu_custom_call.1} parent=87 // pred_fallthru
          _
        %s616 = sand.u32 %s39, 1
        %s617 = scalar_lea.sflag [#allocation6], %s616
        %s618 = sand.u32 %s73, 1
        %s619 = smul.addr %s618, 8
        %s620 = scalar_lea.vmem [#allocation5], %s619
        // Predicated region
        $region93: #{tpu_custom_call.1} parent=87 // pred_check
          %p621 = pneg %p86
        $region94: #{tpu_custom_call.1} parent=87 // pred_check_branch
          %623 = sbr.rel (%p621) target = $region96
        $region95: #{tpu_custom_call.1} parent=87 // pred_region
          %624 = dma.done %s617, 128
        $region96: #{tpu_custom_call.1} parent=87 // pred_fallthru
          _
        %s625 = sand.u32 %s39, 1
        %s626 = scalar_lea.sflag [#allocation6], %s625
        %s627 = sand.u32 %s125, 1
        %s628 = smul.addr %s627, 32
        %s629 = scalar_lea.vmem [#allocation7], %s628
        // Predicated region
        $region97: #{tpu_custom_call.1} parent=87 // pred_check
          %p630 = pneg %p138
        $region98: #{tpu_custom_call.1} parent=87 // pred_check_branch
          %632 = sbr.rel (%p630) target = $region100
        $region99: #{tpu_custom_call.1} parent=87 // pred_region
          %633 = dma.done %s626, 512
        $region100: #{tpu_custom_call.1} parent=87 // pred_fallthru
          _
        // Predicated region
        $region101: #{tpu_custom_call.1} parent=87 // pred_check
          %p634 = pneg %p201
        $region102: #{tpu_custom_call.1} parent=87 // pred_check_branch
          %636 = sbr.rel (%p634) target = $region104
        $region103: #{tpu_custom_call.1} parent=87 // pred_region
          %637 = dma.done [#allocation9], 512
        $region104: #{tpu_custom_call.1} parent=87 // pred_fallthru
          _
        // Predicated region
        $region105: #{tpu_custom_call.1} parent=87 // pred_check
          %p638 = pneg %p243
        $region106: #{tpu_custom_call.1} parent=87 // pred_check_branch
          %640 = sbr.rel (%p638) target = $region108
        $region107: #{tpu_custom_call.1} parent=87 // pred_region
          %641 = dma.done [#allocation9], 512
        $region108: #{tpu_custom_call.1} parent=87 // pred_fallthru
          _
        // Predicated region
        $region109: #{tpu_custom_call.1} parent=87 // pred_check
          %p642 = pneg %p285
        $region110: #{tpu_custom_call.1} parent=87 // pred_check_branch
          %644 = sbr.rel (%p642) target = $region112
        $region111: #{tpu_custom_call.1} parent=87 // pred_region
          %645 = dma.done [#allocation12], 1024
        $region112: #{tpu_custom_call.1} parent=87 // pred_fallthru
          _
        // Predicated region
        $region113: #{tpu_custom_call.1} parent=87 // pred_check
          %p646 = pneg %p327
        $region114: #{tpu_custom_call.1} parent=87 // pred_check_branch
          %648 = sbr.rel (%p646) target = $region116
        $region115: #{tpu_custom_call.1} parent=87 // pred_region
          %649 = dma.done [#allocation12], 512
        $region116: #{tpu_custom_call.1} parent=87 // pred_fallthru
          _
        %s650 = sand.u32 %s47, 1
        %s651 = scalar_lea.sflag [#allocation3], %s650
        %s652 = sand.u32 %s47, 1
        %s653 = smul.addr %s652, 8
        %s654 = scalar_lea.vmem [#allocation2], %s653
        %p655 = pneg %p60
        %p656 = pneg %p57
        %s657 = sand.u32 %s39, 1
        %s658 = scalar_lea.sflag [#allocation6], %s657
        %s659 = sand.u32 %s73, 1
        %s660 = smul.addr %s659, 8
        %s661 = scalar_lea.vmem [#allocation5], %s660
        %p662 = pneg %p86
        %p663 = pneg %p83
        %p664 = scmp.lt.s32.totalorder %s39, 1
        %s665 = scalar_select %p664, %s39, 1
        %s666 = smul.addr %s665, 4
        %s667 = smul.addr %s666, 8
        %s668 = scalar_lea.vmem %s2, %s667
        %p669 = pneg %p112
        %p670 = pneg %p109
        %s671 = sand.u32 %s39, 1
        %s672 = scalar_lea.sflag [#allocation6], %s671
        %s673 = sand.u32 %s125, 1
        %s674 = smul.addr %s673, 32
        %s675 = scalar_lea.vmem [#allocation7], %s674
        %p676 = pneg %p138
        %p677 = pneg %p135
        %p678 = pneg %p159
        %p679 = pneg %p156
        %p680 = pneg %p180
        %p681 = pneg %p177
        %p682 = pneg %p201
        %p683 = pneg %p198
        %p684 = pneg %p222
        %p685 = pneg %p219
        %p686 = pneg %p243
        %p687 = pneg %p240
        %p688 = pneg %p264
        %p689 = pneg %p261
        %p690 = pneg %p285
        %p691 = pneg %p282
        %p692 = pneg %p306
        %p693 = pneg %p303
        %p694 = pneg %p327
        %p695 = pneg %p324
        %p696 = pneg %p348
        %p697 = pneg %p345
        %p698 = pneg %p369
        %p699 = pneg %p366
        %p700 = pneg %p390
        %p701 = pneg %p387
        %p702 = pneg %p411
        %p703 = pneg %p408
        %p704 = pneg %p437
        %p705 = pneg %p434
        %s706 = sand.u32 %s424, 1
        %s707 = scalar_lea.sflag [#allocation4], %s706
        %s708 = sand.u32 %s424, 1
        %s709 = smul.addr %s708, 8
        %s710 = scalar_lea.vmem [#allocation14], %s709
        %p711 = scmp.lt.s32.totalorder %s39, 1
        %s712 = scalar_select %p711, %s39, 1
        %s713 = smul.addr %s712, 4
        %s714 = smul.addr %s713, 8
        %s715 = scalar_lea.vmem %s2, %s714
        %v716 = vld [vmem:[%s611] sm:$0xff]
        %v717 = vld [vmem:[%s620] sm:$0xff]
        %v718 = vld [vmem:[%s715] sm:$0xff]
        %v719 = vld [vmem:[%s715 + $0x8] sm:$0xff]
        %v720 = vld [vmem:[%s715 + $0x10] sm:$0xff]
        %v721 = vld [vmem:[%s715 + $0x18] sm:$0xff]
        %v722 = vld [vmem:[%s629] sm:$0xff]
        %v723 = vld [vmem:[%s629 + $0x8] sm:$0xff]
        %v724 = vld [vmem:[%s629 + $0x10] sm:$0xff]
        %v725 = vld [vmem:[%s629 + $0x18] sm:$0xff]
        %v726 = vld [vmem:[#allocation10] sm:$0xff]
        %v727 = vld [vmem:[#allocation10 + $0x8] sm:$0xff]
        %v728 = vld [vmem:[#allocation10 + $0x10] sm:$0xff]
        %v729 = vld [vmem:[#allocation10 + $0x18] sm:$0xff]
        %v730 = vld [vmem:[%s9] sm:$0x1]
        %v732 = vlaneseq
        %v733 = vshrl.u32 %v732, 7
        %v734 = vsub.s32 0, %v733
        %v735 = vrot.slane %v730, %v734
        %vm737 = vcmask 261120
        %v739 = vsel %vm737, %v717, 0
        %741 = vmatprep.subr.mxu0 0.0
        %742 = vmatpush1.msra.mxu0 0.0
        %743 = vmatprep.subr.mxu0 0.0
        %744 = vmatpush1.msra.mxu0 0.0
        %745 = vmatprep.subr.mxu0 0.0
        %746 = vmatpush1.msra.mxu0 0.0
        %747 = vmatprep.subr.mxu0 0.0
        %748 = vmatpush1.msra.mxu0 0.0
        %749 = vmatprep.subr.mxu0 0.0
        %750 = vmatpush1.msra.mxu0 0.0
        %751 = vmatprep.subr.mxu0 0.0
        %752 = vmatpush1.msra.mxu0 0.0
        %753 = vmatprep.subr.mxu0 0.0
        %754 = vmatpush1.msra.mxu0 0.0
        %755 = vmatprep.subr.mxu0 0.0
        %756 = vmatpush1.msra.mxu0 0.0
        %757 = vmatprep.subr.mxu0 0.0
        %758 = vmatpush1.msra.mxu0 0.0
        %759 = vmatprep.subr.mxu0 0.0
        %760 = vmatpush1.msra.mxu0 0.0
        %761 = vmatprep.subr.mxu0 0.0
        %762 = vmatpush1.msra.mxu0 0.0
        %763 = vmatprep.subr.mxu0 0.0
        %764 = vmatpush1.msra.mxu0 0.0
        %765 = vmatprep.subr.mxu0 0.0
        %766 = vmatpush1.msra.mxu0 %v729
        %767 = vmatprep.subr.mxu0 0.0
        %768 = vmatpush1.msra.mxu0 %v728
        %769 = vmatprep.subr.mxu0 0.0
        %770 = vmatpush1.msra.mxu0 %v727
        %771 = vmatprep.subr.mxu0 0.0
        %772 = vmatpush1.msra.mxu0 %v726
        %773 = vmatprep.subr.mxu0 0.0
        %774 = vmatpush2.msra.mxu0 0.0
        %775 = vmatprep.subr.mxu0 0.0
        %776 = vmatpush2.msra.mxu0 0.0
        %777 = vmatprep.subr.mxu0 0.0
        %778 = vmatpush2.msra.mxu0 0.0
        %779 = vmatprep.subr.mxu0 0.0
        %780 = vmatpush2.msra.mxu0 0.0
        %781 = vmatprep.subr.mxu0 0.0
        %782 = vmatpush2.msra.mxu0 0.0
        %783 = vmatprep.subr.mxu0 0.0
        %784 = vmatpush2.msra.mxu0 0.0
        %785 = vmatprep.subr.mxu0 0.0
        %786 = vmatpush2.msra.mxu0 0.0
        %787 = vmatprep.subr.mxu0 0.0
        %788 = vmatpush2.msra.mxu0 0.0
        %789 = vmatprep.subr.mxu0 0.0
        %790 = vmatpush2.msra.mxu0 0.0
        %791 = vmatprep.subr.mxu0 0.0
        %792 = vmatpush2.msra.mxu0 0.0
        %793 = vmatprep.subr.mxu0 0.0
        %794 = vmatpush2.msra.mxu0 0.0
        %795 = vmatprep.subr.mxu0 0.0
        %796 = vmatpush2.msra.mxu0 0.0
        %797 = vmatprep.subr.mxu0 0.0
        %798 = vmatpush2.msra.mxu0 0.0
        %799 = vmatprep.subr.mxu0 0.0
        %800 = vmatpush2.msra.mxu0 0.0
        %801 = vmatprep.subr.mxu0 0.0
        %802 = vmatpush2.msra.mxu0 0.0
        %803 = vmatprep.subr.mxu0 0.0
        %804 = vmatpush2.msra.mxu0 0.0
        %805 = vmatprep.mubr.f32.mxu0 0.0
        %806 = vmatmul.mubr.f32.gmra.mxu0 %v739
        %v807 = vpop.f32.mrf.mxu0
        %v808 = vadd.f32 %v735, %v807
        %v809 = vpop.f32.mrf.mxu0
        %810 = vdwg.mxu0
        %812 = vrot.lane.b32.xlu0 %v808, 120
        %v813 = vpop.permute.xlu0 %812
        %814 = vrot.lane.b32.xlu0 %v808, 112
        %v815 = vpop.permute.xlu0 %814
        %816 = vrot.lane.b32.xlu0 %v808, 104
        %v817 = vpop.permute.xlu0 %816
        %v818 = vld [vmem:[%s16] sm:$0x1]
        %v819 = vsel %vm737, %v716, 0.0
        %820 = vadd.xlane.f32.xlu0 %v819
        %v821 = vpop.xlane.xlu0 %820
        %v822 = vrcp.pop 32.0
        %v823 = vmul.f32 %v821, %v822
        %v824 = vsub.f32 %v716, %v823
        %v825 = vmul.f32 %v824, %v824
        %v826 = vsel %vm737, %v825, 0.0
        %827 = vadd.xlane.f32.xlu0 %v826
        %v828 = vpop.xlane.xlu0 %827
        %v829 = vmul.f32 %v828, 0.032258064
        %v830 = vrsqrt.pop %v829
        %v831 = vmul.f32 %v829, %v830
        %vm832 = vcmp.eq.f32.partialorder %v829, inf
        %v833 = vsel %vm832, %v829, %v831
        %vm834 = vcmp.eq.f32.partialorder %v829, 0.0
        %v835 = vand.u32 %v829, 2147483648
        %v836 = vsel %vm834, %v835, %v833
        %v837 = vadd.f32 %v836, 1e-06
        %v838 = vrcp.pop %v837
        %s840 = vtos %v818
        %v841 = vstv %s840
        %v843 = vmul.f32 %v841, %v824
        %v844 = vmul.f32 %v843, %v838
        %845 = vrot.lane.b32.xlu0 %v818, 127
        %v846 = vpop.permute.xlu0 %845
        %s847 = vtos %v846
        %v848 = vstv %s847
        %v850 = vadd.f32 %v844, %v848
        %v851 = vld [vmem:[%s4] sm:$0xff]
        %v852 = vld [vmem:[%s4 + $0x8] sm:$0xff]
        %v853 = vld [vmem:[%s4 + $0x10] sm:$0xff]
        %v854 = vld [vmem:[%s4 + $0x18] sm:$0xff]
        %v855 = vld [vmem:[%s5] sm:$0x1]
        %v857 = vlaneseq
        %v858 = vshrl.u32 %v857, 7
        %v859 = vsub.s32 0, %v858
        %v860 = vrot.slane %v855, %v859
        %v863 = vsel %vm737, %v850, 0
        %865 = vmatprep.subr.mxu0 0.0
        %866 = vmatpush1.msra.mxu0 0.0
        %867 = vmatprep.subr.mxu0 0.0
        %868 = vmatpush1.msra.mxu0 0.0
        %869 = vmatprep.subr.mxu0 0.0
        %870 = vmatpush1.msra.mxu0 0.0
        %871 = vmatprep.subr.mxu0 0.0
        %872 = vmatpush1.msra.mxu0 0.0
        %873 = vmatprep.subr.mxu0 0.0
        %874 = vmatpush1.msra.mxu0 0.0
        %875 = vmatprep.subr.mxu0 0.0
        %876 = vmatpush1.msra.mxu0 0.0
        %877 = vmatprep.subr.mxu0 0.0
        %878 = vmatpush1.msra.mxu0 0.0
        %879 = vmatprep.subr.mxu0 0.0
        %880 = vmatpush1.msra.mxu0 0.0
        %881 = vmatprep.subr.mxu0 0.0
        %882 = vmatpush1.msra.mxu0 0.0
        %883 = vmatprep.subr.mxu0 0.0
        %884 = vmatpush1.msra.mxu0 0.0
        %885 = vmatprep.subr.mxu0 0.0
        %886 = vmatpush1.msra.mxu0 0.0
        %887 = vmatprep.subr.mxu0 0.0
        %888 = vmatpush1.msra.mxu0 0.0
        %889 = vmatprep.subr.mxu0 0.0
        %890 = vmatpush1.msra.mxu0 %v854
        %891 = vmatprep.subr.mxu0 0.0
        %892 = vmatpush1.msra.mxu0 %v853
        %893 = vmatprep.subr.mxu0 0.0
        %894 = vmatpush1.msra.mxu0 %v852
        %895 = vmatprep.subr.mxu0 0.0
        %896 = vmatpush1.msra.mxu0 %v851
        %897 = vmatprep.subr.mxu0 0.0
        %898 = vmatpush2.msra.mxu0 0.0
        %899 = vmatprep.subr.mxu0 0.0
        %900 = vmatpush2.msra.mxu0 0.0
        %901 = vmatprep.subr.mxu0 0.0
        %902 = vmatpush2.msra.mxu0 0.0
        %903 = vmatprep.subr.mxu0 0.0
        %904 = vmatpush2.msra.mxu0 0.0
        %905 = vmatprep.subr.mxu0 0.0
        %906 = vmatpush2.msra.mxu0 0.0
        %907 = vmatprep.subr.mxu0 0.0
        %908 = vmatpush2.msra.mxu0 0.0
        %909 = vmatprep.subr.mxu0 0.0
        %910 = vmatpush2.msra.mxu0 0.0
        %911 = vmatprep.subr.mxu0 0.0
        %912 = vmatpush2.msra.mxu0 0.0
        %913 = vmatprep.subr.mxu0 0.0
        %914 = vmatpush2.msra.mxu0 0.0
        %915 = vmatprep.subr.mxu0 0.0
        %916 = vmatpush2.msra.mxu0 0.0
        %917 = vmatprep.subr.mxu0 0.0
        %918 = vmatpush2.msra.mxu0 0.0
        %919 = vmatprep.subr.mxu0 0.0
        %920 = vmatpush2.msra.mxu0 0.0
        %921 = vmatprep.subr.mxu0 0.0
        %922 = vmatpush2.msra.mxu0 0.0
        %923 = vmatprep.subr.mxu0 0.0
        %924 = vmatpush2.msra.mxu0 0.0
        %925 = vmatprep.subr.mxu0 0.0
        %926 = vmatpush2.msra.mxu0 0.0
        %927 = vmatprep.subr.mxu0 0.0
        %928 = vmatpush2.msra.mxu0 0.0
        %929 = vmatprep.mubr.f32.mxu0 0.0
        %930 = vmatmul.mubr.f32.gmra.mxu0 %v863
        %v931 = vpop.f32.mrf.mxu0
        %v932 = vadd.f32 %v860, %v931
        %v933 = vpop.f32.mrf.mxu0
        %934 = vdwg.mxu0
        %936 = vrot.lane.b32.xlu0 %v932, 120
        %v937 = vpop.permute.xlu0 %936
        %938 = vrot.lane.b32.xlu0 %v932, 112
        %v939 = vpop.permute.xlu0 %938
        %940 = vrot.lane.b32.xlu0 %v932, 104
        %v941 = vpop.permute.xlu0 %940
        %v942 = vld [vmem:[#allocation11] sm:$0xff]
        %v943 = vld [vmem:[#allocation11 + $0x8] sm:$0xff]
        %v944 = vld [vmem:[#allocation11 + $0x10] sm:$0xff]
        %v945 = vld [vmem:[#allocation11 + $0x18] sm:$0xff]
        %v946 = vld [vmem:[%s11] sm:$0x1]
        %947 = vrot.lane.b32.xlu0 %v932, 96
        %v948 = vpop.permute.xlu0 %947
        %949 = vrot.lane.b32.xlu0 %v937, 96
        %v950 = vpop.permute.xlu0 %949
        %951 = vrot.lane.b32.xlu0 %v939, 96
        %v952 = vpop.permute.xlu0 %951
        %953 = vrot.lane.b32.xlu0 %v941, 96
        %v954 = vpop.permute.xlu0 %953
        %vm955 = vcmask 64512
        %v956 = vsel %vm955, %v932, 0
        %v958 = vsel %vm955, %v937, 0
        %v960 = vsel %vm955, %v939, 0
        %v962 = vsel %vm955, %v941, 0
        %v964 = vsel %vm955, %v948, 0
        %v966 = vsel %vm955, %v950, 0
        %v968 = vsel %vm955, %v952, 0
        %v970 = vsel %vm955, %v954, 0
        %972 = vmatprep.subr.mxu0 0.0
        %973 = vmatpush1.xpose.msra.mxu0 0.0
        %974 = vmatprep.subr.mxu0 0.0
        %975 = vmatpush1.xpose.msra.mxu0 0.0
        %976 = vmatprep.subr.mxu0 0.0
        %977 = vmatpush1.xpose.msra.mxu0 0.0
        %978 = vmatprep.subr.mxu0 0.0
        %979 = vmatpush1.xpose.msra.mxu0 0.0
        %980 = vmatprep.subr.mxu0 0.0
        %981 = vmatpush1.xpose.msra.mxu0 0.0
        %982 = vmatprep.subr.mxu0 0.0
        %983 = vmatpush1.xpose.msra.mxu0 0.0
        %984 = vmatprep.subr.mxu0 0.0
        %985 = vmatpush1.xpose.msra.mxu0 0.0
        %986 = vmatprep.subr.mxu0 0.0
        %987 = vmatpush1.xpose.msra.mxu0 0.0
        %988 = vmatprep.subr.mxu0 0.0
        %989 = vmatpush1.xpose.msra.mxu0 0.0
        %990 = vmatprep.subr.mxu0 0.0
        %991 = vmatpush1.xpose.msra.mxu0 0.0
        %992 = vmatprep.subr.mxu0 0.0
        %993 = vmatpush1.xpose.msra.mxu0 0.0
        %994 = vmatprep.subr.mxu0 0.0
        %995 = vmatpush1.xpose.msra.mxu0 0.0
        %996 = vmatprep.subr.mxu0 0.0
        %997 = vmatpush1.xpose.msra.mxu0 %v970
        %998 = vmatprep.subr.mxu0 0.0
        %999 = vmatpush1.xpose.msra.mxu0 %v968
        %1000 = vmatprep.subr.mxu0 0.0
        %1001 = vmatpush1.xpose.msra.mxu0 %v966
        %1002 = vmatprep.subr.mxu0 0.0
        %1003 = vmatpush1.xpose.msra.mxu0 %v964
        %1004 = vmatprep.subr.mxu0 0.0
        %1005 = vmatpush2.xpose.msra.mxu0 0.0
        %1006 = vmatprep.subr.mxu0 0.0
        %1007 = vmatpush2.xpose.msra.mxu0 0.0
        %1008 = vmatprep.subr.mxu0 0.0
        %1009 = vmatpush2.xpose.msra.mxu0 0.0
        %1010 = vmatprep.subr.mxu0 0.0
        %1011 = vmatpush2.xpose.msra.mxu0 0.0
        %1012 = vmatprep.subr.mxu0 0.0
        %1013 = vmatpush2.xpose.msra.mxu0 0.0
        %1014 = vmatprep.subr.mxu0 0.0
        %1015 = vmatpush2.xpose.msra.mxu0 0.0
        %1016 = vmatprep.subr.mxu0 0.0
        %1017 = vmatpush2.xpose.msra.mxu0 0.0
        %1018 = vmatprep.subr.mxu0 0.0
        %1019 = vmatpush2.xpose.msra.mxu0 0.0
        %1020 = vmatprep.subr.mxu0 0.0
        %1021 = vmatpush2.xpose.msra.mxu0 0.0
        %1022 = vmatprep.subr.mxu0 0.0
        %1023 = vmatpush2.xpose.msra.mxu0 0.0
        %1024 = vmatprep.subr.mxu0 0.0
        %1025 = vmatpush2.xpose.msra.mxu0 0.0
        %1026 = vmatprep.subr.mxu0 0.0
        %1027 = vmatpush2.xpose.msra.mxu0 0.0
        %1028 = vmatprep.subr.mxu0 0.0
        %1029 = vmatpush2.xpose.msra.mxu0 0.0
        %1030 = vmatprep.subr.mxu0 0.0
        %1031 = vmatpush2.xpose.msra.mxu0 0.0
        %1032 = vmatprep.subr.mxu0 0.0
        %1033 = vmatpush2.xpose.msra.mxu0 0.0
        %1034 = vmatprep.subr.mxu0 0.0
        %1035 = vmatpush2.xpose.msra.mxu0 0.0
        %1036 = vmatprep.mubr.f32.mxu0 0.0
        %1037 = vmatmul.mubr.f32.gmra.mxu0 %v956
        %v1038 = vpop.f32.mrf.mxu0
        %v1039 = vadd.f32 %v718, %v1038
        %v1040 = vpop.f32.mrf.mxu0
        %1041 = vmatprep.mubr.f32.mxu0 0.0
        %1042 = vmatmul.mubr.f32.gmra.mxu0 %v958
        %v1043 = vpop.f32.mrf.mxu0
        %v1044 = vadd.f32 %v719, %v1043
        %v1045 = vpop.f32.mrf.mxu0
        %1046 = vmatprep.mubr.f32.mxu0 0.0
        %1047 = vmatmul.mubr.f32.gmra.mxu0 %v960
        %v1048 = vpop.f32.mrf.mxu0
        %v1049 = vadd.f32 %v720, %v1048
        %v1050 = vpop.f32.mrf.mxu0
        %1051 = vmatprep.mubr.f32.mxu0 0.0
        %1052 = vmatmul.mubr.f32.gmra.mxu0 %v962
        %v1053 = vpop.f32.mrf.mxu0
        %v1054 = vadd.f32 %v721, %v1053
        %v1055 = vpop.f32.mrf.mxu0
        %1056 = vdwg.mxu0
        %v1057 = vsel %vm737, %v1039, -inf
        %1058 = vmax.xlane.f32.xlu0 %v1057
        %v1059 = vpop.xlane.xlu0 %1058
        %v1060 = vsel %vm737, %v1044, -inf
        %1061 = vmax.xlane.f32.xlu0 %v1060
        %v1062 = vpop.xlane.xlu0 %1061
        %v1063 = vsel %vm737, %v1049, -inf
        %1064 = vmax.xlane.f32.xlu0 %v1063
        %v1065 = vpop.xlane.xlu0 %1064
        %v1066 = vsel %vm737, %v1054, -inf
        %1067 = vmax.xlane.f32.xlu0 %v1066
        %v1068 = vpop.xlane.xlu0 %1067
        %v1069 = vsub.f32 %v1039, %v1059
        %v1070 = vsub.f32 %v1044, %v1062
        %v1071 = vsub.f32 %v1049, %v1065
        %v1072 = vsub.f32 %v1054, %v1068
        %v1073 = vmul.f32 %v1069, 1.442695
        %v1074 = vpow.pop %v1073
        %v1075 = vmul.f32 %v1070, 1.442695
        %v1076 = vpow.pop %v1075
        %v1077 = vmul.f32 %v1071, 1.442695
        %v1078 = vpow.pop %v1077
        %v1079 = vmul.f32 %v1072, 1.442695
        %v1080 = vpow.pop %v1079
        %v1081 = vsel %vm737, %v1074, 0.0
        %1082 = vadd.xlane.f32.xlu0 %v1081
        %v1083 = vpop.xlane.xlu0 %1082
        %v1084 = vsel %vm737, %v1076, 0.0
        %1085 = vadd.xlane.f32.xlu0 %v1084
        %v1086 = vpop.xlane.xlu0 %1085
        %v1087 = vsel %vm737, %v1078, 0.0
        %1088 = vadd.xlane.f32.xlu0 %v1087
        %v1089 = vpop.xlane.xlu0 %1088
        %v1090 = vsel %vm737, %v1080, 0.0
        %1091 = vadd.xlane.f32.xlu0 %v1090
        %v1092 = vpop.xlane.xlu0 %1091
        %v1093 = vrcp.pop %v1083
        %v1094 = vrcp.pop %v1086
        %v1095 = vrcp.pop %v1089
        %v1096 = vrcp.pop %v1092
        %v1097 = vmul.f32 %v1074, %v1093
        %v1098 = vmul.f32 %v1076, %v1094
        %v1099 = vmul.f32 %v1078, %v1095
        %v1100 = vmul.f32 %v1080, %v1096
        %1101 = vrot.lane.b32.xlu0 %v932, 64
        %v1102 = vpop.permute.xlu0 %1101
        %1103 = vrot.lane.b32.xlu0 %v937, 64
        %v1104 = vpop.permute.xlu0 %1103
        %1105 = vrot.lane.b32.xlu0 %v939, 64
        %v1106 = vpop.permute.xlu0 %1105
        %1107 = vrot.lane.b32.xlu0 %v941, 64
        %v1108 = vpop.permute.xlu0 %1107
        %v1114 = vsel %vm737, %v1097, 0
        %v1117 = vsel %vm737, %v1098, 0
        %v1120 = vsel %vm737, %v1099, 0
        %v1123 = vsel %vm737, %v1100, 0
        %1125 = vmatprep.subr.mxu0 0.0
        %1126 = vmatpush1.msra.mxu0 0.0
        %1127 = vmatprep.subr.mxu0 0.0
        %1128 = vmatpush1.msra.mxu0 0.0
        %1129 = vmatprep.subr.mxu0 0.0
        %1130 = vmatpush1.msra.mxu0 0.0
        %1131 = vmatprep.subr.mxu0 0.0
        %1132 = vmatpush1.msra.mxu0 0.0
        %1133 = vmatprep.subr.mxu0 0.0
        %1134 = vmatpush1.msra.mxu0 0.0
        %1135 = vmatprep.subr.mxu0 0.0
        %1136 = vmatpush1.msra.mxu0 0.0
        %1137 = vmatprep.subr.mxu0 0.0
        %1138 = vmatpush1.msra.mxu0 0.0
        %1139 = vmatprep.subr.mxu0 0.0
        %1140 = vmatpush1.msra.mxu0 0.0
        %1141 = vmatprep.subr.mxu0 0.0
        %1142 = vmatpush1.msra.mxu0 0.0
        %1143 = vmatprep.subr.mxu0 0.0
        %1144 = vmatpush1.msra.mxu0 0.0
        %1145 = vmatprep.subr.mxu0 0.0
        %1146 = vmatpush1.msra.mxu0 0.0
        %1147 = vmatprep.subr.mxu0 0.0
        %1148 = vmatpush1.msra.mxu0 0.0
        %1149 = vmatprep.subr.mxu0 0.0
        %1150 = vmatpush1.msra.mxu0 %v1108
        %1151 = vmatprep.subr.mxu0 0.0
        %1152 = vmatpush1.msra.mxu0 %v1106
        %1153 = vmatprep.subr.mxu0 0.0
        %1154 = vmatpush1.msra.mxu0 %v1104
        %1155 = vmatprep.subr.mxu0 0.0
        %1156 = vmatpush1.msra.mxu0 %v1102
        %1157 = vmatprep.subr.mxu0 0.0
        %1158 = vmatpush2.msra.mxu0 0.0
        %1159 = vmatprep.subr.mxu0 0.0
        %1160 = vmatpush2.msra.mxu0 0.0
        %1161 = vmatprep.subr.mxu0 0.0
        %1162 = vmatpush2.msra.mxu0 0.0
        %1163 = vmatprep.subr.mxu0 0.0
        %1164 = vmatpush2.msra.mxu0 0.0
        %1165 = vmatprep.subr.mxu0 0.0
        %1166 = vmatpush2.msra.mxu0 0.0
        %1167 = vmatprep.subr.mxu0 0.0
        %1168 = vmatpush2.msra.mxu0 0.0
        %1169 = vmatprep.subr.mxu0 0.0
        %1170 = vmatpush2.msra.mxu0 0.0
        %1171 = vmatprep.subr.mxu0 0.0
        %1172 = vmatpush2.msra.mxu0 0.0
        %1173 = vmatprep.subr.mxu0 0.0
        %1174 = vmatpush2.msra.mxu0 0.0
        %1175 = vmatprep.subr.mxu0 0.0
        %1176 = vmatpush2.msra.mxu0 0.0
        %1177 = vmatprep.subr.mxu0 0.0
        %1178 = vmatpush2.msra.mxu0 0.0
        %1179 = vmatprep.subr.mxu0 0.0
        %1180 = vmatpush2.msra.mxu0 0.0
        %1181 = vmatprep.subr.mxu0 0.0
        %1182 = vmatpush2.msra.mxu0 0.0
        %1183 = vmatprep.subr.mxu0 0.0
        %1184 = vmatpush2.msra.mxu0 0.0
        %1185 = vmatprep.subr.mxu0 0.0
        %1186 = vmatpush2.msra.mxu0 0.0
        %1187 = vmatprep.subr.mxu0 0.0
        %1188 = vmatpush2.msra.mxu0 0.0
        %1189 = vmatprep.mubr.f32.mxu0 0.0
        %1190 = vmatmul.mubr.f32.gmra.mxu0 %v1114
        %v1191 = vpop.f32.mrf.mxu0
        %v1192 = vadd.f32 0.0, %v1191
        %v1193 = vpop.f32.mrf.mxu0
        %1194 = vmatprep.mubr.f32.mxu0 0.0
        %1195 = vmatmul.mubr.f32.gmra.mxu0 %v1117
        %v1196 = vpop.f32.mrf.mxu0
        %v1197 = vadd.f32 0.0, %v1196
        %v1198 = vpop.f32.mrf.mxu0
        %1199 = vmatprep.mubr.f32.mxu0 0.0
        %1200 = vmatmul.mubr.f32.gmra.mxu0 %v1120
        %v1201 = vpop.f32.mrf.mxu0
        %v1202 = vadd.f32 0.0, %v1201
        %v1203 = vpop.f32.mrf.mxu0
        %1204 = vmatprep.mubr.f32.mxu0 0.0
        %1205 = vmatmul.mubr.f32.gmra.mxu0 %v1123
        %v1206 = vpop.f32.mrf.mxu0
        %v1207 = vadd.f32 0.0, %v1206
        %v1208 = vpop.f32.mrf.mxu0
        %1209 = vdwg.mxu0
        %1211 = vrot.lane.b32.xlu0 %v1197, 8
        %v1212 = vpop.permute.xlu0 %1211
        %1215 = vrot.lane.b32.xlu0 %v1202, 16
        %v1216 = vpop.permute.xlu0 %1215
        %1219 = vrot.lane.b32.xlu0 %v1207, 24
        %v1220 = vpop.permute.xlu0 %1219
        %v1222 = vsel %vm955, %v1192, %v1212
        %vm1223 = vcmask 130048
        %v1224 = vsel %vm1223, %v1222, %v1216
        %vm1225 = vcmask 195584
        %v1226 = vsel %vm1225, %v1224, %v1220
        %v1228 = vlaneseq
        %v1229 = vshrl.u32 %v1228, 7
        %v1230 = vsub.s32 0, %v1229
        %v1231 = vrot.slane %v946, %v1230
        %v1234 = vsel %vm737, %v1226, 0
        %1236 = vmatprep.subr.mxu0 0.0
        %1237 = vmatpush1.msra.mxu0 0.0
        %1238 = vmatprep.subr.mxu0 0.0
        %1239 = vmatpush1.msra.mxu0 0.0
        %1240 = vmatprep.subr.mxu0 0.0
        %1241 = vmatpush1.msra.mxu0 0.0
        %1242 = vmatprep.subr.mxu0 0.0
        %1243 = vmatpush1.msra.mxu0 0.0
        %1244 = vmatprep.subr.mxu0 0.0
        %1245 = vmatpush1.msra.mxu0 0.0
        %1246 = vmatprep.subr.mxu0 0.0
        %1247 = vmatpush1.msra.mxu0 0.0
        %1248 = vmatprep.subr.mxu0 0.0
        %1249 = vmatpush1.msra.mxu0 0.0
        %1250 = vmatprep.subr.mxu0 0.0
        %1251 = vmatpush1.msra.mxu0 0.0
        %1252 = vmatprep.subr.mxu0 0.0
        %1253 = vmatpush1.msra.mxu0 0.0
        %1254 = vmatprep.subr.mxu0 0.0
        %1255 = vmatpush1.msra.mxu0 0.0
        %1256 = vmatprep.subr.mxu0 0.0
        %1257 = vmatpush1.msra.mxu0 0.0
        %1258 = vmatprep.subr.mxu0 0.0
        %1259 = vmatpush1.msra.mxu0 0.0
        %1260 = vmatprep.subr.mxu0 0.0
        %1261 = vmatpush1.msra.mxu0 %v945
        %1262 = vmatprep.subr.mxu0 0.0
        %1263 = vmatpush1.msra.mxu0 %v944
        %1264 = vmatprep.subr.mxu0 0.0
        %1265 = vmatpush1.msra.mxu0 %v943
        %1266 = vmatprep.subr.mxu0 0.0
        %1267 = vmatpush1.msra.mxu0 %v942
        %1268 = vmatprep.subr.mxu0 0.0
        %1269 = vmatpush2.msra.mxu0 0.0
        %1270 = vmatprep.subr.mxu0 0.0
        %1271 = vmatpush2.msra.mxu0 0.0
        %1272 = vmatprep.subr.mxu0 0.0
        %1273 = vmatpush2.msra.mxu0 0.0
        %1274 = vmatprep.subr.mxu0 0.0
        %1275 = vmatpush2.msra.mxu0 0.0
        %1276 = vmatprep.subr.mxu0 0.0
        %1277 = vmatpush2.msra.mxu0 0.0
        %1278 = vmatprep.subr.mxu0 0.0
        %1279 = vmatpush2.msra.mxu0 0.0
        %1280 = vmatprep.subr.mxu0 0.0
        %1281 = vmatpush2.msra.mxu0 0.0
        %1282 = vmatprep.subr.mxu0 0.0
        %1283 = vmatpush2.msra.mxu0 0.0
        %1284 = vmatprep.subr.mxu0 0.0
        %1285 = vmatpush2.msra.mxu0 0.0
        %1286 = vmatprep.subr.mxu0 0.0
        %1287 = vmatpush2.msra.mxu0 0.0
        %1288 = vmatprep.subr.mxu0 0.0
        %1289 = vmatpush2.msra.mxu0 0.0
        %1290 = vmatprep.subr.mxu0 0.0
        %1291 = vmatpush2.msra.mxu0 0.0
        %1292 = vmatprep.subr.mxu0 0.0
        %1293 = vmatpush2.msra.mxu0 0.0
        %1294 = vmatprep.subr.mxu0 0.0
        %1295 = vmatpush2.msra.mxu0 0.0
        %1296 = vmatprep.subr.mxu0 0.0
        %1297 = vmatpush2.msra.mxu0 0.0
        %1298 = vmatprep.subr.mxu0 0.0
        %1299 = vmatpush2.msra.mxu0 0.0
        %1300 = vmatprep.mubr.f32.mxu0 0.0
        %1301 = vmatmul.mubr.f32.gmra.mxu0 %v1234
        %v1302 = vpop.f32.mrf.mxu0
        %v1303 = vadd.f32 %v1231, %v1302
        %v1304 = vpop.f32.mrf.mxu0
        %1305 = vdwg.mxu0
        %v1306 = vadd.f32 %v716, %v1303
        %v1307 = vld [vmem:[%s16 + $0x1] sm:$0x1]
        %v1308 = vsel %vm737, %v1306, 0.0
        %1309 = vadd.xlane.f32.xlu0 %v1308
        %v1310 = vpop.xlane.xlu0 %1309
        %v1311 = vmul.f32 %v1310, %v822
        %v1312 = vsub.f32 %v1306, %v1311
        %v1313 = vmul.f32 %v1312, %v1312
        %v1314 = vsel %vm737, %v1313, 0.0
        %1315 = vadd.xlane.f32.xlu0 %v1314
        %v1316 = vpop.xlane.xlu0 %1315
        %v1317 = vmul.f32 %v1316, 0.032258064
        %v1318 = vrsqrt.pop %v1317
        %v1319 = vmul.f32 %v1317, %v1318
        %vm1320 = vcmp.eq.f32.partialorder %v1317, inf
        %v1321 = vsel %vm1320, %v1317, %v1319
        %vm1322 = vcmp.eq.f32.partialorder %v1317, 0.0
        %v1323 = vand.u32 %v1317, 2147483648
        %v1324 = vsel %vm1322, %v1323, %v1321
        %v1325 = vadd.f32 %v1324, 1e-06
        %v1326 = vrcp.pop %v1325
        %s1328 = vtos %v1307
        %v1329 = vstv %s1328
        %v1331 = vmul.f32 %v1329, %v1312
        %v1332 = vmul.f32 %v1331, %v1326
        %1333 = vrot.lane.b32.xlu0 %v1307, 127
        %v1334 = vpop.permute.xlu0 %1333
        %s1335 = vtos %v1334
        %v1336 = vstv %s1335
        %v1338 = vadd.f32 %v1332, %v1336
        %v1339 = vld [vmem:[#allocation8] sm:$0xff]
        %v1340 = vld [vmem:[#allocation8 + $0x8] sm:$0xff]
        %v1341 = vld [vmem:[#allocation8 + $0x10] sm:$0xff]
        %v1342 = vld [vmem:[#allocation8 + $0x18] sm:$0xff]
        %v1343 = vld [vmem:[%s7] sm:$0x1]
        %v1345 = vlaneseq
        %v1346 = vshrl.u32 %v1345, 7
        %v1347 = vsub.s32 0, %v1346
        %v1348 = vrot.slane %v1343, %v1347
        %v1351 = vsel %vm737, %v1338, 0
        %1353 = vmatprep.subr.mxu0 0.0
        %1354 = vmatpush1.msra.mxu0 0.0
        %1355 = vmatprep.subr.mxu0 0.0
        %1356 = vmatpush1.msra.mxu0 0.0
        %1357 = vmatprep.subr.mxu0 0.0
        %1358 = vmatpush1.msra.mxu0 0.0
        %1359 = vmatprep.subr.mxu0 0.0
        %1360 = vmatpush1.msra.mxu0 0.0
        %1361 = vmatprep.subr.mxu0 0.0
        %1362 = vmatpush1.msra.mxu0 0.0
        %1363 = vmatprep.subr.mxu0 0.0
        %1364 = vmatpush1.msra.mxu0 0.0
        %1365 = vmatprep.subr.mxu0 0.0
        %1366 = vmatpush1.msra.mxu0 0.0
        %1367 = vmatprep.subr.mxu0 0.0
        %1368 = vmatpush1.msra.mxu0 0.0
        %1369 = vmatprep.subr.mxu0 0.0
        %1370 = vmatpush1.msra.mxu0 0.0
        %1371 = vmatprep.subr.mxu0 0.0
        %1372 = vmatpush1.msra.mxu0 0.0
        %1373 = vmatprep.subr.mxu0 0.0
        %1374 = vmatpush1.msra.mxu0 0.0
        %1375 = vmatprep.subr.mxu0 0.0
        %1376 = vmatpush1.msra.mxu0 0.0
        %1377 = vmatprep.subr.mxu0 0.0
        %1378 = vmatpush1.msra.mxu0 %v1342
        %1379 = vmatprep.subr.mxu0 0.0
        %1380 = vmatpush1.msra.mxu0 %v1341
        %1381 = vmatprep.subr.mxu0 0.0
        %1382 = vmatpush1.msra.mxu0 %v1340
        %1383 = vmatprep.subr.mxu0 0.0
        %1384 = vmatpush1.msra.mxu0 %v1339
        %1385 = vmatprep.subr.mxu0 0.0
        %1386 = vmatpush2.msra.mxu0 0.0
        %1387 = vmatprep.subr.mxu0 0.0
        %1388 = vmatpush2.msra.mxu0 0.0
        %1389 = vmatprep.subr.mxu0 0.0
        %1390 = vmatpush2.msra.mxu0 0.0
        %1391 = vmatprep.subr.mxu0 0.0
        %1392 = vmatpush2.msra.mxu0 0.0
        %1393 = vmatprep.subr.mxu0 0.0
        %1394 = vmatpush2.msra.mxu0 0.0
        %1395 = vmatprep.subr.mxu0 0.0
        %1396 = vmatpush2.msra.mxu0 0.0
        %1397 = vmatprep.subr.mxu0 0.0
        %1398 = vmatpush2.msra.mxu0 0.0
        %1399 = vmatprep.subr.mxu0 0.0
        %1400 = vmatpush2.msra.mxu0 0.0
        %1401 = vmatprep.subr.mxu0 0.0
        %1402 = vmatpush2.msra.mxu0 0.0
        %1403 = vmatprep.subr.mxu0 0.0
        %1404 = vmatpush2.msra.mxu0 0.0
        %1405 = vmatprep.subr.mxu0 0.0
        %1406 = vmatpush2.msra.mxu0 0.0
        %1407 = vmatprep.subr.mxu0 0.0
        %1408 = vmatpush2.msra.mxu0 0.0
        %1409 = vmatprep.subr.mxu0 0.0
        %1410 = vmatpush2.msra.mxu0 0.0
        %1411 = vmatprep.subr.mxu0 0.0
        %1412 = vmatpush2.msra.mxu0 0.0
        %1413 = vmatprep.subr.mxu0 0.0
        %1414 = vmatpush2.msra.mxu0 0.0
        %1415 = vmatprep.subr.mxu0 0.0
        %1416 = vmatpush2.msra.mxu0 0.0
        %1417 = vmatprep.mubr.f32.mxu0 0.0
        %1418 = vmatmul.mubr.f32.gmra.mxu0 %v1351
        %v1419 = vpop.f32.mrf.mxu0
        %v1420 = vadd.f32 %v1348, %v1419
        %v1421 = vpop.f32.mrf.mxu0
        %1422 = vdwg.mxu0
        %1424 = vrot.lane.b32.xlu0 %v1420, 120
        %v1425 = vpop.permute.xlu0 %1424
        %1426 = vrot.lane.b32.xlu0 %v1420, 112
        %v1427 = vpop.permute.xlu0 %1426
        %1428 = vrot.lane.b32.xlu0 %v1420, 104
        %v1429 = vpop.permute.xlu0 %1428
        %s1430 = scalar_lea.vmem [#allocation11], 32
        %v1431 = vld [vmem:[%s1430] sm:$0xff]
        %v1432 = vld [vmem:[%s1430 + $0x8] sm:$0xff]
        %v1433 = vld [vmem:[%s1430 + $0x10] sm:$0xff]
        %v1434 = vld [vmem:[%s1430 + $0x18] sm:$0xff]
        %s1435 = scalar_lea.vmem %s11, 1
        %v1436 = vld [vmem:[%s1435] sm:$0x1]
        %v1437 = vsel %vm955, %v1420, 0
        %v1439 = vsel %vm955, %v1425, 0
        %v1441 = vsel %vm955, %v1427, 0
        %v1443 = vsel %vm955, %v1429, 0
        %v1445 = vsel %vm955, %v808, 0
        %v1447 = vsel %vm955, %v813, 0
        %v1449 = vsel %vm955, %v815, 0
        %v1451 = vsel %vm955, %v817, 0
        %1453 = vmatprep.subr.mxu0 0.0
        %1454 = vmatpush1.xpose.msra.mxu0 0.0
        %1455 = vmatprep.subr.mxu0 0.0
        %1456 = vmatpush1.xpose.msra.mxu0 0.0
        %1457 = vmatprep.subr.mxu0 0.0
        %1458 = vmatpush1.xpose.msra.mxu0 0.0
        %1459 = vmatprep.subr.mxu0 0.0
        %1460 = vmatpush1.xpose.msra.mxu0 0.0
        %1461 = vmatprep.subr.mxu0 0.0
        %1462 = vmatpush1.xpose.msra.mxu0 0.0
        %1463 = vmatprep.subr.mxu0 0.0
        %1464 = vmatpush1.xpose.msra.mxu0 0.0
        %1465 = vmatprep.subr.mxu0 0.0
        %1466 = vmatpush1.xpose.msra.mxu0 0.0
        %1467 = vmatprep.subr.mxu0 0.0
        %1468 = vmatpush1.xpose.msra.mxu0 0.0
        %1469 = vmatprep.subr.mxu0 0.0
        %1470 = vmatpush1.xpose.msra.mxu0 0.0
        %1471 = vmatprep.subr.mxu0 0.0
        %1472 = vmatpush1.xpose.msra.mxu0 0.0
        %1473 = vmatprep.subr.mxu0 0.0
        %1474 = vmatpush1.xpose.msra.mxu0 0.0
        %1475 = vmatprep.subr.mxu0 0.0
        %1476 = vmatpush1.xpose.msra.mxu0 0.0
        %1477 = vmatprep.subr.mxu0 0.0
        %1478 = vmatpush1.xpose.msra.mxu0 %v1451
        %1479 = vmatprep.subr.mxu0 0.0
        %1480 = vmatpush1.xpose.msra.mxu0 %v1449
        %1481 = vmatprep.subr.mxu0 0.0
        %1482 = vmatpush1.xpose.msra.mxu0 %v1447
        %1483 = vmatprep.subr.mxu0 0.0
        %1484 = vmatpush1.xpose.msra.mxu0 %v1445
        %1485 = vmatprep.subr.mxu0 0.0
        %1486 = vmatpush2.xpose.msra.mxu0 0.0
        %1487 = vmatprep.subr.mxu0 0.0
        %1488 = vmatpush2.xpose.msra.mxu0 0.0
        %1489 = vmatprep.subr.mxu0 0.0
        %1490 = vmatpush2.xpose.msra.mxu0 0.0
        %1491 = vmatprep.subr.mxu0 0.0
        %1492 = vmatpush2.xpose.msra.mxu0 0.0
        %1493 = vmatprep.subr.mxu0 0.0
        %1494 = vmatpush2.xpose.msra.mxu0 0.0
        %1495 = vmatprep.subr.mxu0 0.0
        %1496 = vmatpush2.xpose.msra.mxu0 0.0
        %1497 = vmatprep.subr.mxu0 0.0
        %1498 = vmatpush2.xpose.msra.mxu0 0.0
        %1499 = vmatprep.subr.mxu0 0.0
        %1500 = vmatpush2.xpose.msra.mxu0 0.0
        %1501 = vmatprep.subr.mxu0 0.0
        %1502 = vmatpush2.xpose.msra.mxu0 0.0
        %1503 = vmatprep.subr.mxu0 0.0
        %1504 = vmatpush2.xpose.msra.mxu0 0.0
        %1505 = vmatprep.subr.mxu0 0.0
        %1506 = vmatpush2.xpose.msra.mxu0 0.0
        %1507 = vmatprep.subr.mxu0 0.0
        %1508 = vmatpush2.xpose.msra.mxu0 0.0
        %1509 = vmatprep.subr.mxu0 0.0
        %1510 = vmatpush2.xpose.msra.mxu0 0.0
        %1511 = vmatprep.subr.mxu0 0.0
        %1512 = vmatpush2.xpose.msra.mxu0 0.0
        %1513 = vmatprep.subr.mxu0 0.0
        %1514 = vmatpush2.xpose.msra.mxu0 0.0
        %1515 = vmatprep.subr.mxu0 0.0
        %1516 = vmatpush2.xpose.msra.mxu0 0.0
        %1517 = vmatprep.mubr.f32.mxu0 0.0
        %1518 = vmatmul.mubr.f32.gmra.mxu0 %v1437
        %v1519 = vpop.f32.mrf.mxu0
        %v1520 = vadd.f32 %v722, %v1519
        %v1521 = vpop.f32.mrf.mxu0
        %1522 = vmatprep.mubr.f32.mxu0 0.0
        %1523 = vmatmul.mubr.f32.gmra.mxu0 %v1439
        %v1524 = vpop.f32.mrf.mxu0
        %v1525 = vadd.f32 %v723, %v1524
        %v1526 = vpop.f32.mrf.mxu0
        %1527 = vmatprep.mubr.f32.mxu0 0.0
        %1528 = vmatmul.mubr.f32.gmra.mxu0 %v1441
        %v1529 = vpop.f32.mrf.mxu0
        %v1530 = vadd.f32 %v724, %v1529
        %v1531 = vpop.f32.mrf.mxu0
        %1532 = vmatprep.mubr.f32.mxu0 0.0
        %1533 = vmatmul.mubr.f32.gmra.mxu0 %v1443
        %v1534 = vpop.f32.mrf.mxu0
        %v1535 = vadd.f32 %v725, %v1534
        %v1536 = vpop.f32.mrf.mxu0
        %1537 = vdwg.mxu0
        %v1538 = vsel %vm737, %v1520, -inf
        %1539 = vmax.xlane.f32.xlu0 %v1538
        %v1540 = vpop.xlane.xlu0 %1539
        %v1541 = vsel %vm737, %v1525, -inf
        %1542 = vmax.xlane.f32.xlu0 %v1541
        %v1543 = vpop.xlane.xlu0 %1542
        %v1544 = vsel %vm737, %v1530, -inf
        %1545 = vmax.xlane.f32.xlu0 %v1544
        %v1546 = vpop.xlane.xlu0 %1545
        %v1547 = vsel %vm737, %v1535, -inf
        %1548 = vmax.xlane.f32.xlu0 %v1547
        %v1549 = vpop.xlane.xlu0 %1548
        %v1550 = vsub.f32 %v1520, %v1540
        %v1551 = vsub.f32 %v1525, %v1543
        %v1552 = vsub.f32 %v1530, %v1546
        %v1553 = vsub.f32 %v1535, %v1549
        %v1554 = vmul.f32 %v1550, 1.442695
        %v1555 = vpow.pop %v1554
        %v1556 = vmul.f32 %v1551, 1.442695
        %v1557 = vpow.pop %v1556
        %v1558 = vmul.f32 %v1552, 1.442695
        %v1559 = vpow.pop %v1558
        %v1560 = vmul.f32 %v1553, 1.442695
        %v1561 = vpow.pop %v1560
        %v1562 = vsel %vm737, %v1555, 0.0
        %1563 = vadd.xlane.f32.xlu0 %v1562
        %v1564 = vpop.xlane.xlu0 %1563
        %v1565 = vsel %vm737, %v1557, 0.0
        %1566 = vadd.xlane.f32.xlu0 %v1565
        %v1567 = vpop.xlane.xlu0 %1566
        %v1568 = vsel %vm737, %v1559, 0.0
        %1569 = vadd.xlane.f32.xlu0 %v1568
        %v1570 = vpop.xlane.xlu0 %1569
        %v1571 = vsel %vm737, %v1561, 0.0
        %1572 = vadd.xlane.f32.xlu0 %v1571
        %v1573 = vpop.xlane.xlu0 %1572
        %v1574 = vrcp.pop %v1564
        %v1575 = vrcp.pop %v1567
        %v1576 = vrcp.pop %v1570
        %v1577 = vrcp.pop %v1573
        %v1578 = vmul.f32 %v1555, %v1574
        %v1579 = vmul.f32 %v1557, %v1575
        %v1580 = vmul.f32 %v1559, %v1576
        %v1581 = vmul.f32 %v1561, %v1577
        %1582 = vrot.lane.b32.xlu0 %v808, 96
        %v1583 = vpop.permute.xlu0 %1582
        %1584 = vrot.lane.b32.xlu0 %v813, 96
        %v1585 = vpop.permute.xlu0 %1584
        %1586 = vrot.lane.b32.xlu0 %v815, 96
        %v1587 = vpop.permute.xlu0 %1586
        %1588 = vrot.lane.b32.xlu0 %v817, 96
        %v1589 = vpop.permute.xlu0 %1588
        %v1595 = vsel %vm737, %v1578, 0
        %v1598 = vsel %vm737, %v1579, 0
        %v1601 = vsel %vm737, %v1580, 0
        %v1604 = vsel %vm737, %v1581, 0
        %1606 = vmatprep.subr.mxu0 0.0
        %1607 = vmatpush1.msra.mxu0 0.0
        %1608 = vmatprep.subr.mxu0 0.0
        %1609 = vmatpush1.msra.mxu0 0.0
        %1610 = vmatprep.subr.mxu0 0.0
        %1611 = vmatpush1.msra.mxu0 0.0
        %1612 = vmatprep.subr.mxu0 0.0
        %1613 = vmatpush1.msra.mxu0 0.0
        %1614 = vmatprep.subr.mxu0 0.0
        %1615 = vmatpush1.msra.mxu0 0.0
        %1616 = vmatprep.subr.mxu0 0.0
        %1617 = vmatpush1.msra.mxu0 0.0
        %1618 = vmatprep.subr.mxu0 0.0
        %1619 = vmatpush1.msra.mxu0 0.0
        %1620 = vmatprep.subr.mxu0 0.0
        %1621 = vmatpush1.msra.mxu0 0.0
        %1622 = vmatprep.subr.mxu0 0.0
        %1623 = vmatpush1.msra.mxu0 0.0
        %1624 = vmatprep.subr.mxu0 0.0
        %1625 = vmatpush1.msra.mxu0 0.0
        %1626 = vmatprep.subr.mxu0 0.0
        %1627 = vmatpush1.msra.mxu0 0.0
        %1628 = vmatprep.subr.mxu0 0.0
        %1629 = vmatpush1.msra.mxu0 0.0
        %1630 = vmatprep.subr.mxu0 0.0
        %1631 = vmatpush1.msra.mxu0 %v1589
        %1632 = vmatprep.subr.mxu0 0.0
        %1633 = vmatpush1.msra.mxu0 %v1587
        %1634 = vmatprep.subr.mxu0 0.0
        %1635 = vmatpush1.msra.mxu0 %v1585
        %1636 = vmatprep.subr.mxu0 0.0
        %1637 = vmatpush1.msra.mxu0 %v1583
        %1638 = vmatprep.subr.mxu0 0.0
        %1639 = vmatpush2.msra.mxu0 0.0
        %1640 = vmatprep.subr.mxu0 0.0
        %1641 = vmatpush2.msra.mxu0 0.0
        %1642 = vmatprep.subr.mxu0 0.0
        %1643 = vmatpush2.msra.mxu0 0.0
        %1644 = vmatprep.subr.mxu0 0.0
        %1645 = vmatpush2.msra.mxu0 0.0
        %1646 = vmatprep.subr.mxu0 0.0
        %1647 = vmatpush2.msra.mxu0 0.0
        %1648 = vmatprep.subr.mxu0 0.0
        %1649 = vmatpush2.msra.mxu0 0.0
        %1650 = vmatprep.subr.mxu0 0.0
        %1651 = vmatpush2.msra.mxu0 0.0
        %1652 = vmatprep.subr.mxu0 0.0
        %1653 = vmatpush2.msra.mxu0 0.0
        %1654 = vmatprep.subr.mxu0 0.0
        %1655 = vmatpush2.msra.mxu0 0.0
        %1656 = vmatprep.subr.mxu0 0.0
        %1657 = vmatpush2.msra.mxu0 0.0
        %1658 = vmatprep.subr.mxu0 0.0
        %1659 = vmatpush2.msra.mxu0 0.0
        %1660 = vmatprep.subr.mxu0 0.0
        %1661 = vmatpush2.msra.mxu0 0.0
        %1662 = vmatprep.subr.mxu0 0.0
        %1663 = vmatpush2.msra.mxu0 0.0
        %1664 = vmatprep.subr.mxu0 0.0
        %1665 = vmatpush2.msra.mxu0 0.0
        %1666 = vmatprep.subr.mxu0 0.0
        %1667 = vmatpush2.msra.mxu0 0.0
        %1668 = vmatprep.subr.mxu0 0.0
        %1669 = vmatpush2.msra.mxu0 0.0
        %1670 = vmatprep.mubr.f32.mxu0 0.0
        %1671 = vmatmul.mubr.f32.gmra.mxu0 %v1595
        %v1672 = vpop.f32.mrf.mxu0
        %v1673 = vadd.f32 0.0, %v1672
        %v1674 = vpop.f32.mrf.mxu0
        %1675 = vmatprep.mubr.f32.mxu0 0.0
        %1676 = vmatmul.mubr.f32.gmra.mxu0 %v1598
        %v1677 = vpop.f32.mrf.mxu0
        %v1678 = vadd.f32 0.0, %v1677
        %v1679 = vpop.f32.mrf.mxu0
        %1680 = vmatprep.mubr.f32.mxu0 0.0
        %1681 = vmatmul.mubr.f32.gmra.mxu0 %v1601
        %v1682 = vpop.f32.mrf.mxu0
        %v1683 = vadd.f32 0.0, %v1682
        %v1684 = vpop.f32.mrf.mxu0
        %1685 = vmatprep.mubr.f32.mxu0 0.0
        %1686 = vmatmul.mubr.f32.gmra.mxu0 %v1604
        %v1687 = vpop.f32.mrf.mxu0
        %v1688 = vadd.f32 0.0, %v1687
        %v1689 = vpop.f32.mrf.mxu0
        %1690 = vdwg.mxu0
        %1692 = vrot.lane.b32.xlu0 %v1678, 8
        %v1693 = vpop.permute.xlu0 %1692
        %1696 = vrot.lane.b32.xlu0 %v1683, 16
        %v1697 = vpop.permute.xlu0 %1696
        %1700 = vrot.lane.b32.xlu0 %v1688, 24
        %v1701 = vpop.permute.xlu0 %1700
        %v1703 = vsel %vm955, %v1673, %v1693
        %v1704 = vsel %vm1223, %v1703, %v1697
        %v1705 = vsel %vm1225, %v1704, %v1701
        %v1707 = vlaneseq
        %v1708 = vshrl.u32 %v1707, 7
        %v1709 = vsub.s32 0, %v1708
        %v1710 = vrot.slane %v1436, %v1709
        %v1713 = vsel %vm737, %v1705, 0
        %1715 = vmatprep.subr.mxu0 0.0
        %1716 = vmatpush1.msra.mxu0 0.0
        %1717 = vmatprep.subr.mxu0 0.0
        %1718 = vmatpush1.msra.mxu0 0.0
        %1719 = vmatprep.subr.mxu0 0.0
        %1720 = vmatpush1.msra.mxu0 0.0
        %1721 = vmatprep.subr.mxu0 0.0
        %1722 = vmatpush1.msra.mxu0 0.0
        %1723 = vmatprep.subr.mxu0 0.0
        %1724 = vmatpush1.msra.mxu0 0.0
        %1725 = vmatprep.subr.mxu0 0.0
        %1726 = vmatpush1.msra.mxu0 0.0
        %1727 = vmatprep.subr.mxu0 0.0
        %1728 = vmatpush1.msra.mxu0 0.0
        %1729 = vmatprep.subr.mxu0 0.0
        %1730 = vmatpush1.msra.mxu0 0.0
        %1731 = vmatprep.subr.mxu0 0.0
        %1732 = vmatpush1.msra.mxu0 0.0
        %1733 = vmatprep.subr.mxu0 0.0
        %1734 = vmatpush1.msra.mxu0 0.0
        %1735 = vmatprep.subr.mxu0 0.0
        %1736 = vmatpush1.msra.mxu0 0.0
        %1737 = vmatprep.subr.mxu0 0.0
        %1738 = vmatpush1.msra.mxu0 0.0
        %1739 = vmatprep.subr.mxu0 0.0
        %1740 = vmatpush1.msra.mxu0 %v1434
        %1741 = vmatprep.subr.mxu0 0.0
        %1742 = vmatpush1.msra.mxu0 %v1433
        %1743 = vmatprep.subr.mxu0 0.0
        %1744 = vmatpush1.msra.mxu0 %v1432
        %1745 = vmatprep.subr.mxu0 0.0
        %1746 = vmatpush1.msra.mxu0 %v1431
        %1747 = vmatprep.subr.mxu0 0.0
        %1748 = vmatpush2.msra.mxu0 0.0
        %1749 = vmatprep.subr.mxu0 0.0
        %1750 = vmatpush2.msra.mxu0 0.0
        %1751 = vmatprep.subr.mxu0 0.0
        %1752 = vmatpush2.msra.mxu0 0.0
        %1753 = vmatprep.subr.mxu0 0.0
        %1754 = vmatpush2.msra.mxu0 0.0
        %1755 = vmatprep.subr.mxu0 0.0
        %1756 = vmatpush2.msra.mxu0 0.0
        %1757 = vmatprep.subr.mxu0 0.0
        %1758 = vmatpush2.msra.mxu0 0.0
        %1759 = vmatprep.subr.mxu0 0.0
        %1760 = vmatpush2.msra.mxu0 0.0
        %1761 = vmatprep.subr.mxu0 0.0
        %1762 = vmatpush2.msra.mxu0 0.0
        %1763 = vmatprep.subr.mxu0 0.0
        %1764 = vmatpush2.msra.mxu0 0.0
        %1765 = vmatprep.subr.mxu0 0.0
        %1766 = vmatpush2.msra.mxu0 0.0
        %1767 = vmatprep.subr.mxu0 0.0
        %1768 = vmatpush2.msra.mxu0 0.0
        %1769 = vmatprep.subr.mxu0 0.0
        %1770 = vmatpush2.msra.mxu0 0.0
        %1771 = vmatprep.subr.mxu0 0.0
        %1772 = vmatpush2.msra.mxu0 0.0
        %1773 = vmatprep.subr.mxu0 0.0
        %1774 = vmatpush2.msra.mxu0 0.0
        %1775 = vmatprep.subr.mxu0 0.0
        %1776 = vmatpush2.msra.mxu0 0.0
        %1777 = vmatprep.subr.mxu0 0.0
        %1778 = vmatpush2.msra.mxu0 0.0
        %1779 = vmatprep.mubr.f32.mxu0 0.0
        %1780 = vmatmul.mubr.f32.gmra.mxu0 %v1713
        %v1781 = vpop.f32.mrf.mxu0
        %v1782 = vadd.f32 %v1710, %v1781
        %v1783 = vpop.f32.mrf.mxu0
        %1784 = vdwg.mxu0
        %v1785 = vadd.f32 %v1306, %v1782
        %v1786 = vld [vmem:[%s16 + $0x2] sm:$0x1]
        %v1787 = vsel %vm737, %v1785, 0.0
        %1788 = vadd.xlane.f32.xlu0 %v1787
        %v1789 = vpop.xlane.xlu0 %1788
        %v1790 = vmul.f32 %v1789, %v822
        %v1791 = vsub.f32 %v1785, %v1790
        %v1792 = vmul.f32 %v1791, %v1791
        %v1793 = vsel %vm737, %v1792, 0.0
        %1794 = vadd.xlane.f32.xlu0 %v1793
        %v1795 = vpop.xlane.xlu0 %1794
        %v1796 = vmul.f32 %v1795, 0.032258064
        %v1797 = vrsqrt.pop %v1796
        %v1798 = vmul.f32 %v1796, %v1797
        %vm1799 = vcmp.eq.f32.partialorder %v1796, inf
        %v1800 = vsel %vm1799, %v1796, %v1798
        %vm1801 = vcmp.eq.f32.partialorder %v1796, 0.0
        %v1802 = vand.u32 %v1796, 2147483648
        %v1803 = vsel %vm1801, %v1802, %v1800
        %v1804 = vadd.f32 %v1803, 1e-06
        %v1805 = vrcp.pop %v1804
        %s1807 = vtos %v1786
        %v1808 = vstv %s1807
        %v1810 = vmul.f32 %v1808, %v1791
        %v1811 = vmul.f32 %v1810, %v1805
        %1812 = vrot.lane.b32.xlu0 %v1786, 127
        %v1813 = vpop.permute.xlu0 %1812
        %s1814 = vtos %v1813
        %v1815 = vstv %s1814
        %v1817 = vadd.f32 %v1811, %v1815
        %v1818 = vld [vmem:[#allocation13] sm:$0xff]
        %v1819 = vld [vmem:[#allocation13 + $0x8] sm:$0xff]
        %v1820 = vld [vmem:[#allocation13 + $0x10] sm:$0xff]
        %v1821 = vld [vmem:[#allocation13 + $0x18] sm:$0xff]
        %v1822 = vld [vmem:[%s13] sm:$0x1]
        %v1824 = vlaneseq
        %v1825 = vshrl.u32 %v1824, 7
        %v1826 = vsub.s32 0, %v1825
        %v1827 = vrot.slane %v1822, %v1826
        %v1830 = vsel %vm737, %v1817, 0
        %1832 = vmatprep.subr.mxu0 0.0
        %1833 = vmatpush1.msra.mxu0 0.0
        %1834 = vmatprep.subr.mxu0 0.0
        %1835 = vmatpush1.msra.mxu0 0.0
        %1836 = vmatprep.subr.mxu0 0.0
        %1837 = vmatpush1.msra.mxu0 0.0
        %1838 = vmatprep.subr.mxu0 0.0
        %1839 = vmatpush1.msra.mxu0 0.0
        %1840 = vmatprep.subr.mxu0 0.0
        %1841 = vmatpush1.msra.mxu0 0.0
        %1842 = vmatprep.subr.mxu0 0.0
        %1843 = vmatpush1.msra.mxu0 0.0
        %1844 = vmatprep.subr.mxu0 0.0
        %1845 = vmatpush1.msra.mxu0 0.0
        %1846 = vmatprep.subr.mxu0 0.0
        %1847 = vmatpush1.msra.mxu0 0.0
        %1848 = vmatprep.subr.mxu0 0.0
        %1849 = vmatpush1.msra.mxu0 0.0
        %1850 = vmatprep.subr.mxu0 0.0
        %1851 = vmatpush1.msra.mxu0 0.0
        %1852 = vmatprep.subr.mxu0 0.0
        %1853 = vmatpush1.msra.mxu0 0.0
        %1854 = vmatprep.subr.mxu0 0.0
        %1855 = vmatpush1.msra.mxu0 0.0
        %1856 = vmatprep.subr.mxu0 0.0
        %1857 = vmatpush1.msra.mxu0 %v1821
        %1858 = vmatprep.subr.mxu0 0.0
        %1859 = vmatpush1.msra.mxu0 %v1820
        %1860 = vmatprep.subr.mxu0 0.0
        %1861 = vmatpush1.msra.mxu0 %v1819
        %1862 = vmatprep.subr.mxu0 0.0
        %1863 = vmatpush1.msra.mxu0 %v1818
        %1864 = vmatprep.subr.mxu0 0.0
        %1865 = vmatpush2.msra.mxu0 0.0
        %1866 = vmatprep.subr.mxu0 0.0
        %1867 = vmatpush2.msra.mxu0 0.0
        %1868 = vmatprep.subr.mxu0 0.0
        %1869 = vmatpush2.msra.mxu0 0.0
        %1870 = vmatprep.subr.mxu0 0.0
        %1871 = vmatpush2.msra.mxu0 0.0
        %1872 = vmatprep.subr.mxu0 0.0
        %1873 = vmatpush2.msra.mxu0 0.0
        %1874 = vmatprep.subr.mxu0 0.0
        %1875 = vmatpush2.msra.mxu0 0.0
        %1876 = vmatprep.subr.mxu0 0.0
        %1877 = vmatpush2.msra.mxu0 0.0
        %1878 = vmatprep.subr.mxu0 0.0
        %1879 = vmatpush2.msra.mxu0 0.0
        %1880 = vmatprep.subr.mxu0 0.0
        %1881 = vmatpush2.msra.mxu0 0.0
        %1882 = vmatprep.subr.mxu0 0.0
        %1883 = vmatpush2.msra.mxu0 0.0
        %1884 = vmatprep.subr.mxu0 0.0
        %1885 = vmatpush2.msra.mxu0 0.0
        %1886 = vmatprep.subr.mxu0 0.0
        %1887 = vmatpush2.msra.mxu0 0.0
        %1888 = vmatprep.subr.mxu0 0.0
        %1889 = vmatpush2.msra.mxu0 0.0
        %1890 = vmatprep.subr.mxu0 0.0
        %1891 = vmatpush2.msra.mxu0 0.0
        %1892 = vmatprep.subr.mxu0 0.0
        %1893 = vmatpush2.msra.mxu0 0.0
        %1894 = vmatprep.subr.mxu0 0.0
        %1895 = vmatpush2.msra.mxu0 0.0
        %1896 = vmatprep.mubr.f32.mxu0 0.0
        %1897 = vmatmul.mubr.f32.gmra.mxu0 %v1830
        %v1898 = vpop.f32.mrf.mxu0
        %v1899 = vadd.f32 %v1827, %v1898
        %v1900 = vpop.f32.mrf.mxu0
        %1901 = vdwg.mxu0
        %v1902 = vmax.f32 %v1899, 0.0
        %v1903 = vld [vmem:[%s14] sm:$0xff]
        %v1904 = vld [vmem:[%s14 + $0x8] sm:$0xff]
        %v1905 = vld [vmem:[%s14 + $0x10] sm:$0xff]
        %v1906 = vld [vmem:[%s14 + $0x18] sm:$0xff]
        %v1907 = vld [vmem:[%s14 + $0x20] sm:$0xff]
        %v1908 = vld [vmem:[%s14 + $0x28] sm:$0xff]
        %v1909 = vld [vmem:[%s14 + $0x30] sm:$0xff]
        %v1910 = vld [vmem:[%s14 + $0x38] sm:$0xff]
        %vm1911 = vcmask 523264
        %v1913 = vsel %vm1911, %v1902, 0
        %1915 = vmatprep.subr.mxu0 0.0
        %1916 = vmatpush1.msra.mxu0 0.0
        %1917 = vmatprep.subr.mxu0 0.0
        %1918 = vmatpush1.msra.mxu0 0.0
        %1919 = vmatprep.subr.mxu0 0.0
        %1920 = vmatpush1.msra.mxu0 0.0
        %1921 = vmatprep.subr.mxu0 0.0
        %1922 = vmatpush1.msra.mxu0 0.0
        %1923 = vmatprep.subr.mxu0 0.0
        %1924 = vmatpush1.msra.mxu0 0.0
        %1925 = vmatprep.subr.mxu0 0.0
        %1926 = vmatpush1.msra.mxu0 0.0
        %1927 = vmatprep.subr.mxu0 0.0
        %1928 = vmatpush1.msra.mxu0 0.0
        %1929 = vmatprep.subr.mxu0 0.0
        %1930 = vmatpush1.msra.mxu0 0.0
        %1931 = vmatprep.subr.mxu0 0.0
        %1932 = vmatpush1.msra.mxu0 %v1910
        %1933 = vmatprep.subr.mxu0 0.0
        %1934 = vmatpush1.msra.mxu0 %v1909
        %1935 = vmatprep.subr.mxu0 0.0
        %1936 = vmatpush1.msra.mxu0 %v1908
        %1937 = vmatprep.subr.mxu0 0.0
        %1938 = vmatpush1.msra.mxu0 %v1907
        %1939 = vmatprep.subr.mxu0 0.0
        %1940 = vmatpush1.msra.mxu0 %v1906
        %1941 = vmatprep.subr.mxu0 0.0
        %1942 = vmatpush1.msra.mxu0 %v1905
        %1943 = vmatprep.subr.mxu0 0.0
        %1944 = vmatpush1.msra.mxu0 %v1904
        %1945 = vmatprep.subr.mxu0 0.0
        %1946 = vmatpush1.msra.mxu0 %v1903
        %1947 = vmatprep.subr.mxu0 0.0
        %1948 = vmatpush2.msra.mxu0 0.0
        %1949 = vmatprep.subr.mxu0 0.0
        %1950 = vmatpush2.msra.mxu0 0.0
        %1951 = vmatprep.subr.mxu0 0.0
        %1952 = vmatpush2.msra.mxu0 0.0
        %1953 = vmatprep.subr.mxu0 0.0
        %1954 = vmatpush2.msra.mxu0 0.0
        %1955 = vmatprep.subr.mxu0 0.0
        %1956 = vmatpush2.msra.mxu0 0.0
        %1957 = vmatprep.subr.mxu0 0.0
        %1958 = vmatpush2.msra.mxu0 0.0
        %1959 = vmatprep.subr.mxu0 0.0
        %1960 = vmatpush2.msra.mxu0 0.0
        %1961 = vmatprep.subr.mxu0 0.0
        %1962 = vmatpush2.msra.mxu0 0.0
        %1963 = vmatprep.subr.mxu0 0.0
        %1964 = vmatpush2.msra.mxu0 0.0
        %1965 = vmatprep.subr.mxu0 0.0
        %1966 = vmatpush2.msra.mxu0 0.0
        %1967 = vmatprep.subr.mxu0 0.0
        %1968 = vmatpush2.msra.mxu0 0.0
        %1969 = vmatprep.subr.mxu0 0.0
        %1970 = vmatpush2.msra.mxu0 0.0
        %1971 = vmatprep.subr.mxu0 0.0
        %1972 = vmatpush2.msra.mxu0 0.0
        %1973 = vmatprep.subr.mxu0 0.0
        %1974 = vmatpush2.msra.mxu0 0.0
        %1975 = vmatprep.subr.mxu0 0.0
        %1976 = vmatpush2.msra.mxu0 0.0
        %1977 = vmatprep.subr.mxu0 0.0
        %1978 = vmatpush2.msra.mxu0 0.0
        %1979 = vmatprep.mubr.f32.mxu0 0.0
        %1980 = vmatmul.mubr.f32.gmra.mxu0 %v1913
        %v1981 = vpop.f32.mrf.mxu0
        %v1982 = vadd.f32 0.0, %v1981
        %v1983 = vpop.f32.mrf.mxu0
        %1984 = vdwg.mxu0
        %v1985 = vadd.f32 %v1785, %v1982
        %v1986 = vld [vmem:[%s15] sm:$0x1]
        %v1988 = vlaneseq
        %v1989 = vshrl.u32 %v1988, 7
        %v1990 = vsub.s32 0, %v1989
        %v1991 = vrot.slane %v1986, %v1990
        %v1993 = vadd.f32 %v1985, %v1991
        %v1994 = vld [vmem:[%s16] sm:$0x1]
        %v1995 = vsel %vm737, %v1993, 0.0
        %1996 = vadd.xlane.f32.xlu0 %v1995
        %v1997 = vpop.xlane.xlu0 %1996
        %v1998 = vmul.f32 %v1997, %v822
        %v1999 = vsub.f32 %v1993, %v1998
        %v2000 = vmul.f32 %v1999, %v1999
        %v2001 = vsel %vm737, %v2000, 0.0
        %2002 = vadd.xlane.f32.xlu0 %v2001
        %v2003 = vpop.xlane.xlu0 %2002
        %v2004 = vmul.f32 %v2003, 0.032258064
        %v2005 = vrsqrt.pop %v2004
        %v2006 = vmul.f32 %v2004, %v2005
        %vm2007 = vcmp.eq.f32.partialorder %v2004, inf
        %v2008 = vsel %vm2007, %v2004, %v2006
        %vm2009 = vcmp.eq.f32.partialorder %v2004, 0.0
        %v2010 = vand.u32 %v2004, 2147483648
        %v2011 = vsel %vm2009, %v2010, %v2008
        %v2012 = vadd.f32 %v2011, 1e-06
        %v2013 = vrcp.pop %v2012
        %s2015 = vtos %v1994
        %v2016 = vstv %s2015
        %v2018 = vmul.f32 %v2016, %v1999
        %v2019 = vmul.f32 %v2018, %v2013
        %2020 = vrot.lane.b32.xlu0 %v1994, 127
        %v2021 = vpop.permute.xlu0 %2020
        %s2022 = vtos %v2021
        %v2023 = vstv %s2022
        %v2025 = vadd.f32 %v2019, %v2023
        %v2026 = vld [vmem:[%s4] sm:$0xff]
        %v2027 = vld [vmem:[%s4 + $0x8] sm:$0xff]
        %v2028 = vld [vmem:[%s4 + $0x10] sm:$0xff]
        %v2029 = vld [vmem:[%s4 + $0x18] sm:$0xff]
        %v2030 = vld [vmem:[%s5] sm:$0x1]
        %v2032 = vlaneseq
        %v2033 = vshrl.u32 %v2032, 7
        %v2034 = vsub.s32 0, %v2033
        %v2035 = vrot.slane %v2030, %v2034
        %v2038 = vsel %vm737, %v2025, 0
        %2040 = vmatprep.subr.mxu0 0.0
        %2041 = vmatpush1.msra.mxu0 0.0
        %2042 = vmatprep.subr.mxu0 0.0
        %2043 = vmatpush1.msra.mxu0 0.0
        %2044 = vmatprep.subr.mxu0 0.0
        %2045 = vmatpush1.msra.mxu0 0.0
        %2046 = vmatprep.subr.mxu0 0.0
        %2047 = vmatpush1.msra.mxu0 0.0
        %2048 = vmatprep.subr.mxu0 0.0
        %2049 = vmatpush1.msra.mxu0 0.0
        %2050 = vmatprep.subr.mxu0 0.0
        %2051 = vmatpush1.msra.mxu0 0.0
        %2052 = vmatprep.subr.mxu0 0.0
        %2053 = vmatpush1.msra.mxu0 0.0
        %2054 = vmatprep.subr.mxu0 0.0
        %2055 = vmatpush1.msra.mxu0 0.0
        %2056 = vmatprep.subr.mxu0 0.0
        %2057 = vmatpush1.msra.mxu0 0.0
        %2058 = vmatprep.subr.mxu0 0.0
        %2059 = vmatpush1.msra.mxu0 0.0
        %2060 = vmatprep.subr.mxu0 0.0
        %2061 = vmatpush1.msra.mxu0 0.0
        %2062 = vmatprep.subr.mxu0 0.0
        %2063 = vmatpush1.msra.mxu0 0.0
        %2064 = vmatprep.subr.mxu0 0.0
        %2065 = vmatpush1.msra.mxu0 %v2029
        %2066 = vmatprep.subr.mxu0 0.0
        %2067 = vmatpush1.msra.mxu0 %v2028
        %2068 = vmatprep.subr.mxu0 0.0
        %2069 = vmatpush1.msra.mxu0 %v2027
        %2070 = vmatprep.subr.mxu0 0.0
        %2071 = vmatpush1.msra.mxu0 %v2026
        %2072 = vmatprep.subr.mxu0 0.0
        %2073 = vmatpush2.msra.mxu0 0.0
        %2074 = vmatprep.subr.mxu0 0.0
        %2075 = vmatpush2.msra.mxu0 0.0
        %2076 = vmatprep.subr.mxu0 0.0
        %2077 = vmatpush2.msra.mxu0 0.0
        %2078 = vmatprep.subr.mxu0 0.0
        %2079 = vmatpush2.msra.mxu0 0.0
        %2080 = vmatprep.subr.mxu0 0.0
        %2081 = vmatpush2.msra.mxu0 0.0
        %2082 = vmatprep.subr.mxu0 0.0
        %2083 = vmatpush2.msra.mxu0 0.0
        %2084 = vmatprep.subr.mxu0 0.0
        %2085 = vmatpush2.msra.mxu0 0.0
        %2086 = vmatprep.subr.mxu0 0.0
        %2087 = vmatpush2.msra.mxu0 0.0
        %2088 = vmatprep.subr.mxu0 0.0
        %2089 = vmatpush2.msra.mxu0 0.0
        %2090 = vmatprep.subr.mxu0 0.0
        %2091 = vmatpush2.msra.mxu0 0.0
        %2092 = vmatprep.subr.mxu0 0.0
        %2093 = vmatpush2.msra.mxu0 0.0
        %2094 = vmatprep.subr.mxu0 0.0
        %2095 = vmatpush2.msra.mxu0 0.0
        %2096 = vmatprep.subr.mxu0 0.0
        %2097 = vmatpush2.msra.mxu0 0.0
        %2098 = vmatprep.subr.mxu0 0.0
        %2099 = vmatpush2.msra.mxu0 0.0
        %2100 = vmatprep.subr.mxu0 0.0
        %2101 = vmatpush2.msra.mxu0 0.0
        %2102 = vmatprep.subr.mxu0 0.0
        %2103 = vmatpush2.msra.mxu0 0.0
        %2104 = vmatprep.mubr.f32.mxu0 0.0
        %2105 = vmatmul.mubr.f32.gmra.mxu0 %v2038
        %v2106 = vpop.f32.mrf.mxu0
        %v2107 = vadd.f32 %v2035, %v2106
        %v2108 = vpop.f32.mrf.mxu0
        %2109 = vdwg.mxu0
        %2111 = vrot.lane.b32.xlu0 %v2107, 120
        %v2112 = vpop.permute.xlu0 %2111
        %2113 = vrot.lane.b32.xlu0 %v2107, 112
        %v2114 = vpop.permute.xlu0 %2113
        %2115 = vrot.lane.b32.xlu0 %v2107, 104
        %v2116 = vpop.permute.xlu0 %2115
        %v2117 = vld [vmem:[#allocation11] sm:$0xff]
        %v2118 = vld [vmem:[#allocation11 + $0x8] sm:$0xff]
        %v2119 = vld [vmem:[#allocation11 + $0x10] sm:$0xff]
        %v2120 = vld [vmem:[#allocation11 + $0x18] sm:$0xff]
        %v2121 = vld [vmem:[%s11] sm:$0x1]
        %2122 = vrot.lane.b32.xlu0 %v2107, 96
        %v2123 = vpop.permute.xlu0 %2122
        %2124 = vrot.lane.b32.xlu0 %v2112, 96
        %v2125 = vpop.permute.xlu0 %2124
        %2126 = vrot.lane.b32.xlu0 %v2114, 96
        %v2127 = vpop.permute.xlu0 %2126
        %2128 = vrot.lane.b32.xlu0 %v2116, 96
        %v2129 = vpop.permute.xlu0 %2128
        %v2130 = vsel %vm955, %v2107, 0
        %v2132 = vsel %vm955, %v2112, 0
        %v2134 = vsel %vm955, %v2114, 0
        %v2136 = vsel %vm955, %v2116, 0
        %v2138 = vsel %vm955, %v2123, 0
        %v2140 = vsel %vm955, %v2125, 0
        %v2142 = vsel %vm955, %v2127, 0
        %v2144 = vsel %vm955, %v2129, 0
        %2146 = vmatprep.subr.mxu0 0.0
        %2147 = vmatpush1.xpose.msra.mxu0 0.0
        %2148 = vmatprep.subr.mxu0 0.0
        %2149 = vmatpush1.xpose.msra.mxu0 0.0
        %2150 = vmatprep.subr.mxu0 0.0
        %2151 = vmatpush1.xpose.msra.mxu0 0.0
        %2152 = vmatprep.subr.mxu0 0.0
        %2153 = vmatpush1.xpose.msra.mxu0 0.0
        %2154 = vmatprep.subr.mxu0 0.0
        %2155 = vmatpush1.xpose.msra.mxu0 0.0
        %2156 = vmatprep.subr.mxu0 0.0
        %2157 = vmatpush1.xpose.msra.mxu0 0.0
        %2158 = vmatprep.subr.mxu0 0.0
        %2159 = vmatpush1.xpose.msra.mxu0 0.0
        %2160 = vmatprep.subr.mxu0 0.0
        %2161 = vmatpush1.xpose.msra.mxu0 0.0
        %2162 = vmatprep.subr.mxu0 0.0
        %2163 = vmatpush1.xpose.msra.mxu0 0.0
        %2164 = vmatprep.subr.mxu0 0.0
        %2165 = vmatpush1.xpose.msra.mxu0 0.0
        %2166 = vmatprep.subr.mxu0 0.0
        %2167 = vmatpush1.xpose.msra.mxu0 0.0
        %2168 = vmatprep.subr.mxu0 0.0
        %2169 = vmatpush1.xpose.msra.mxu0 0.0
        %2170 = vmatprep.subr.mxu0 0.0
        %2171 = vmatpush1.xpose.msra.mxu0 %v2144
        %2172 = vmatprep.subr.mxu0 0.0
        %2173 = vmatpush1.xpose.msra.mxu0 %v2142
        %2174 = vmatprep.subr.mxu0 0.0
        %2175 = vmatpush1.xpose.msra.mxu0 %v2140
        %2176 = vmatprep.subr.mxu0 0.0
        %2177 = vmatpush1.xpose.msra.mxu0 %v2138
        %2178 = vmatprep.subr.mxu0 0.0
        %2179 = vmatpush2.xpose.msra.mxu0 0.0
        %2180 = vmatprep.subr.mxu0 0.0
        %2181 = vmatpush2.xpose.msra.mxu0 0.0
        %2182 = vmatprep.subr.mxu0 0.0
        %2183 = vmatpush2.xpose.msra.mxu0 0.0
        %2184 = vmatprep.subr.mxu0 0.0
        %2185 = vmatpush2.xpose.msra.mxu0 0.0
        %2186 = vmatprep.subr.mxu0 0.0
        %2187 = vmatpush2.xpose.msra.mxu0 0.0
        %2188 = vmatprep.subr.mxu0 0.0
        %2189 = vmatpush2.xpose.msra.mxu0 0.0
        %2190 = vmatprep.subr.mxu0 0.0
        %2191 = vmatpush2.xpose.msra.mxu0 0.0
        %2192 = vmatprep.subr.mxu0 0.0
        %2193 = vmatpush2.xpose.msra.mxu0 0.0
        %2194 = vmatprep.subr.mxu0 0.0
        %2195 = vmatpush2.xpose.msra.mxu0 0.0
        %2196 = vmatprep.subr.mxu0 0.0
        %2197 = vmatpush2.xpose.msra.mxu0 0.0
        %2198 = vmatprep.subr.mxu0 0.0
        %2199 = vmatpush2.xpose.msra.mxu0 0.0
        %2200 = vmatprep.subr.mxu0 0.0
        %2201 = vmatpush2.xpose.msra.mxu0 0.0
        %2202 = vmatprep.subr.mxu0 0.0
        %2203 = vmatpush2.xpose.msra.mxu0 0.0
        %2204 = vmatprep.subr.mxu0 0.0
        %2205 = vmatpush2.xpose.msra.mxu0 0.0
        %2206 = vmatprep.subr.mxu0 0.0
        %2207 = vmatpush2.xpose.msra.mxu0 0.0
        %2208 = vmatprep.subr.mxu0 0.0
        %2209 = vmatpush2.xpose.msra.mxu0 0.0
        %2210 = vmatprep.mubr.f32.mxu0 0.0
        %2211 = vmatmul.mubr.f32.gmra.mxu0 %v2130
        %v2212 = vpop.f32.mrf.mxu0
        %v2213 = vadd.f32 %v718, %v2212
        %v2214 = vpop.f32.mrf.mxu0
        %2215 = vmatprep.mubr.f32.mxu0 0.0
        %2216 = vmatmul.mubr.f32.gmra.mxu0 %v2132
        %v2217 = vpop.f32.mrf.mxu0
        %v2218 = vadd.f32 %v719, %v2217
        %v2219 = vpop.f32.mrf.mxu0
        %2220 = vmatprep.mubr.f32.mxu0 0.0
        %2221 = vmatmul.mubr.f32.gmra.mxu0 %v2134
        %v2222 = vpop.f32.mrf.mxu0
        %v2223 = vadd.f32 %v720, %v2222
        %v2224 = vpop.f32.mrf.mxu0
        %2225 = vmatprep.mubr.f32.mxu0 0.0
        %2226 = vmatmul.mubr.f32.gmra.mxu0 %v2136
        %v2227 = vpop.f32.mrf.mxu0
        %v2228 = vadd.f32 %v721, %v2227
        %v2229 = vpop.f32.mrf.mxu0
        %2230 = vdwg.mxu0
        %v2231 = vsel %vm737, %v2213, -inf
        %2232 = vmax.xlane.f32.xlu0 %v2231
        %v2233 = vpop.xlane.xlu0 %2232
        %v2234 = vsel %vm737, %v2218, -inf
        %2235 = vmax.xlane.f32.xlu0 %v2234
        %v2236 = vpop.xlane.xlu0 %2235
        %v2237 = vsel %vm737, %v2223, -inf
        %2238 = vmax.xlane.f32.xlu0 %v2237
        %v2239 = vpop.xlane.xlu0 %2238
        %v2240 = vsel %vm737, %v2228, -inf
        %2241 = vmax.xlane.f32.xlu0 %v2240
        %v2242 = vpop.xlane.xlu0 %2241
        %v2243 = vsub.f32 %v2213, %v2233
        %v2244 = vsub.f32 %v2218, %v2236
        %v2245 = vsub.f32 %v2223, %v2239
        %v2246 = vsub.f32 %v2228, %v2242
        %v2247 = vmul.f32 %v2243, 1.442695
        %v2248 = vpow.pop %v2247
        %v2249 = vmul.f32 %v2244, 1.442695
        %v2250 = vpow.pop %v2249
        %v2251 = vmul.f32 %v2245, 1.442695
        %v2252 = vpow.pop %v2251
        %v2253 = vmul.f32 %v2246, 1.442695
        %v2254 = vpow.pop %v2253
        %v2255 = vsel %vm737, %v2248, 0.0
        %2256 = vadd.xlane.f32.xlu0 %v2255
        %v2257 = vpop.xlane.xlu0 %2256
        %v2258 = vsel %vm737, %v2250, 0.0
        %2259 = vadd.xlane.f32.xlu0 %v2258
        %v2260 = vpop.xlane.xlu0 %2259
        %v2261 = vsel %vm737, %v2252, 0.0
        %2262 = vadd.xlane.f32.xlu0 %v2261
        %v2263 = vpop.xlane.xlu0 %2262
        %v2264 = vsel %vm737, %v2254, 0.0
        %2265 = vadd.xlane.f32.xlu0 %v2264
        %v2266 = vpop.xlane.xlu0 %2265
        %v2267 = vrcp.pop %v2257
        %v2268 = vrcp.pop %v2260
        %v2269 = vrcp.pop %v2263
        %v2270 = vrcp.pop %v2266
        %v2271 = vmul.f32 %v2248, %v2267
        %v2272 = vmul.f32 %v2250, %v2268
        %v2273 = vmul.f32 %v2252, %v2269
        %v2274 = vmul.f32 %v2254, %v2270
        %2275 = vrot.lane.b32.xlu0 %v2107, 64
        %v2276 = vpop.permute.xlu0 %2275
        %2277 = vrot.lane.b32.xlu0 %v2112, 64
        %v2278 = vpop.permute.xlu0 %2277
        %2279 = vrot.lane.b32.xlu0 %v2114, 64
        %v2280 = vpop.permute.xlu0 %2279
        %2281 = vrot.lane.b32.xlu0 %v2116, 64
        %v2282 = vpop.permute.xlu0 %2281
        %v2288 = vsel %vm737, %v2271, 0
        %v2291 = vsel %vm737, %v2272, 0
        %v2294 = vsel %vm737, %v2273, 0
        %v2297 = vsel %vm737, %v2274, 0
        %2299 = vmatprep.subr.mxu0 0.0
        %2300 = vmatpush1.msra.mxu0 0.0
        %2301 = vmatprep.subr.mxu0 0.0
        %2302 = vmatpush1.msra.mxu0 0.0
        %2303 = vmatprep.subr.mxu0 0.0
        %2304 = vmatpush1.msra.mxu0 0.0
        %2305 = vmatprep.subr.mxu0 0.0
        %2306 = vmatpush1.msra.mxu0 0.0
        %2307 = vmatprep.subr.mxu0 0.0
        %2308 = vmatpush1.msra.mxu0 0.0
        %2309 = vmatprep.subr.mxu0 0.0
        %2310 = vmatpush1.msra.mxu0 0.0
        %2311 = vmatprep.subr.mxu0 0.0
        %2312 = vmatpush1.msra.mxu0 0.0
        %2313 = vmatprep.subr.mxu0 0.0
        %2314 = vmatpush1.msra.mxu0 0.0
        %2315 = vmatprep.subr.mxu0 0.0
        %2316 = vmatpush1.msra.mxu0 0.0
        %2317 = vmatprep.subr.mxu0 0.0
        %2318 = vmatpush1.msra.mxu0 0.0
        %2319 = vmatprep.subr.mxu0 0.0
        %2320 = vmatpush1.msra.mxu0 0.0
        %2321 = vmatprep.subr.mxu0 0.0
        %2322 = vmatpush1.msra.mxu0 0.0
        %2323 = vmatprep.subr.mxu0 0.0
        %2324 = vmatpush1.msra.mxu0 %v2282
        %2325 = vmatprep.subr.mxu0 0.0
        %2326 = vmatpush1.msra.mxu0 %v2280
        %2327 = vmatprep.subr.mxu0 0.0
        %2328 = vmatpush1.msra.mxu0 %v2278
        %2329 = vmatprep.subr.mxu0 0.0
        %2330 = vmatpush1.msra.mxu0 %v2276
        %2331 = vmatprep.subr.mxu0 0.0
        %2332 = vmatpush2.msra.mxu0 0.0
        %2333 = vmatprep.subr.mxu0 0.0
        %2334 = vmatpush2.msra.mxu0 0.0
        %2335 = vmatprep.subr.mxu0 0.0
        %2336 = vmatpush2.msra.mxu0 0.0
        %2337 = vmatprep.subr.mxu0 0.0
        %2338 = vmatpush2.msra.mxu0 0.0
        %2339 = vmatprep.subr.mxu0 0.0
        %2340 = vmatpush2.msra.mxu0 0.0
        %2341 = vmatprep.subr.mxu0 0.0
        %2342 = vmatpush2.msra.mxu0 0.0
        %2343 = vmatprep.subr.mxu0 0.0
        %2344 = vmatpush2.msra.mxu0 0.0
        %2345 = vmatprep.subr.mxu0 0.0
        %2346 = vmatpush2.msra.mxu0 0.0
        %2347 = vmatprep.subr.mxu0 0.0
        %2348 = vmatpush2.msra.mxu0 0.0
        %2349 = vmatprep.subr.mxu0 0.0
        %2350 = vmatpush2.msra.mxu0 0.0
        %2351 = vmatprep.subr.mxu0 0.0
        %2352 = vmatpush2.msra.mxu0 0.0
        %2353 = vmatprep.subr.mxu0 0.0
        %2354 = vmatpush2.msra.mxu0 0.0
        %2355 = vmatprep.subr.mxu0 0.0
        %2356 = vmatpush2.msra.mxu0 0.0
        %2357 = vmatprep.subr.mxu0 0.0
        %2358 = vmatpush2.msra.mxu0 0.0
        %2359 = vmatprep.subr.mxu0 0.0
        %2360 = vmatpush2.msra.mxu0 0.0
        %2361 = vmatprep.subr.mxu0 0.0
        %2362 = vmatpush2.msra.mxu0 0.0
        %2363 = vmatprep.mubr.f32.mxu0 0.0
        %2364 = vmatmul.mubr.f32.gmra.mxu0 %v2288
        %v2365 = vpop.f32.mrf.mxu0
        %v2366 = vadd.f32 0.0, %v2365
        %v2367 = vpop.f32.mrf.mxu0
        %2368 = vmatprep.mubr.f32.mxu0 0.0
        %2369 = vmatmul.mubr.f32.gmra.mxu0 %v2291
        %v2370 = vpop.f32.mrf.mxu0
        %v2371 = vadd.f32 0.0, %v2370
        %v2372 = vpop.f32.mrf.mxu0
        %2373 = vmatprep.mubr.f32.mxu0 0.0
        %2374 = vmatmul.mubr.f32.gmra.mxu0 %v2294
        %v2375 = vpop.f32.mrf.mxu0
        %v2376 = vadd.f32 0.0, %v2375
        %v2377 = vpop.f32.mrf.mxu0
        %2378 = vmatprep.mubr.f32.mxu0 0.0
        %2379 = vmatmul.mubr.f32.gmra.mxu0 %v2297
        %v2380 = vpop.f32.mrf.mxu0
        %v2381 = vadd.f32 0.0, %v2380
        %v2382 = vpop.f32.mrf.mxu0
        %2383 = vdwg.mxu0
        %2385 = vrot.lane.b32.xlu0 %v2371, 8
        %v2386 = vpop.permute.xlu0 %2385
        %2389 = vrot.lane.b32.xlu0 %v2376, 16
        %v2390 = vpop.permute.xlu0 %2389
        %2393 = vrot.lane.b32.xlu0 %v2381, 24
        %v2394 = vpop.permute.xlu0 %2393
        %v2396 = vsel %vm955, %v2366, %v2386
        %v2397 = vsel %vm1223, %v2396, %v2390
        %v2398 = vsel %vm1225, %v2397, %v2394
        %v2400 = vlaneseq
        %v2401 = vshrl.u32 %v2400, 7
        %v2402 = vsub.s32 0, %v2401
        %v2403 = vrot.slane %v2121, %v2402
        %v2406 = vsel %vm737, %v2398, 0
        %2408 = vmatprep.subr.mxu0 0.0
        %2409 = vmatpush1.msra.mxu0 0.0
        %2410 = vmatprep.subr.mxu0 0.0
        %2411 = vmatpush1.msra.mxu0 0.0
        %2412 = vmatprep.subr.mxu0 0.0
        %2413 = vmatpush1.msra.mxu0 0.0
        %2414 = vmatprep.subr.mxu0 0.0
        %2415 = vmatpush1.msra.mxu0 0.0
        %2416 = vmatprep.subr.mxu0 0.0
        %2417 = vmatpush1.msra.mxu0 0.0
        %2418 = vmatprep.subr.mxu0 0.0
        %2419 = vmatpush1.msra.mxu0 0.0
        %2420 = vmatprep.subr.mxu0 0.0
        %2421 = vmatpush1.msra.mxu0 0.0
        %2422 = vmatprep.subr.mxu0 0.0
        %2423 = vmatpush1.msra.mxu0 0.0
        %2424 = vmatprep.subr.mxu0 0.0
        %2425 = vmatpush1.msra.mxu0 0.0
        %2426 = vmatprep.subr.mxu0 0.0
        %2427 = vmatpush1.msra.mxu0 0.0
        %2428 = vmatprep.subr.mxu0 0.0
        %2429 = vmatpush1.msra.mxu0 0.0
        %2430 = vmatprep.subr.mxu0 0.0
        %2431 = vmatpush1.msra.mxu0 0.0
        %2432 = vmatprep.subr.mxu0 0.0
        %2433 = vmatpush1.msra.mxu0 %v2120
        %2434 = vmatprep.subr.mxu0 0.0
        %2435 = vmatpush1.msra.mxu0 %v2119
        %2436 = vmatprep.subr.mxu0 0.0
        %2437 = vmatpush1.msra.mxu0 %v2118
        %2438 = vmatprep.subr.mxu0 0.0
        %2439 = vmatpush1.msra.mxu0 %v2117
        %2440 = vmatprep.subr.mxu0 0.0
        %2441 = vmatpush2.msra.mxu0 0.0
        %2442 = vmatprep.subr.mxu0 0.0
        %2443 = vmatpush2.msra.mxu0 0.0
        %2444 = vmatprep.subr.mxu0 0.0
        %2445 = vmatpush2.msra.mxu0 0.0
        %2446 = vmatprep.subr.mxu0 0.0
        %2447 = vmatpush2.msra.mxu0 0.0
        %2448 = vmatprep.subr.mxu0 0.0
        %2449 = vmatpush2.msra.mxu0 0.0
        %2450 = vmatprep.subr.mxu0 0.0
        %2451 = vmatpush2.msra.mxu0 0.0
        %2452 = vmatprep.subr.mxu0 0.0
        %2453 = vmatpush2.msra.mxu0 0.0
        %2454 = vmatprep.subr.mxu0 0.0
        %2455 = vmatpush2.msra.mxu0 0.0
        %2456 = vmatprep.subr.mxu0 0.0
        %2457 = vmatpush2.msra.mxu0 0.0
        %2458 = vmatprep.subr.mxu0 0.0
        %2459 = vmatpush2.msra.mxu0 0.0
        %2460 = vmatprep.subr.mxu0 0.0
        %2461 = vmatpush2.msra.mxu0 0.0
        %2462 = vmatprep.subr.mxu0 0.0
        %2463 = vmatpush2.msra.mxu0 0.0
        %2464 = vmatprep.subr.mxu0 0.0
        %2465 = vmatpush2.msra.mxu0 0.0
        %2466 = vmatprep.subr.mxu0 0.0
        %2467 = vmatpush2.msra.mxu0 0.0
        %2468 = vmatprep.subr.mxu0 0.0
        %2469 = vmatpush2.msra.mxu0 0.0
        %2470 = vmatprep.subr.mxu0 0.0
        %2471 = vmatpush2.msra.mxu0 0.0
        %2472 = vmatprep.mubr.f32.mxu0 0.0
        %2473 = vmatmul.mubr.f32.gmra.mxu0 %v2406
        %v2474 = vpop.f32.mrf.mxu0
        %v2475 = vadd.f32 %v2403, %v2474
        %v2476 = vpop.f32.mrf.mxu0
        %2477 = vdwg.mxu0
        %v2478 = vadd.f32 %v1993, %v2475
        %v2479 = vld [vmem:[%s16 + $0x1] sm:$0x1]
        %v2480 = vsel %vm737, %v2478, 0.0
        %2481 = vadd.xlane.f32.xlu0 %v2480
        %v2482 = vpop.xlane.xlu0 %2481
        %v2483 = vmul.f32 %v2482, %v822
        %v2484 = vsub.f32 %v2478, %v2483
        %v2485 = vmul.f32 %v2484, %v2484
        %v2486 = vsel %vm737, %v2485, 0.0
        %2487 = vadd.xlane.f32.xlu0 %v2486
        %v2488 = vpop.xlane.xlu0 %2487
        %v2489 = vmul.f32 %v2488, 0.032258064
        %v2490 = vrsqrt.pop %v2489
        %v2491 = vmul.f32 %v2489, %v2490
        %vm2492 = vcmp.eq.f32.partialorder %v2489, inf
        %v2493 = vsel %vm2492, %v2489, %v2491
        %vm2494 = vcmp.eq.f32.partialorder %v2489, 0.0
        %v2495 = vand.u32 %v2489, 2147483648
        %v2496 = vsel %vm2494, %v2495, %v2493
        %v2497 = vadd.f32 %v2496, 1e-06
        %v2498 = vrcp.pop %v2497
        %s2500 = vtos %v2479
        %v2501 = vstv %s2500
        %v2503 = vmul.f32 %v2501, %v2484
        %v2504 = vmul.f32 %v2503, %v2498
        %2505 = vrot.lane.b32.xlu0 %v2479, 127
        %v2506 = vpop.permute.xlu0 %2505
        %s2507 = vtos %v2506
        %v2508 = vstv %s2507
        %v2510 = vadd.f32 %v2504, %v2508
        %v2511 = vld [vmem:[#allocation8] sm:$0xff]
        %v2512 = vld [vmem:[#allocation8 + $0x8] sm:$0xff]
        %v2513 = vld [vmem:[#allocation8 + $0x10] sm:$0xff]
        %v2514 = vld [vmem:[#allocation8 + $0x18] sm:$0xff]
        %v2515 = vld [vmem:[%s7] sm:$0x1]
        %v2517 = vlaneseq
        %v2518 = vshrl.u32 %v2517, 7
        %v2519 = vsub.s32 0, %v2518
        %v2520 = vrot.slane %v2515, %v2519
        %v2523 = vsel %vm737, %v2510, 0
        %2525 = vmatprep.subr.mxu0 0.0
        %2526 = vmatpush1.msra.mxu0 0.0
        %2527 = vmatprep.subr.mxu0 0.0
        %2528 = vmatpush1.msra.mxu0 0.0
        %2529 = vmatprep.subr.mxu0 0.0
        %2530 = vmatpush1.msra.mxu0 0.0
        %2531 = vmatprep.subr.mxu0 0.0
        %2532 = vmatpush1.msra.mxu0 0.0
        %2533 = vmatprep.subr.mxu0 0.0
        %2534 = vmatpush1.msra.mxu0 0.0
        %2535 = vmatprep.subr.mxu0 0.0
        %2536 = vmatpush1.msra.mxu0 0.0
        %2537 = vmatprep.subr.mxu0 0.0
        %2538 = vmatpush1.msra.mxu0 0.0
        %2539 = vmatprep.subr.mxu0 0.0
        %2540 = vmatpush1.msra.mxu0 0.0
        %2541 = vmatprep.subr.mxu0 0.0
        %2542 = vmatpush1.msra.mxu0 0.0
        %2543 = vmatprep.subr.mxu0 0.0
        %2544 = vmatpush1.msra.mxu0 0.0
        %2545 = vmatprep.subr.mxu0 0.0
        %2546 = vmatpush1.msra.mxu0 0.0
        %2547 = vmatprep.subr.mxu0 0.0
        %2548 = vmatpush1.msra.mxu0 0.0
        %2549 = vmatprep.subr.mxu0 0.0
        %2550 = vmatpush1.msra.mxu0 %v2514
        %2551 = vmatprep.subr.mxu0 0.0
        %2552 = vmatpush1.msra.mxu0 %v2513
        %2553 = vmatprep.subr.mxu0 0.0
        %2554 = vmatpush1.msra.mxu0 %v2512
        %2555 = vmatprep.subr.mxu0 0.0
        %2556 = vmatpush1.msra.mxu0 %v2511
        %2557 = vmatprep.subr.mxu0 0.0
        %2558 = vmatpush2.msra.mxu0 0.0
        %2559 = vmatprep.subr.mxu0 0.0
        %2560 = vmatpush2.msra.mxu0 0.0
        %2561 = vmatprep.subr.mxu0 0.0
        %2562 = vmatpush2.msra.mxu0 0.0
        %2563 = vmatprep.subr.mxu0 0.0
        %2564 = vmatpush2.msra.mxu0 0.0
        %2565 = vmatprep.subr.mxu0 0.0
        %2566 = vmatpush2.msra.mxu0 0.0
        %2567 = vmatprep.subr.mxu0 0.0
        %2568 = vmatpush2.msra.mxu0 0.0
        %2569 = vmatprep.subr.mxu0 0.0
        %2570 = vmatpush2.msra.mxu0 0.0
        %2571 = vmatprep.subr.mxu0 0.0
        %2572 = vmatpush2.msra.mxu0 0.0
        %2573 = vmatprep.subr.mxu0 0.0
        %2574 = vmatpush2.msra.mxu0 0.0
        %2575 = vmatprep.subr.mxu0 0.0
        %2576 = vmatpush2.msra.mxu0 0.0
        %2577 = vmatprep.subr.mxu0 0.0
        %2578 = vmatpush2.msra.mxu0 0.0
        %2579 = vmatprep.subr.mxu0 0.0
        %2580 = vmatpush2.msra.mxu0 0.0
        %2581 = vmatprep.subr.mxu0 0.0
        %2582 = vmatpush2.msra.mxu0 0.0
        %2583 = vmatprep.subr.mxu0 0.0
        %2584 = vmatpush2.msra.mxu0 0.0
        %2585 = vmatprep.subr.mxu0 0.0
        %2586 = vmatpush2.msra.mxu0 0.0
        %2587 = vmatprep.subr.mxu0 0.0
        %2588 = vmatpush2.msra.mxu0 0.0
        %2589 = vmatprep.mubr.f32.mxu0 0.0
        %2590 = vmatmul.mubr.f32.gmra.mxu0 %v2523
        %v2591 = vpop.f32.mrf.mxu0
        %v2592 = vadd.f32 %v2520, %v2591
        %v2593 = vpop.f32.mrf.mxu0
        %2594 = vdwg.mxu0
        %2596 = vrot.lane.b32.xlu0 %v2592, 120
        %v2597 = vpop.permute.xlu0 %2596
        %2598 = vrot.lane.b32.xlu0 %v2592, 112
        %v2599 = vpop.permute.xlu0 %2598
        %2600 = vrot.lane.b32.xlu0 %v2592, 104
        %v2601 = vpop.permute.xlu0 %2600
        %v2602 = vld [vmem:[%s1430] sm:$0xff]
        %v2603 = vld [vmem:[%s1430 + $0x8] sm:$0xff]
        %v2604 = vld [vmem:[%s1430 + $0x10] sm:$0xff]
        %v2605 = vld [vmem:[%s1430 + $0x18] sm:$0xff]
        %v2606 = vld [vmem:[%s1435] sm:$0x1]
        %v2607 = vsel %vm955, %v2592, 0
        %v2609 = vsel %vm955, %v2597, 0
        %v2611 = vsel %vm955, %v2599, 0
        %v2613 = vsel %vm955, %v2601, 0
        %2615 = vmatprep.subr.mxu0 0.0
        %2616 = vmatpush1.xpose.msra.mxu0 0.0
        %2617 = vmatprep.subr.mxu0 0.0
        %2618 = vmatpush1.xpose.msra.mxu0 0.0
        %2619 = vmatprep.subr.mxu0 0.0
        %2620 = vmatpush1.xpose.msra.mxu0 0.0
        %2621 = vmatprep.subr.mxu0 0.0
        %2622 = vmatpush1.xpose.msra.mxu0 0.0
        %2623 = vmatprep.subr.mxu0 0.0
        %2624 = vmatpush1.xpose.msra.mxu0 0.0
        %2625 = vmatprep.subr.mxu0 0.0
        %2626 = vmatpush1.xpose.msra.mxu0 0.0
        %2627 = vmatprep.subr.mxu0 0.0
        %2628 = vmatpush1.xpose.msra.mxu0 0.0
        %2629 = vmatprep.subr.mxu0 0.0
        %2630 = vmatpush1.xpose.msra.mxu0 0.0
        %2631 = vmatprep.subr.mxu0 0.0
        %2632 = vmatpush1.xpose.msra.mxu0 0.0
        %2633 = vmatprep.subr.mxu0 0.0
        %2634 = vmatpush1.xpose.msra.mxu0 0.0
        %2635 = vmatprep.subr.mxu0 0.0
        %2636 = vmatpush1.xpose.msra.mxu0 0.0
        %2637 = vmatprep.subr.mxu0 0.0
        %2638 = vmatpush1.xpose.msra.mxu0 0.0
        %2639 = vmatprep.subr.mxu0 0.0
        %2640 = vmatpush1.xpose.msra.mxu0 %v1451
        %2641 = vmatprep.subr.mxu0 0.0
        %2642 = vmatpush1.xpose.msra.mxu0 %v1449
        %2643 = vmatprep.subr.mxu0 0.0
        %2644 = vmatpush1.xpose.msra.mxu0 %v1447
        %2645 = vmatprep.subr.mxu0 0.0
        %2646 = vmatpush1.xpose.msra.mxu0 %v1445
        %2647 = vmatprep.subr.mxu0 0.0
        %2648 = vmatpush2.xpose.msra.mxu0 0.0
        %2649 = vmatprep.subr.mxu0 0.0
        %2650 = vmatpush2.xpose.msra.mxu0 0.0
        %2651 = vmatprep.subr.mxu0 0.0
        %2652 = vmatpush2.xpose.msra.mxu0 0.0
        %2653 = vmatprep.subr.mxu0 0.0
        %2654 = vmatpush2.xpose.msra.mxu0 0.0
        %2655 = vmatprep.subr.mxu0 0.0
        %2656 = vmatpush2.xpose.msra.mxu0 0.0
        %2657 = vmatprep.subr.mxu0 0.0
        %2658 = vmatpush2.xpose.msra.mxu0 0.0
        %2659 = vmatprep.subr.mxu0 0.0
        %2660 = vmatpush2.xpose.msra.mxu0 0.0
        %2661 = vmatprep.subr.mxu0 0.0
        %2662 = vmatpush2.xpose.msra.mxu0 0.0
        %2663 = vmatprep.subr.mxu0 0.0
        %2664 = vmatpush2.xpose.msra.mxu0 0.0
        %2665 = vmatprep.subr.mxu0 0.0
        %2666 = vmatpush2.xpose.msra.mxu0 0.0
        %2667 = vmatprep.subr.mxu0 0.0
        %2668 = vmatpush2.xpose.msra.mxu0 0.0
        %2669 = vmatprep.subr.mxu0 0.0
        %2670 = vmatpush2.xpose.msra.mxu0 0.0
        %2671 = vmatprep.subr.mxu0 0.0
        %2672 = vmatpush2.xpose.msra.mxu0 0.0
        %2673 = vmatprep.subr.mxu0 0.0
        %2674 = vmatpush2.xpose.msra.mxu0 0.0
        %2675 = vmatprep.subr.mxu0 0.0
        %2676 = vmatpush2.xpose.msra.mxu0 0.0
        %2677 = vmatprep.subr.mxu0 0.0
        %2678 = vmatpush2.xpose.msra.mxu0 0.0
        %2679 = vmatprep.mubr.f32.mxu0 0.0
        %2680 = vmatmul.mubr.f32.gmra.mxu0 %v2607
        %v2681 = vpop.f32.mrf.mxu0
        %v2682 = vadd.f32 %v722, %v2681
        %v2683 = vpop.f32.mrf.mxu0
        %2684 = vmatprep.mubr.f32.mxu0 0.0
        %2685 = vmatmul.mubr.f32.gmra.mxu0 %v2609
        %v2686 = vpop.f32.mrf.mxu0
        %v2687 = vadd.f32 %v723, %v2686
        %v2688 = vpop.f32.mrf.mxu0
        %2689 = vmatprep.mubr.f32.mxu0 0.0
        %2690 = vmatmul.mubr.f32.gmra.mxu0 %v2611
        %v2691 = vpop.f32.mrf.mxu0
        %v2692 = vadd.f32 %v724, %v2691
        %v2693 = vpop.f32.mrf.mxu0
        %2694 = vmatprep.mubr.f32.mxu0 0.0
        %2695 = vmatmul.mubr.f32.gmra.mxu0 %v2613
        %v2696 = vpop.f32.mrf.mxu0
        %v2697 = vadd.f32 %v725, %v2696
        %v2698 = vpop.f32.mrf.mxu0
        %2699 = vdwg.mxu0
        %v2700 = vsel %vm737, %v2682, -inf
        %2701 = vmax.xlane.f32.xlu0 %v2700
        %v2702 = vpop.xlane.xlu0 %2701
        %v2703 = vsel %vm737, %v2687, -inf
        %2704 = vmax.xlane.f32.xlu0 %v2703
        %v2705 = vpop.xlane.xlu0 %2704
        %v2706 = vsel %vm737, %v2692, -inf
        %2707 = vmax.xlane.f32.xlu0 %v2706
        %v2708 = vpop.xlane.xlu0 %2707
        %v2709 = vsel %vm737, %v2697, -inf
        %2710 = vmax.xlane.f32.xlu0 %v2709
        %v2711 = vpop.xlane.xlu0 %2710
        %v2712 = vsub.f32 %v2682, %v2702
        %v2713 = vsub.f32 %v2687, %v2705
        %v2714 = vsub.f32 %v2692, %v2708
        %v2715 = vsub.f32 %v2697, %v2711
        %v2716 = vmul.f32 %v2712, 1.442695
        %v2717 = vpow.pop %v2716
        %v2718 = vmul.f32 %v2713, 1.442695
        %v2719 = vpow.pop %v2718
        %v2720 = vmul.f32 %v2714, 1.442695
        %v2721 = vpow.pop %v2720
        %v2722 = vmul.f32 %v2715, 1.442695
        %v2723 = vpow.pop %v2722
        %v2724 = vsel %vm737, %v2717, 0.0
        %2725 = vadd.xlane.f32.xlu0 %v2724
        %v2726 = vpop.xlane.xlu0 %2725
        %v2727 = vsel %vm737, %v2719, 0.0
        %2728 = vadd.xlane.f32.xlu0 %v2727
        %v2729 = vpop.xlane.xlu0 %2728
        %v2730 = vsel %vm737, %v2721, 0.0
        %2731 = vadd.xlane.f32.xlu0 %v2730
        %v2732 = vpop.xlane.xlu0 %2731
        %v2733 = vsel %vm737, %v2723, 0.0
        %2734 = vadd.xlane.f32.xlu0 %v2733
        %v2735 = vpop.xlane.xlu0 %2734
        %v2736 = vrcp.pop %v2726
        %v2737 = vrcp.pop %v2729
        %v2738 = vrcp.pop %v2732
        %v2739 = vrcp.pop %v2735
        %v2740 = vmul.f32 %v2717, %v2736
        %v2741 = vmul.f32 %v2719, %v2737
        %v2742 = vmul.f32 %v2721, %v2738
        %v2743 = vmul.f32 %v2723, %v2739
        %v2745 = vsel %vm737, %v2740, 0
        %v2748 = vsel %vm737, %v2741, 0
        %v2751 = vsel %vm737, %v2742, 0
        %v2754 = vsel %vm737, %v2743, 0
        %2756 = vmatprep.subr.mxu0 0.0
        %2757 = vmatpush1.msra.mxu0 0.0
        %2758 = vmatprep.subr.mxu0 0.0
        %2759 = vmatpush1.msra.mxu0 0.0
        %2760 = vmatprep.subr.mxu0 0.0
        %2761 = vmatpush1.msra.mxu0 0.0
        %2762 = vmatprep.subr.mxu0 0.0
        %2763 = vmatpush1.msra.mxu0 0.0
        %2764 = vmatprep.subr.mxu0 0.0
        %2765 = vmatpush1.msra.mxu0 0.0
        %2766 = vmatprep.subr.mxu0 0.0
        %2767 = vmatpush1.msra.mxu0 0.0
        %2768 = vmatprep.subr.mxu0 0.0
        %2769 = vmatpush1.msra.mxu0 0.0
        %2770 = vmatprep.subr.mxu0 0.0
        %2771 = vmatpush1.msra.mxu0 0.0
        %2772 = vmatprep.subr.mxu0 0.0
        %2773 = vmatpush1.msra.mxu0 0.0
        %2774 = vmatprep.subr.mxu0 0.0
        %2775 = vmatpush1.msra.mxu0 0.0
        %2776 = vmatprep.subr.mxu0 0.0
        %2777 = vmatpush1.msra.mxu0 0.0
        %2778 = vmatprep.subr.mxu0 0.0
        %2779 = vmatpush1.msra.mxu0 0.0
        %2780 = vmatprep.subr.mxu0 0.0
        %2781 = vmatpush1.msra.mxu0 %v1589
        %2782 = vmatprep.subr.mxu0 0.0
        %2783 = vmatpush1.msra.mxu0 %v1587
        %2784 = vmatprep.subr.mxu0 0.0
        %2785 = vmatpush1.msra.mxu0 %v1585
        %2786 = vmatprep.subr.mxu0 0.0
        %2787 = vmatpush1.msra.mxu0 %v1583
        %2788 = vmatprep.subr.mxu0 0.0
        %2789 = vmatpush2.msra.mxu0 0.0
        %2790 = vmatprep.subr.mxu0 0.0
        %2791 = vmatpush2.msra.mxu0 0.0
        %2792 = vmatprep.subr.mxu0 0.0
        %2793 = vmatpush2.msra.mxu0 0.0
        %2794 = vmatprep.subr.mxu0 0.0
        %2795 = vmatpush2.msra.mxu0 0.0
        %2796 = vmatprep.subr.mxu0 0.0
        %2797 = vmatpush2.msra.mxu0 0.0
        %2798 = vmatprep.subr.mxu0 0.0
        %2799 = vmatpush2.msra.mxu0 0.0
        %2800 = vmatprep.subr.mxu0 0.0
        %2801 = vmatpush2.msra.mxu0 0.0
        %2802 = vmatprep.subr.mxu0 0.0
        %2803 = vmatpush2.msra.mxu0 0.0
        %2804 = vmatprep.subr.mxu0 0.0
        %2805 = vmatpush2.msra.mxu0 0.0
        %2806 = vmatprep.subr.mxu0 0.0
        %2807 = vmatpush2.msra.mxu0 0.0
        %2808 = vmatprep.subr.mxu0 0.0
        %2809 = vmatpush2.msra.mxu0 0.0
        %2810 = vmatprep.subr.mxu0 0.0
        %2811 = vmatpush2.msra.mxu0 0.0
        %2812 = vmatprep.subr.mxu0 0.0
        %2813 = vmatpush2.msra.mxu0 0.0
        %2814 = vmatprep.subr.mxu0 0.0
        %2815 = vmatpush2.msra.mxu0 0.0
        %2816 = vmatprep.subr.mxu0 0.0
        %2817 = vmatpush2.msra.mxu0 0.0
        %2818 = vmatprep.subr.mxu0 0.0
        %2819 = vmatpush2.msra.mxu0 0.0
        %2820 = vmatprep.mubr.f32.mxu0 0.0
        %2821 = vmatmul.mubr.f32.gmra.mxu0 %v2745
        %v2822 = vpop.f32.mrf.mxu0
        %v2823 = vadd.f32 0.0, %v2822
        %v2824 = vpop.f32.mrf.mxu0
        %2825 = vmatprep.mubr.f32.mxu0 0.0
        %2826 = vmatmul.mubr.f32.gmra.mxu0 %v2748
        %v2827 = vpop.f32.mrf.mxu0
        %v2828 = vadd.f32 0.0, %v2827
        %v2829 = vpop.f32.mrf.mxu0
        %2830 = vmatprep.mubr.f32.mxu0 0.0
        %2831 = vmatmul.mubr.f32.gmra.mxu0 %v2751
        %v2832 = vpop.f32.mrf.mxu0
        %v2833 = vadd.f32 0.0, %v2832
        %v2834 = vpop.f32.mrf.mxu0
        %2835 = vmatprep.mubr.f32.mxu0 0.0
        %2836 = vmatmul.mubr.f32.gmra.mxu0 %v2754
        %v2837 = vpop.f32.mrf.mxu0
        %v2838 = vadd.f32 0.0, %v2837
        %v2839 = vpop.f32.mrf.mxu0
        %2840 = vdwg.mxu0
        %2842 = vrot.lane.b32.xlu0 %v2828, 8
        %v2843 = vpop.permute.xlu0 %2842
        %2846 = vrot.lane.b32.xlu0 %v2833, 16
        %v2847 = vpop.permute.xlu0 %2846
        %2850 = vrot.lane.b32.xlu0 %v2838, 24
        %v2851 = vpop.permute.xlu0 %2850
        %v2853 = vsel %vm955, %v2823, %v2843
        %v2854 = vsel %vm1223, %v2853, %v2847
        %v2855 = vsel %vm1225, %v2854, %v2851
        %v2857 = vlaneseq
        %v2858 = vshrl.u32 %v2857, 7
        %v2859 = vsub.s32 0, %v2858
        %v2860 = vrot.slane %v2606, %v2859
        %v2863 = vsel %vm737, %v2855, 0
        %2865 = vmatprep.subr.mxu0 0.0
        %2866 = vmatpush1.msra.mxu0 0.0
        %2867 = vmatprep.subr.mxu0 0.0
        %2868 = vmatpush1.msra.mxu0 0.0
        %2869 = vmatprep.subr.mxu0 0.0
        %2870 = vmatpush1.msra.mxu0 0.0
        %2871 = vmatprep.subr.mxu0 0.0
        %2872 = vmatpush1.msra.mxu0 0.0
        %2873 = vmatprep.subr.mxu0 0.0
        %2874 = vmatpush1.msra.mxu0 0.0
        %2875 = vmatprep.subr.mxu0 0.0
        %2876 = vmatpush1.msra.mxu0 0.0
        %2877 = vmatprep.subr.mxu0 0.0
        %2878 = vmatpush1.msra.mxu0 0.0
        %2879 = vmatprep.subr.mxu0 0.0
        %2880 = vmatpush1.msra.mxu0 0.0
        %2881 = vmatprep.subr.mxu0 0.0
        %2882 = vmatpush1.msra.mxu0 0.0
        %2883 = vmatprep.subr.mxu0 0.0
        %2884 = vmatpush1.msra.mxu0 0.0
        %2885 = vmatprep.subr.mxu0 0.0
        %2886 = vmatpush1.msra.mxu0 0.0
        %2887 = vmatprep.subr.mxu0 0.0
        %2888 = vmatpush1.msra.mxu0 0.0
        %2889 = vmatprep.subr.mxu0 0.0
        %2890 = vmatpush1.msra.mxu0 %v2605
        %2891 = vmatprep.subr.mxu0 0.0
        %2892 = vmatpush1.msra.mxu0 %v2604
        %2893 = vmatprep.subr.mxu0 0.0
        %2894 = vmatpush1.msra.mxu0 %v2603
        %2895 = vmatprep.subr.mxu0 0.0
        %2896 = vmatpush1.msra.mxu0 %v2602
        %2897 = vmatprep.subr.mxu0 0.0
        %2898 = vmatpush2.msra.mxu0 0.0
        %2899 = vmatprep.subr.mxu0 0.0
        %2900 = vmatpush2.msra.mxu0 0.0
        %2901 = vmatprep.subr.mxu0 0.0
        %2902 = vmatpush2.msra.mxu0 0.0
        %2903 = vmatprep.subr.mxu0 0.0
        %2904 = vmatpush2.msra.mxu0 0.0
        %2905 = vmatprep.subr.mxu0 0.0
        %2906 = vmatpush2.msra.mxu0 0.0
        %2907 = vmatprep.subr.mxu0 0.0
        %2908 = vmatpush2.msra.mxu0 0.0
        %2909 = vmatprep.subr.mxu0 0.0
        %2910 = vmatpush2.msra.mxu0 0.0
        %2911 = vmatprep.subr.mxu0 0.0
        %2912 = vmatpush2.msra.mxu0 0.0
        %2913 = vmatprep.subr.mxu0 0.0
        %2914 = vmatpush2.msra.mxu0 0.0
        %2915 = vmatprep.subr.mxu0 0.0
        %2916 = vmatpush2.msra.mxu0 0.0
        %2917 = vmatprep.subr.mxu0 0.0
        %2918 = vmatpush2.msra.mxu0 0.0
        %2919 = vmatprep.subr.mxu0 0.0
        %2920 = vmatpush2.msra.mxu0 0.0
        %2921 = vmatprep.subr.mxu0 0.0
        %2922 = vmatpush2.msra.mxu0 0.0
        %2923 = vmatprep.subr.mxu0 0.0
        %2924 = vmatpush2.msra.mxu0 0.0
        %2925 = vmatprep.subr.mxu0 0.0
        %2926 = vmatpush2.msra.mxu0 0.0
        %2927 = vmatprep.subr.mxu0 0.0
        %2928 = vmatpush2.msra.mxu0 0.0
        %2929 = vmatprep.mubr.f32.mxu0 0.0
        %2930 = vmatmul.mubr.f32.gmra.mxu0 %v2863
        %v2931 = vpop.f32.mrf.mxu0
        %v2932 = vadd.f32 %v2860, %v2931
        %v2933 = vpop.f32.mrf.mxu0
        %2934 = vdwg.mxu0
        %v2935 = vadd.f32 %v2478, %v2932
        %v2936 = vld [vmem:[%s16 + $0x2] sm:$0x1]
        %v2937 = vsel %vm737, %v2935, 0.0
        %2938 = vadd.xlane.f32.xlu0 %v2937
        %v2939 = vpop.xlane.xlu0 %2938
        %v2940 = vmul.f32 %v2939, %v822
        %v2941 = vsub.f32 %v2935, %v2940
        %v2942 = vmul.f32 %v2941, %v2941
        %v2943 = vsel %vm737, %v2942, 0.0
        %2944 = vadd.xlane.f32.xlu0 %v2943
        %v2945 = vpop.xlane.xlu0 %2944
        %v2946 = vmul.f32 %v2945, 0.032258064
        %v2947 = vrsqrt.pop %v2946
        %v2948 = vmul.f32 %v2946, %v2947
        %vm2949 = vcmp.eq.f32.partialorder %v2946, inf
        %v2950 = vsel %vm2949, %v2946, %v2948
        %vm2951 = vcmp.eq.f32.partialorder %v2946, 0.0
        %v2952 = vand.u32 %v2946, 2147483648
        %v2953 = vsel %vm2951, %v2952, %v2950
        %v2954 = vadd.f32 %v2953, 1e-06
        %v2955 = vrcp.pop %v2954
        %s2957 = vtos %v2936
        %v2958 = vstv %s2957
        %v2960 = vmul.f32 %v2958, %v2941
        %v2961 = vmul.f32 %v2960, %v2955
        %2962 = vrot.lane.b32.xlu0 %v2936, 127
        %v2963 = vpop.permute.xlu0 %2962
        %s2964 = vtos %v2963
        %v2965 = vstv %s2964
        %v2967 = vadd.f32 %v2961, %v2965
        %v2968 = vld [vmem:[#allocation13] sm:$0xff]
        %v2969 = vld [vmem:[#allocation13 + $0x8] sm:$0xff]
        %v2970 = vld [vmem:[#allocation13 + $0x10] sm:$0xff]
        %v2971 = vld [vmem:[#allocation13 + $0x18] sm:$0xff]
        %v2972 = vld [vmem:[%s13] sm:$0x1]
        %v2974 = vlaneseq
        %v2975 = vshrl.u32 %v2974, 7
        %v2976 = vsub.s32 0, %v2975
        %v2977 = vrot.slane %v2972, %v2976
        %v2980 = vsel %vm737, %v2967, 0
        %2982 = vmatprep.subr.mxu0 0.0
        %2983 = vmatpush1.msra.mxu0 0.0
        %2984 = vmatprep.subr.mxu0 0.0
        %2985 = vmatpush1.msra.mxu0 0.0
        %2986 = vmatprep.subr.mxu0 0.0
        %2987 = vmatpush1.msra.mxu0 0.0
        %2988 = vmatprep.subr.mxu0 0.0
        %2989 = vmatpush1.msra.mxu0 0.0
        %2990 = vmatprep.subr.mxu0 0.0
        %2991 = vmatpush1.msra.mxu0 0.0
        %2992 = vmatprep.subr.mxu0 0.0
        %2993 = vmatpush1.msra.mxu0 0.0
        %2994 = vmatprep.subr.mxu0 0.0
        %2995 = vmatpush1.msra.mxu0 0.0
        %2996 = vmatprep.subr.mxu0 0.0
        %2997 = vmatpush1.msra.mxu0 0.0
        %2998 = vmatprep.subr.mxu0 0.0
        %2999 = vmatpush1.msra.mxu0 0.0
        %3000 = vmatprep.subr.mxu0 0.0
        %3001 = vmatpush1.msra.mxu0 0.0
        %3002 = vmatprep.subr.mxu0 0.0
        %3003 = vmatpush1.msra.mxu0 0.0
        %3004 = vmatprep.subr.mxu0 0.0
        %3005 = vmatpush1.msra.mxu0 0.0
        %3006 = vmatprep.subr.mxu0 0.0
        %3007 = vmatpush1.msra.mxu0 %v2971
        %3008 = vmatprep.subr.mxu0 0.0
        %3009 = vmatpush1.msra.mxu0 %v2970
        %3010 = vmatprep.subr.mxu0 0.0
        %3011 = vmatpush1.msra.mxu0 %v2969
        %3012 = vmatprep.subr.mxu0 0.0
        %3013 = vmatpush1.msra.mxu0 %v2968
        %3014 = vmatprep.subr.mxu0 0.0
        %3015 = vmatpush2.msra.mxu0 0.0
        %3016 = vmatprep.subr.mxu0 0.0
        %3017 = vmatpush2.msra.mxu0 0.0
        %3018 = vmatprep.subr.mxu0 0.0
        %3019 = vmatpush2.msra.mxu0 0.0
        %3020 = vmatprep.subr.mxu0 0.0
        %3021 = vmatpush2.msra.mxu0 0.0
        %3022 = vmatprep.subr.mxu0 0.0
        %3023 = vmatpush2.msra.mxu0 0.0
        %3024 = vmatprep.subr.mxu0 0.0
        %3025 = vmatpush2.msra.mxu0 0.0
        %3026 = vmatprep.subr.mxu0 0.0
        %3027 = vmatpush2.msra.mxu0 0.0
        %3028 = vmatprep.subr.mxu0 0.0
        %3029 = vmatpush2.msra.mxu0 0.0
        %3030 = vmatprep.subr.mxu0 0.0
        %3031 = vmatpush2.msra.mxu0 0.0
        %3032 = vmatprep.subr.mxu0 0.0
        %3033 = vmatpush2.msra.mxu0 0.0
        %3034 = vmatprep.subr.mxu0 0.0
        %3035 = vmatpush2.msra.mxu0 0.0
        %3036 = vmatprep.subr.mxu0 0.0
        %3037 = vmatpush2.msra.mxu0 0.0
        %3038 = vmatprep.subr.mxu0 0.0
        %3039 = vmatpush2.msra.mxu0 0.0
        %3040 = vmatprep.subr.mxu0 0.0
        %3041 = vmatpush2.msra.mxu0 0.0
        %3042 = vmatprep.subr.mxu0 0.0
        %3043 = vmatpush2.msra.mxu0 0.0
        %3044 = vmatprep.subr.mxu0 0.0
        %3045 = vmatpush2.msra.mxu0 0.0
        %3046 = vmatprep.mubr.f32.mxu0 0.0
        %3047 = vmatmul.mubr.f32.gmra.mxu0 %v2980
        %v3048 = vpop.f32.mrf.mxu0
        %v3049 = vadd.f32 %v2977, %v3048
        %v3050 = vpop.f32.mrf.mxu0
        %3051 = vdwg.mxu0
        %v3052 = vmax.f32 %v3049, 0.0
        %v3053 = vld [vmem:[%s14] sm:$0xff]
        %v3054 = vld [vmem:[%s14 + $0x8] sm:$0xff]
        %v3055 = vld [vmem:[%s14 + $0x10] sm:$0xff]
        %v3056 = vld [vmem:[%s14 + $0x18] sm:$0xff]
        %v3057 = vld [vmem:[%s14 + $0x20] sm:$0xff]
        %v3058 = vld [vmem:[%s14 + $0x28] sm:$0xff]
        %v3059 = vld [vmem:[%s14 + $0x30] sm:$0xff]
        %v3060 = vld [vmem:[%s14 + $0x38] sm:$0xff]
        %v3062 = vsel %vm1911, %v3052, 0
        %3064 = vmatprep.subr.mxu0 0.0
        %3065 = vmatpush1.msra.mxu0 0.0
        %3066 = vmatprep.subr.mxu0 0.0
        %3067 = vmatpush1.msra.mxu0 0.0
        %3068 = vmatprep.subr.mxu0 0.0
        %3069 = vmatpush1.msra.mxu0 0.0
        %3070 = vmatprep.subr.mxu0 0.0
        %3071 = vmatpush1.msra.mxu0 0.0
        %3072 = vmatprep.subr.mxu0 0.0
        %3073 = vmatpush1.msra.mxu0 0.0
        %3074 = vmatprep.subr.mxu0 0.0
        %3075 = vmatpush1.msra.mxu0 0.0
        %3076 = vmatprep.subr.mxu0 0.0
        %3077 = vmatpush1.msra.mxu0 0.0
        %3078 = vmatprep.subr.mxu0 0.0
        %3079 = vmatpush1.msra.mxu0 0.0
        %3080 = vmatprep.subr.mxu0 0.0
        %3081 = vmatpush1.msra.mxu0 %v3060
        %3082 = vmatprep.subr.mxu0 0.0
        %3083 = vmatpush1.msra.mxu0 %v3059
        %3084 = vmatprep.subr.mxu0 0.0
        %3085 = vmatpush1.msra.mxu0 %v3058
        %3086 = vmatprep.subr.mxu0 0.0
        %3087 = vmatpush1.msra.mxu0 %v3057
        %3088 = vmatprep.subr.mxu0 0.0
        %3089 = vmatpush1.msra.mxu0 %v3056
        %3090 = vmatprep.subr.mxu0 0.0
        %3091 = vmatpush1.msra.mxu0 %v3055
        %3092 = vmatprep.subr.mxu0 0.0
        %3093 = vmatpush1.msra.mxu0 %v3054
        %3094 = vmatprep.subr.mxu0 0.0
        %3095 = vmatpush1.msra.mxu0 %v3053
        %3096 = vmatprep.subr.mxu0 0.0
        %3097 = vmatpush2.msra.mxu0 0.0
        %3098 = vmatprep.subr.mxu0 0.0
        %3099 = vmatpush2.msra.mxu0 0.0
        %3100 = vmatprep.subr.mxu0 0.0
        %3101 = vmatpush2.msra.mxu0 0.0
        %3102 = vmatprep.subr.mxu0 0.0
        %3103 = vmatpush2.msra.mxu0 0.0
        %3104 = vmatprep.subr.mxu0 0.0
        %3105 = vmatpush2.msra.mxu0 0.0
        %3106 = vmatprep.subr.mxu0 0.0
        %3107 = vmatpush2.msra.mxu0 0.0
        %3108 = vmatprep.subr.mxu0 0.0
        %3109 = vmatpush2.msra.mxu0 0.0
        %3110 = vmatprep.subr.mxu0 0.0
        %3111 = vmatpush2.msra.mxu0 0.0
        %3112 = vmatprep.subr.mxu0 0.0
        %3113 = vmatpush2.msra.mxu0 0.0
        %3114 = vmatprep.subr.mxu0 0.0
        %3115 = vmatpush2.msra.mxu0 0.0
        %3116 = vmatprep.subr.mxu0 0.0
        %3117 = vmatpush2.msra.mxu0 0.0
        %3118 = vmatprep.subr.mxu0 0.0
        %3119 = vmatpush2.msra.mxu0 0.0
        %3120 = vmatprep.subr.mxu0 0.0
        %3121 = vmatpush2.msra.mxu0 0.0
        %3122 = vmatprep.subr.mxu0 0.0
        %3123 = vmatpush2.msra.mxu0 0.0
        %3124 = vmatprep.subr.mxu0 0.0
        %3125 = vmatpush2.msra.mxu0 0.0
        %3126 = vmatprep.subr.mxu0 0.0
        %3127 = vmatpush2.msra.mxu0 0.0
        %3128 = vmatprep.mubr.f32.mxu0 0.0
        %3129 = vmatmul.mubr.f32.gmra.mxu0 %v3062
        %v3130 = vpop.f32.mrf.mxu0
        %v3131 = vadd.f32 0.0, %v3130
        %v3132 = vpop.f32.mrf.mxu0
        %3133 = vdwg.mxu0
        %v3134 = vadd.f32 %v2935, %v3131
        %v3135 = vld [vmem:[%s15] sm:$0x1]
        %v3137 = vlaneseq
        %v3138 = vshrl.u32 %v3137, 7
        %v3139 = vsub.s32 0, %v3138
        %v3140 = vrot.slane %v3135, %v3139
        %v3142 = vadd.f32 %v3134, %v3140
        %3143 = vst.msk [vmem:[%s710] sm:$0xff] %vm737, %v3142
        %s3144 = sand.u32 %s424, 1
        %s3145 = scalar_lea.sflag [#allocation4], %s3144
        %s3146 = sand.u32 %s424, 1
        %s3147 = smul.addr %s3146, 8
        %s3148 = scalar_lea.vmem [#allocation14], %s3147
        // Predicated region
        $region117: #{tpu_custom_call.1} parent=87 // pred_check
          %p3149 = pneg %p434
        $region118: #{tpu_custom_call.1} parent=87 // pred_check_branch
          %3151 = sbr.rel (%p3149) target = $region120
        $region119: #{tpu_custom_call.1} parent=87 // pred_region
          %s3153 = ssub.s32 128, 128
          %3154 = vsyncadd %s3145, %s3153
          %s3155 = smul.addr %s39, 128
          %s3156 = scalar_lea.hbm %s17, %s3155
          %s3158 = sshll.u32 %s3148, 4
          %s3159 = int_to_ptr.vmem [resolvable:$true] %s3158
          %3161 = dma.vmem_to_hbm [thread:$0]  %s3159, 128, %s3156, %s3145
        $region120: #{tpu_custom_call.1} parent=87 // pred_fallthru
          _
      $region88: #{tpu_custom_call.1} parent=5 // pred_fallthru
        _
      %p3162 = scmp.le.s32.totalorder 2, %s34
      // Predicated region
      $region121: #{tpu_custom_call.1} parent=5 // pred_check
        %p3163 = pneg %p3162
      $region122: #{tpu_custom_call.1} parent=5 // pred_check_branch
        %3165 = sbr.rel (%p3163) target = $region124
      $region123: #{tpu_custom_call.1} parent=5 // pred_region
        %s3166 = ssub.s32 %s34, 2
        // Predicated region
        $region125: #{tpu_custom_call.1} parent=123 // pred_check
          %p3167 = pneg %p440
        $region126: #{tpu_custom_call.1} parent=123 // pred_check_branch
          %3169 = sbr.rel (%p3167) target = $region128
        $region127: #{tpu_custom_call.1} parent=123 // pred_region
          %s3170 = sand.u32 %s425, 1
          %s3171 = scalar_lea.sflag [#allocation4], %s3170
          %s3172 = sand.u32 %s425, 1
          %s3173 = smul.addr %s3172, 8
          %s3174 = scalar_lea.vmem [#allocation14], %s3173
          %3175 = dma.done %s3171, 128
        $region128: #{tpu_custom_call.1} parent=123 // pred_fallthru
          _
      $region124: #{tpu_custom_call.1} parent=5 // pred_fallthru
        _
    $region6: #{tpu_custom_call.1} parent=1 // loop_footer
      %s38 = sadd.s32 1, %s34
    $region7: #{tpu_custom_call.1} parent=1 // loop_footer_branch
      %33 = sbr.rel target = $region3
    $region8: #{tpu_custom_call.1} parent=1 // loop_exit
      _
    %3176 = vsyncpa [#allocation3], 1
    %s3177 = scalar_lea.sflag [#allocation3], 1
    %3178 = vsyncpa %s3177, 1
    %3179 = vsyncpa [#allocation6], 1
    %s3180 = scalar_lea.sflag [#allocation6], 1
    %3181 = vsyncpa %s3180, 1
    %3182 = vsyncpa [#allocation9], 1
    %3183 = vsyncpa [#allocation12], 1
    %3184 = vsyncpa [#allocation4], 1
    %s3185 = scalar_lea.sflag [#allocation4], 1
    %3186 = vsyncpa %s3185, 1

</llo_original>
